<compile_context>
chip_gen: v6e
topology: v6e:2x2x1
jax: 0.10.0
libtpu: 0.0.40
codegen_flags: <defaults>
</compile_context>

<pallas_src>
import functools

import jax
import jax.numpy as jnp
from jax import lax
from jax.experimental import pallas as pl
from jax.experimental.pallas import tpu as pltpu


def _round_up(x, m):
    return ((x + m - 1) // m) * m


def _maxpool2x2_kernel(sel_ref, x_ref, o_ref, *, wp, wo, k):
    # sel_ref: (2*nc-1, nc) 0/1 even-column gather matrix, nc = min(wo, 128)
    # x_ref:   (tm, k*2*wp) -- k segments, each [src row 2i | src row 2i+1]
    # o_ref:   (tm, k*wo)
    sel = sel_ref[...]
    x = x_ref[...]
    for s in range(k):                       # static unroll over packed segments
        base = s * 2 * wp
        top = x[:, base: base + wp]
        bot = x[:, base + wp: base + 2 * wp]
        v = jnp.maximum(top, bot)            # vertical 2-row max, (tm, wp)
        # horizontal neighbour max: h[t] = max(v[t], v[t+1]), width wp-1
        h = jnp.maximum(v[:, : wp - 1], v[:, 1:])
        # stride-2 compaction: gather even columns of h with a 0/1 matmul on
        # the otherwise-idle MXU, chunked per <=128 output columns.
        for j in range(0, wo, 128):
            cw = min(128, wo - j)
            out = jnp.dot(
                h[:, 2 * j: 2 * j + 2 * cw - 1],
                sel[: 2 * cw - 1, : cw],
                preferred_element_type=jnp.float32,
                precision=lax.Precision.HIGHEST)   # exact 0/1 gather for f32
            o_ref[:, s * wo + j: s * wo + j + cw] = out.astype(o_ref.dtype)


def downsample_pallas(x_nchw, *, tm_max=4096):
    """Semantics of nn.MaxPool2d(2): 2x2 window, stride 2, floor mode.

    x_nchw : (N, C, H, W)  ->  (N, C, H//2, W//2)
    """
    N, C, H, W = x_nchw.shape
    assert H >= 2 and W >= 2, "MaxPool2d(2) needs H, W >= 2"
    Ho, Wo = H // 2, W // 2
    Wp = 2 * Wo

    # PyTorch floor mode: odd trailing row/col ignored (no-op slice when even).
    x = x_nchw[:, :, : 2 * Ho, :Wp]

    dtype = x_nchw.dtype
    esize = jnp.dtype(dtype).itemsize
    align = max(8, 32 // esize)      # sublane packing: 8 f32 / 16 bf16 / 32 int8

    # Lane-dense output packing: when Wo < 128, pack k pooled row-pairs per
    # flat row so the output HBM block is wide (bounded unroll, k | M).
    M = N * C * Ho
    k = 1
    if Wo < 128:
        while ((2 * k) * Wo <= 512 and (2 * k) <= 32
               and M % (2 * k) == 0 and M // (2 * k) >= 8):
            k *= 2
    Mk = M // k

    # Pure contiguous reshape (no HBM transpose): (N,C,2Ho,Wp) -> (Mk, k*2*Wp).
    x2 = x.reshape(Mk, k * 2 * Wp)

    # 0/1 even-column gather matrix, built once and passed in (hoisted).
    nc = min(Wo, 128)
    kc = max(2 * nc - 1, 1)
    sel = (jnp.arange(kc)[:, None] == 2 * jnp.arange(nc)[None, :]).astype(dtype)

    # One VMEM number drives tile budget and the scoped limit.
    try:
        vmem_cap = pltpu.get_tpu_info().vmem_capacity_bytes
    except Exception:
        vmem_cap = 64 * 1024 * 1024
    budget = min(vmem_cap // 2, 28 * 1024 * 1024)

    in_row_b = _round_up(k * 2 * Wp, 128) * esize
    out_row_b = _round_up(k * Wo, 128) * esize
    tmp_row_b = 3 * _round_up(Wp, 128) * esize + _round_up(nc, 128) * 4
    per_row_b = 2 * (in_row_b + out_row_b) + tmp_row_b     # dbl-buffered io + temps
    tm_fit = max(align, (budget // per_row_b) // align * align)
    tm = min(tm_max, tm_fit, _round_up(Mk, align))
    # Keep >= 4 grid steps when rows allow: lets v7x's two TensorCores split the
    # "parallel" axis and gives the pipeline something to overlap.
    tm = max(align, min(tm, _round_up(pl.cdiv(Mk, 4), align)))

    grid = (pl.cdiv(Mk, tm),)       # ragged last block masked by Pallas (no pad)

    # Advisory cost for XLA's scheduler.
    chunk_ws = [min(128, Wo - j) for j in range(0, Wo, 128)]
    mm_flops = sum(2 * (2 * cw - 1) * cw for cw in chunk_ws)
    flops = Mk * k * (Wp + (Wp - 1) + mm_flops)
    bytes_accessed = (Mk * k * 2 * Wp + Mk * k * Wo + kc * nc) * esize

    out_flat = pl.pallas_call(
        functools.partial(_maxpool2x2_kernel, wp=Wp, wo=Wo, k=k),
        out_shape=jax.ShapeDtypeStruct((Mk, k * Wo), dtype),
        grid_spec=pltpu.PrefetchScalarGridSpec(
            num_scalar_prefetch=0,
            grid=grid,
            in_specs=[
                pl.BlockSpec((kc, nc), lambda i: (0, 0)),          # sel: fetched once
                pl.BlockSpec((tm, k * 2 * Wp), lambda i: (i, 0)),
            ],
            out_specs=pl.BlockSpec((tm, k * Wo), lambda i: (i, 0)),
        ),
        compiler_params=pltpu.CompilerParams(
            dimension_semantics=("parallel",),
            vmem_limit_bytes=32 * 1024 * 1024,
        ),
        cost_estimate=pl.CostEstimate(
            flops=int(flops),
            transcendentals=0,
            bytes_accessed=int(bytes_accessed),
        ),
    )(sel, x2)

    # Pure contiguous reshape back to NCHW (no transpose, no slicing).
    return out_flat.reshape(N, C, Ho, Wo)


def _ref_maxpool2(x):
    N, C, H, W = x.shape
    Ho, Wo = H // 2, W // 2
    return jnp.max(x[:, :, : 2 * Ho, : 2 * Wo].reshape(N, C, Ho, 2, Wo, 2),
                   axis=(3, 5))


if __name__ == "__main__":
    # Primary check: even spatial size, f32.
    N, C, H, W = 2, 4, 16, 16
    x = jax.random.normal(jax.random.PRNGKey(0), (N, C, H, W), dtype=jnp.float32)
    out = jax.block_until_ready(downsample_pallas(x))
    ref = _ref_maxpool2(x)
    assert out.shape == (N, C, H // 2, W // 2)
    assert jnp.allclose(out, ref, atol=1e-6, rtol=0.0)

    # Secondary check: odd spatial size (floor mode), f32.
    N2, C2, H2, W2 = 1, 3, 9, 13
    x2 = jax.random.normal(jax.random.PRNGKey(1), (N2, C2, H2, W2),
                           dtype=jnp.float32)
    out2 = jax.block_until_ready(downsample_pallas(x2))
    ref2 = _ref_maxpool2(x2)
    assert out2.shape == (N2, C2, H2 // 2, W2 // 2)
    assert jnp.allclose(out2, ref2, atol=1e-6, rtol=0.0)

    print("KERNEL_OK")
</pallas_src>

<mosaic_0001>
module attributes {stable_mosaic.version = 11 : i64} {
  func.func @_maxpool2x2_kernel(%arg0: i32, %arg1: memref<15x8xf32, #tpu.memory_space<vmem>>, %arg2: memref<8x256xf32, #tpu.memory_space<vmem>>, %arg3: memref<8x64xf32, #tpu.memory_space<vmem>>) attributes {dimension_semantics = [#tpu.dimension_semantics<parallel>], iteration_bounds = array<i64: 1>, scalar_prefetch = 0 : i64, scratch_operands = 0 : i64, tpu.core_type = #tpu.core_type<tc>, window_params = [{pipeline_mode = #tpu.pipeline_mode<synchronous>, transform_indices = @transform_0, window_bounds = array<i64: 15, 8>}, {transform_indices = @transform_1, window_bounds = array<i64: 8, 256>}, {transform_indices = @transform_2, window_bounds = array<i64: 8, 64>}]} {
    %c0 = arith.constant 0 : index
    %c0_0 = arith.constant 0 : index
    %0 = vector.load %arg1[%c0, %c0_0] : memref<15x8xf32, #tpu.memory_space<vmem>>, vector<15x8xf32>
    %c0_1 = arith.constant 0 : index
    %c0_2 = arith.constant 0 : index
    %1 = vector.load %arg2[%c0_1, %c0_2] : memref<8x256xf32, #tpu.memory_space<vmem>>, vector<8x256xf32>
    %2 = vector.extract_strided_slice %1 {offsets = [0, 0], sizes = [8, 16], strides = [1, 1]} : vector<8x256xf32> to vector<8x16xf32>
    %3 = vector.extract_strided_slice %1 {offsets = [0, 16], sizes = [8, 16], strides = [1, 1]} : vector<8x256xf32> to vector<8x16xf32>
    %4 = arith.maximumf %2, %3 : vector<8x16xf32>
    %5 = vector.extract_strided_slice %4 {offsets = [0, 0], sizes = [8, 15], strides = [1, 1]} : vector<8x16xf32> to vector<8x15xf32>
    %6 = vector.extract_strided_slice %4 {offsets = [0, 1], sizes = [8, 15], strides = [1, 1]} : vector<8x16xf32> to vector<8x15xf32>
    %7 = arith.maximumf %5, %6 : vector<8x15xf32>
    %cst = arith.constant dense<0.000000e+00> : vector<8x8xf32>
    %8 = tpu.matmul %7, %0, %cst {dimension_numbers = #tpu.dot_dimension_numbers<[1], [0], [0], [1], [0, 0, 1, 1], [], []>, precision = #tpu.contract_precision<fp32>} : vector<8x15xf32>, vector<15x8xf32>, vector<8x8xf32> -> vector<8x8xf32>
    %c0_3 = arith.constant 0 : index
    %c0_4 = arith.constant 0 : index
    %9 = vector.load %arg3[%c0_3, %c0_4] : memref<8x64xf32, #tpu.memory_space<vmem>>, vector<8x8xf32>
    tpu.vector_store %arg3[%c0_3, %c0_4], %8 {strides = array<i32>} : memref<8x64xf32, #tpu.memory_space<vmem>>, vector<8x8xf32>,
    %10 = vector.extract_strided_slice %1 {offsets = [0, 32], sizes = [8, 16], strides = [1, 1]} : vector<8x256xf32> to vector<8x16xf32>
    %11 = vector.extract_strided_slice %1 {offsets = [0, 48], sizes = [8, 16], strides = [1, 1]} : vector<8x256xf32> to vector<8x16xf32>
    %12 = arith.maximumf %10, %11 : vector<8x16xf32>
    %13 = vector.extract_strided_slice %12 {offsets = [0, 0], sizes = [8, 15], strides = [1, 1]} : vector<8x16xf32> to vector<8x15xf32>
    %14 = vector.extract_strided_slice %12 {offsets = [0, 1], sizes = [8, 15], strides = [1, 1]} : vector<8x16xf32> to vector<8x15xf32>
    %15 = arith.maximumf %13, %14 : vector<8x15xf32>
    %cst_5 = arith.constant dense<0.000000e+00> : vector<8x8xf32>
    %16 = tpu.matmul %15, %0, %cst_5 {dimension_numbers = #tpu.dot_dimension_numbers<[1], [0], [0], [1], [0, 0, 1, 1], [], []>, precision = #tpu.contract_precision<fp32>} : vector<8x15xf32>, vector<15x8xf32>, vector<8x8xf32> -> vector<8x8xf32>
    %c0_6 = arith.constant 0 : index
    %c8 = arith.constant 8 : index
    %17 = vector.load %arg3[%c0_6, %c8] : memref<8x64xf32, #tpu.memory_space<vmem>>, vector<8x8xf32>
    tpu.vector_store %arg3[%c0_6, %c8], %16 {strides = array<i32>} : memref<8x64xf32, #tpu.memory_space<vmem>>, vector<8x8xf32>,
    %18 = vector.extract_strided_slice %1 {offsets = [0, 64], sizes = [8, 16], strides = [1, 1]} : vector<8x256xf32> to vector<8x16xf32>
    %19 = vector.extract_strided_slice %1 {offsets = [0, 80], sizes = [8, 16], strides = [1, 1]} : vector<8x256xf32> to vector<8x16xf32>
    %20 = arith.maximumf %18, %19 : vector<8x16xf32>
    %21 = vector.extract_strided_slice %20 {offsets = [0, 0], sizes = [8, 15], strides = [1, 1]} : vector<8x16xf32> to vector<8x15xf32>
    %22 = vector.extract_strided_slice %20 {offsets = [0, 1], sizes = [8, 15], strides = [1, 1]} : vector<8x16xf32> to vector<8x15xf32>
    %23 = arith.maximumf %21, %22 : vector<8x15xf32>
    %cst_7 = arith.constant dense<0.000000e+00> : vector<8x8xf32>
    %24 = tpu.matmul %23, %0, %cst_7 {dimension_numbers = #tpu.dot_dimension_numbers<[1], [0], [0], [1], [0, 0, 1, 1], [], []>, precision = #tpu.contract_precision<fp32>} : vector<8x15xf32>, vector<15x8xf32>, vector<8x8xf32> -> vector<8x8xf32>
    %c0_8 = arith.constant 0 : index
    %c16 = arith.constant 16 : index
    %25 = vector.load %arg3[%c0_8, %c16] : memref<8x64xf32, #tpu.memory_space<vmem>>, vector<8x8xf32>
    tpu.vector_store %arg3[%c0_8, %c16], %24 {strides = array<i32>} : memref<8x64xf32, #tpu.memory_space<vmem>>, vector<8x8xf32>,
    %26 = vector.extract_strided_slice %1 {offsets = [0, 96], sizes = [8, 16], strides = [1, 1]} : vector<8x256xf32> to vector<8x16xf32>
    %27 = vector.extract_strided_slice %1 {offsets = [0, 112], sizes = [8, 16], strides = [1, 1]} : vector<8x256xf32> to vector<8x16xf32>
    %28 = arith.maximumf %26, %27 : vector<8x16xf32>
    %29 = vector.extract_strided_slice %28 {offsets = [0, 0], sizes = [8, 15], strides = [1, 1]} : vector<8x16xf32> to vector<8x15xf32>
    %30 = vector.extract_strided_slice %28 {offsets = [0, 1], sizes = [8, 15], strides = [1, 1]} : vector<8x16xf32> to vector<8x15xf32>
    %31 = arith.maximumf %29, %30 : vector<8x15xf32>
    %cst_9 = arith.constant dense<0.000000e+00> : vector<8x8xf32>
    %32 = tpu.matmul %31, %0, %cst_9 {dimension_numbers = #tpu.dot_dimension_numbers<[1], [0], [0], [1], [0, 0, 1, 1], [], []>, precision = #tpu.contract_precision<fp32>} : vector<8x15xf32>, vector<15x8xf32>, vector<8x8xf32> -> vector<8x8xf32>
    %c0_10 = arith.constant 0 : index
    %c24 = arith.constant 24 : index
    %33 = vector.load %arg3[%c0_10, %c24] : memref<8x64xf32, #tpu.memory_space<vmem>>, vector<8x8xf32>
    tpu.vector_store %arg3[%c0_10, %c24], %32 {strides = array<i32>} : memref<8x64xf32, #tpu.memory_space<vmem>>, vector<8x8xf32>,
    %34 = vector.extract_strided_slice %1 {offsets = [0, 128], sizes = [8, 16], strides = [1, 1]} : vector<8x256xf32> to vector<8x16xf32>
    %35 = vector.extract_strided_slice %1 {offsets = [0, 144], sizes = [8, 16], strides = [1, 1]} : vector<8x256xf32> to vector<8x16xf32>
    %36 = arith.maximumf %34, %35 : vector<8x16xf32>
    %37 = vector.extract_strided_slice %36 {offsets = [0, 0], sizes = [8, 15], strides = [1, 1]} : vector<8x16xf32> to vector<8x15xf32>
    %38 = vector.extract_strided_slice %36 {offsets = [0, 1], sizes = [8, 15], strides = [1, 1]} : vector<8x16xf32> to vector<8x15xf32>
    %39 = arith.maximumf %37, %38 : vector<8x15xf32>
    %cst_11 = arith.constant dense<0.000000e+00> : vector<8x8xf32>
    %40 = tpu.matmul %39, %0, %cst_11 {dimension_numbers = #tpu.dot_dimension_numbers<[1], [0], [0], [1], [0, 0, 1, 1], [], []>, precision = #tpu.contract_precision<fp32>} : vector<8x15xf32>, vector<15x8xf32>, vector<8x8xf32> -> vector<8x8xf32>
    %c0_12 = arith.constant 0 : index
    %c32 = arith.constant 32 : index
    %41 = vector.load %arg3[%c0_12, %c32] : memref<8x64xf32, #tpu.memory_space<vmem>>, vector<8x8xf32>
    tpu.vector_store %arg3[%c0_12, %c32], %40 {strides = array<i32>} : memref<8x64xf32, #tpu.memory_space<vmem>>, vector<8x8xf32>,
    %42 = vector.extract_strided_slice %1 {offsets = [0, 160], sizes = [8, 16], strides = [1, 1]} : vector<8x256xf32> to vector<8x16xf32>
    %43 = vector.extract_strided_slice %1 {offsets = [0, 176], sizes = [8, 16], strides = [1, 1]} : vector<8x256xf32> to vector<8x16xf32>
    %44 = arith.maximumf %42, %43 : vector<8x16xf32>
    %45 = vector.extract_strided_slice %44 {offsets = [0, 0], sizes = [8, 15], strides = [1, 1]} : vector<8x16xf32> to vector<8x15xf32>
    %46 = vector.extract_strided_slice %44 {offsets = [0, 1], sizes = [8, 15], strides = [1, 1]} : vector<8x16xf32> to vector<8x15xf32>
    %47 = arith.maximumf %45, %46 : vector<8x15xf32>
    %cst_13 = arith.constant dense<0.000000e+00> : vector<8x8xf32>
    %48 = tpu.matmul %47, %0, %cst_13 {dimension_numbers = #tpu.dot_dimension_numbers<[1], [0], [0], [1], [0, 0, 1, 1], [], []>, precision = #tpu.contract_precision<fp32>} : vector<8x15xf32>, vector<15x8xf32>, vector<8x8xf32> -> vector<8x8xf32>
    %c0_14 = arith.constant 0 : index
    %c40 = arith.constant 40 : index
    %49 = vector.load %arg3[%c0_14, %c40] : memref<8x64xf32, #tpu.memory_space<vmem>>, vector<8x8xf32>
    tpu.vector_store %arg3[%c0_14, %c40], %48 {strides = array<i32>} : memref<8x64xf32, #tpu.memory_space<vmem>>, vector<8x8xf32>,
    %50 = vector.extract_strided_slice %1 {offsets = [0, 192], sizes = [8, 16], strides = [1, 1]} : vector<8x256xf32> to vector<8x16xf32>
    %51 = vector.extract_strided_slice %1 {offsets = [0, 208], sizes = [8, 16], strides = [1, 1]} : vector<8x256xf32> to vector<8x16xf32>
    %52 = arith.maximumf %50, %51 : vector<8x16xf32>
    %53 = vector.extract_strided_slice %52 {offsets = [0, 0], sizes = [8, 15], strides = [1, 1]} : vector<8x16xf32> to vector<8x15xf32>
    %54 = vector.extract_strided_slice %52 {offsets = [0, 1], sizes = [8, 15], strides = [1, 1]} : vector<8x16xf32> to vector<8x15xf32>
    %55 = arith.maximumf %53, %54 : vector<8x15xf32>
    %cst_15 = arith.constant dense<0.000000e+00> : vector<8x8xf32>
    %56 = tpu.matmul %55, %0, %cst_15 {dimension_numbers = #tpu.dot_dimension_numbers<[1], [0], [0], [1], [0, 0, 1, 1], [], []>, precision = #tpu.contract_precision<fp32>} : vector<8x15xf32>, vector<15x8xf32>, vector<8x8xf32> -> vector<8x8xf32>
    %c0_16 = arith.constant 0 : index
    %c48 = arith.constant 48 : index
    %57 = vector.load %arg3[%c0_16, %c48] : memref<8x64xf32, #tpu.memory_space<vmem>>, vector<8x8xf32>
    tpu.vector_store %arg3[%c0_16, %c48], %56 {strides = array<i32>} : memref<8x64xf32, #tpu.memory_space<vmem>>, vector<8x8xf32>,
    %58 = vector.extract_strided_slice %1 {offsets = [0, 224], sizes = [8, 16], strides = [1, 1]} : vector<8x256xf32> to vector<8x16xf32>
    %59 = vector.extract_strided_slice %1 {offsets = [0, 240], sizes = [8, 16], strides = [1, 1]} : vector<8x256xf32> to vector<8x16xf32>
    %60 = arith.maximumf %58, %59 : vector<8x16xf32>
    %61 = vector.extract_strided_slice %60 {offsets = [0, 0], sizes = [8, 15], strides = [1, 1]} : vector<8x16xf32> to vector<8x15xf32>
    %62 = vector.extract_strided_slice %60 {offsets = [0, 1], sizes = [8, 15], strides = [1, 1]} : vector<8x16xf32> to vector<8x15xf32>
    %63 = arith.maximumf %61, %62 : vector<8x15xf32>
    %cst_17 = arith.constant dense<0.000000e+00> : vector<8x8xf32>
    %64 = tpu.matmul %63, %0, %cst_17 {dimension_numbers = #tpu.dot_dimension_numbers<[1], [0], [0], [1], [0, 0, 1, 1], [], []>, precision = #tpu.contract_precision<fp32>} : vector<8x15xf32>, vector<15x8xf32>, vector<8x8xf32> -> vector<8x8xf32>
    %c0_18 = arith.constant 0 : index
    %c56 = arith.constant 56 : index
    %65 = vector.load %arg3[%c0_18, %c56] : memref<8x64xf32, #tpu.memory_space<vmem>>, vector<8x8xf32>
    tpu.vector_store %arg3[%c0_18, %c56], %64 {strides = array<i32>} : memref<8x64xf32, #tpu.memory_space<vmem>>, vector<8x8xf32>,
    return
  }
  func.func @transform_0(%arg0: i32) -> (i32, i32) {
    %c0_i32 = arith.constant 0 : i32
    %c0_i32_0 = arith.constant 0 : i32
    %c0_i32_1 = arith.constant 0 : i32
    return %c0_i32, %c0_i32_0 : i32, i32
  }
  func.func @transform_1(%arg0: i32) -> (i32, i32) {
    %c0_i32 = arith.constant 0 : i32
    %c0_i32_0 = arith.constant 0 : i32
    return %arg0, %c0_i32 : i32, i32
  }
  func.func @transform_2(%arg0: i32) -> (i32, i32) {
    %c0_i32 = arith.constant 0 : i32
    %c0_i32_0 = arith.constant 0 : i32
    return %arg0, %c0_i32 : i32, i32
  }
}

</mosaic_0001>

<llo_original>
// kernel: tpu_custom_call.1
$region0: #{tpu_custom_call.1}
  #allocation0 [shape = 'u32[]', space=smem, size = 0x4, offset = 0x4, fixed_abs, tag = 'smem constant byte address 0x4 - core index']
  #allocation1 [shape = 'u32[144,128]{1,0:T(1,128)}', space=vmem, size = 0x12000, scoped, tag = 'internal scratch']
  %s0 = inlined_call_operand.vmem [shape: f32[15,8], index: 0, kind: input, shape index: {}]
  %s1 = inlined_call_operand.vmem [shape: f32[8,256], index: 1, kind: input, shape index: {}]
  %s2 = inlined_call_operand.hbm [shape: f32[8,64], index: 2, kind: output, shape index: {}]
  %s3 = sld [smem:[#allocation0]]
  $region18: #{tpu_custom_call.1} parent=0
    _
  %s5 = ssub.s32 1, %s3
  %s6 = scalar_select 0, %s5, %s3
  $region1: #{tpu_custom_call.1} parent=0
    #allocation2 [shape = 'u8[4096]{0}', space=vmem, size = 0x1000, scoped, tag = 'output window, operand 0, single buffered']
    #allocation3 [shape = 's32[1]{0}', space=sflag, size = 0x4, scoped, tag = 'scoped memory for tpu_custom_call.1']
    %7 = vsyncpa [#allocation3], 0
    // Predicated region
    $region2: #{tpu_custom_call.1} parent=1 // pred_check
      _
    $region3: #{tpu_custom_call.1} parent=1 // pred_check_branch
      %9 = sbr.rel (0) target = $region5
    $region4: #{tpu_custom_call.1} parent=1 // pred_region
      _
    $region5: #{tpu_custom_call.1} parent=1 // pred_fallthru
      _
    // Predicated region
    $region6: #{tpu_custom_call.1} parent=1 // pred_check
      _
    $region7: #{tpu_custom_call.1} parent=1 // pred_check_branch
      %11 = sbr.rel (0) target = $region9
    $region8: #{tpu_custom_call.1} parent=1 // pred_region
      _
    $region9: #{tpu_custom_call.1} parent=1 // pred_fallthru
      _
    %v12 = vld [vmem:[%s0] sm:$0xff]
    %v13 = vld [vmem:[%s0 + $0x8] sm:$0x7f]
    %v14 = vld [vmem:[%s1] sm:$0xff]
    %v15 = vld [vmem:[%s1 + $0x8] sm:$0xff]
    %17 = vrot.lane.b32.xlu0 %v14, 112
    %v18 = vpop.permute.xlu0 %17
    %v20 = vmax.f32 %v14, %v18
    %22 = vrot.lane.b32.xlu0 %v20, 127
    %v23 = vpop.permute.xlu0 %22
    %v25 = vmax.f32 %v20, %v23
    %vm26 = vcmask 121856
    %v28 = vsel %vm26, %v25, 0
    %vm30 = vcmask 1046528
    %v32 = vsel %vm30, %v13, 0
    %34 = vmatprep.subr.mxu0 0.0
    %35 = vmatpush1.msra.mxu0 0.0
    %36 = vmatprep.subr.mxu0 0.0
    %37 = vmatpush1.msra.mxu0 0.0
    %38 = vmatprep.subr.mxu0 0.0
    %39 = vmatpush1.msra.mxu0 0.0
    %40 = vmatprep.subr.mxu0 0.0
    %41 = vmatpush1.msra.mxu0 0.0
    %42 = vmatprep.subr.mxu0 0.0
    %43 = vmatpush1.msra.mxu0 0.0
    %44 = vmatprep.subr.mxu0 0.0
    %45 = vmatpush1.msra.mxu0 0.0
    %46 = vmatprep.subr.mxu0 0.0
    %47 = vmatpush1.msra.mxu0 0.0
    %48 = vmatprep.subr.mxu0 0.0
    %49 = vmatpush1.msra.mxu0 0.0
    %50 = vmatprep.subr.mxu0 0.0
    %51 = vmatpush1.msra.mxu0 0.0
    %52 = vmatprep.subr.mxu0 0.0
    %53 = vmatpush1.msra.mxu0 0.0
    %54 = vmatprep.subr.mxu0 0.0
    %55 = vmatpush1.msra.mxu0 0.0
    %56 = vmatprep.subr.mxu0 0.0
    %57 = vmatpush1.msra.mxu0 0.0
    %58 = vmatprep.subr.mxu0 0.0
    %59 = vmatpush1.msra.mxu0 0.0
    %60 = vmatprep.subr.mxu0 0.0
    %61 = vmatpush1.msra.mxu0 0.0
    %62 = vmatprep.subr.mxu0 0.0
    %v63 = vand.u32 %v32, 4294901760
    %64 = vmatpush1.msra.mxu0 %v63
    %65 = vmatprep.subr.mxu0 0.0
    %v66 = vand.u32 %v12, 4294901760
    %67 = vmatpush1.msra.mxu0 %v66
    %68 = vmatprep.subr.mxu0 0.0
    %69 = vmatpush2.msra.mxu0 0.0
    %70 = vmatprep.subr.mxu0 0.0
    %71 = vmatpush2.msra.mxu0 0.0
    %72 = vmatprep.subr.mxu0 0.0
    %73 = vmatpush2.msra.mxu0 0.0
    %74 = vmatprep.subr.mxu0 0.0
    %75 = vmatpush2.msra.mxu0 0.0
    %76 = vmatprep.subr.mxu0 0.0
    %77 = vmatpush2.msra.mxu0 0.0
    %78 = vmatprep.subr.mxu0 0.0
    %79 = vmatpush2.msra.mxu0 0.0
    %80 = vmatprep.subr.mxu0 0.0
    %81 = vmatpush2.msra.mxu0 0.0
    %82 = vmatprep.subr.mxu0 0.0
    %83 = vmatpush2.msra.mxu0 0.0
    %84 = vmatprep.subr.mxu0 0.0
    %85 = vmatpush2.msra.mxu0 0.0
    %86 = vmatprep.subr.mxu0 0.0
    %87 = vmatpush2.msra.mxu0 0.0
    %88 = vmatprep.subr.mxu0 0.0
    %89 = vmatpush2.msra.mxu0 0.0
    %90 = vmatprep.subr.mxu0 0.0
    %91 = vmatpush2.msra.mxu0 0.0
    %92 = vmatprep.subr.mxu0 0.0
    %93 = vmatpush2.msra.mxu0 0.0
    %94 = vmatprep.subr.mxu0 0.0
    %95 = vmatpush2.msra.mxu0 0.0
    %96 = vmatprep.subr.mxu0 0.0
    %97 = vmatpush2.msra.mxu0 0.0
    %98 = vmatprep.subr.mxu0 0.0
    %99 = vmatpush2.msra.mxu0 0.0
    %100 = vmatprep.mubr.f32.mxu0 0.0
    %v101 = vand.u32 %v28, 4294901760
    %v102 = vsub.f32 %v28, %v101
    %v103 = vand.u32 %v102, 4294901760
    %v104 = vsub.f32 %v102, %v103
    %v105 = vand.u32 %v104, 4294901760
    %106 = vmatmul.mubr.f32.gmra.mxu0 %v105
    %v107 = vpop.f32.mrf.mxu0
    %v108 = vadd.f32 0.0, %v107
    %v109 = vpop.f32.mrf.mxu0
    %110 = vdwg.mxu0
    %111 = vmatprep.subr.mxu0 0.0
    %112 = vmatpush1.msra.mxu0 0.0
    %113 = vmatprep.subr.mxu0 0.0
    %114 = vmatpush1.msra.mxu0 0.0
    %115 = vmatprep.subr.mxu0 0.0
    %116 = vmatpush1.msra.mxu0 0.0
    %117 = vmatprep.subr.mxu0 0.0
    %118 = vmatpush1.msra.mxu0 0.0
    %119 = vmatprep.subr.mxu0 0.0
    %120 = vmatpush1.msra.mxu0 0.0
    %121 = vmatprep.subr.mxu0 0.0
    %122 = vmatpush1.msra.mxu0 0.0
    %123 = vmatprep.subr.mxu0 0.0
    %124 = vmatpush1.msra.mxu0 0.0
    %125 = vmatprep.subr.mxu0 0.0
    %126 = vmatpush1.msra.mxu0 0.0
    %127 = vmatprep.subr.mxu0 0.0
    %128 = vmatpush1.msra.mxu0 0.0
    %129 = vmatprep.subr.mxu0 0.0
    %130 = vmatpush1.msra.mxu0 0.0
    %131 = vmatprep.subr.mxu0 0.0
    %132 = vmatpush1.msra.mxu0 0.0
    %133 = vmatprep.subr.mxu0 0.0
    %134 = vmatpush1.msra.mxu0 0.0
    %135 = vmatprep.subr.mxu0 0.0
    %136 = vmatpush1.msra.mxu0 0.0
    %137 = vmatprep.subr.mxu0 0.0
    %138 = vmatpush1.msra.mxu0 0.0
    %139 = vmatprep.subr.mxu0 0.0
    %v140 = vand.u32 %v32, 4294901760
    %v141 = vsub.f32 %v32, %v140
    %v142 = vand.u32 %v141, 4294901760
    %v143 = vsub.f32 %v141, %v142
    %v144 = vand.u32 %v143, 4294901760
    %145 = vmatpush1.msra.mxu0 %v144
    %146 = vmatprep.subr.mxu0 0.0
    %v147 = vand.u32 %v12, 4294901760
    %v148 = vsub.f32 %v12, %v147
    %v149 = vand.u32 %v148, 4294901760
    %v150 = vsub.f32 %v148, %v149
    %v151 = vand.u32 %v150, 4294901760
    %152 = vmatpush1.msra.mxu0 %v151
    %153 = vmatprep.subr.mxu0 0.0
    %154 = vmatpush2.msra.mxu0 0.0
    %155 = vmatprep.subr.mxu0 0.0
    %156 = vmatpush2.msra.mxu0 0.0
    %157 = vmatprep.subr.mxu0 0.0
    %158 = vmatpush2.msra.mxu0 0.0
    %159 = vmatprep.subr.mxu0 0.0
    %160 = vmatpush2.msra.mxu0 0.0
    %161 = vmatprep.subr.mxu0 0.0
    %162 = vmatpush2.msra.mxu0 0.0
    %163 = vmatprep.subr.mxu0 0.0
    %164 = vmatpush2.msra.mxu0 0.0
    %165 = vmatprep.subr.mxu0 0.0
    %166 = vmatpush2.msra.mxu0 0.0
    %167 = vmatprep.subr.mxu0 0.0
    %168 = vmatpush2.msra.mxu0 0.0
    %169 = vmatprep.subr.mxu0 0.0
    %170 = vmatpush2.msra.mxu0 0.0
    %171 = vmatprep.subr.mxu0 0.0
    %172 = vmatpush2.msra.mxu0 0.0
    %173 = vmatprep.subr.mxu0 0.0
    %174 = vmatpush2.msra.mxu0 0.0
    %175 = vmatprep.subr.mxu0 0.0
    %176 = vmatpush2.msra.mxu0 0.0
    %177 = vmatprep.subr.mxu0 0.0
    %178 = vmatpush2.msra.mxu0 0.0
    %179 = vmatprep.subr.mxu0 0.0
    %180 = vmatpush2.msra.mxu0 0.0
    %181 = vmatprep.subr.mxu0 0.0
    %182 = vmatpush2.msra.mxu0 0.0
    %183 = vmatprep.subr.mxu0 0.0
    %184 = vmatpush2.msra.mxu0 0.0
    %185 = vmatprep.mubr.f32.mxu0 0.0
    %v186 = vand.u32 %v28, 4294901760
    %187 = vmatmul.mubr.f32.gmra.mxu0 %v186
    %v188 = vpop.f32.mrf.mxu0
    %v189 = vadd.f32 %v108, %v188
    %v190 = vpop.f32.mrf.mxu0
    %191 = vdwg.mxu0
    %192 = vmatprep.subr.mxu0 0.0
    %193 = vmatpush1.msra.mxu0 0.0
    %194 = vmatprep.subr.mxu0 0.0
    %195 = vmatpush1.msra.mxu0 0.0
    %196 = vmatprep.subr.mxu0 0.0
    %197 = vmatpush1.msra.mxu0 0.0
    %198 = vmatprep.subr.mxu0 0.0
    %199 = vmatpush1.msra.mxu0 0.0
    %200 = vmatprep.subr.mxu0 0.0
    %201 = vmatpush1.msra.mxu0 0.0
    %202 = vmatprep.subr.mxu0 0.0
    %203 = vmatpush1.msra.mxu0 0.0
    %204 = vmatprep.subr.mxu0 0.0
    %205 = vmatpush1.msra.mxu0 0.0
    %206 = vmatprep.subr.mxu0 0.0
    %207 = vmatpush1.msra.mxu0 0.0
    %208 = vmatprep.subr.mxu0 0.0
    %209 = vmatpush1.msra.mxu0 0.0
    %210 = vmatprep.subr.mxu0 0.0
    %211 = vmatpush1.msra.mxu0 0.0
    %212 = vmatprep.subr.mxu0 0.0
    %213 = vmatpush1.msra.mxu0 0.0
    %214 = vmatprep.subr.mxu0 0.0
    %215 = vmatpush1.msra.mxu0 0.0
    %216 = vmatprep.subr.mxu0 0.0
    %217 = vmatpush1.msra.mxu0 0.0
    %218 = vmatprep.subr.mxu0 0.0
    %219 = vmatpush1.msra.mxu0 0.0
    %220 = vmatprep.subr.mxu0 0.0
    %v221 = vand.u32 %v32, 4294901760
    %v222 = vsub.f32 %v32, %v221
    %223 = vmatpush1.msra.mxu0 %v222
    %224 = vmatprep.subr.mxu0 0.0
    %v225 = vand.u32 %v12, 4294901760
    %v226 = vsub.f32 %v12, %v225
    %227 = vmatpush1.msra.mxu0 %v226
    %228 = vmatprep.subr.mxu0 0.0
    %229 = vmatpush2.msra.mxu0 0.0
    %230 = vmatprep.subr.mxu0 0.0
    %231 = vmatpush2.msra.mxu0 0.0
    %232 = vmatprep.subr.mxu0 0.0
    %233 = vmatpush2.msra.mxu0 0.0
    %234 = vmatprep.subr.mxu0 0.0
    %235 = vmatpush2.msra.mxu0 0.0
    %236 = vmatprep.subr.mxu0 0.0
    %237 = vmatpush2.msra.mxu0 0.0
    %238 = vmatprep.subr.mxu0 0.0
    %239 = vmatpush2.msra.mxu0 0.0
    %240 = vmatprep.subr.mxu0 0.0
    %241 = vmatpush2.msra.mxu0 0.0
    %242 = vmatprep.subr.mxu0 0.0
    %243 = vmatpush2.msra.mxu0 0.0
    %244 = vmatprep.subr.mxu0 0.0
    %245 = vmatpush2.msra.mxu0 0.0
    %246 = vmatprep.subr.mxu0 0.0
    %247 = vmatpush2.msra.mxu0 0.0
    %248 = vmatprep.subr.mxu0 0.0
    %249 = vmatpush2.msra.mxu0 0.0
    %250 = vmatprep.subr.mxu0 0.0
    %251 = vmatpush2.msra.mxu0 0.0
    %252 = vmatprep.subr.mxu0 0.0
    %253 = vmatpush2.msra.mxu0 0.0
    %254 = vmatprep.subr.mxu0 0.0
    %255 = vmatpush2.msra.mxu0 0.0
    %256 = vmatprep.subr.mxu0 0.0
    %257 = vmatpush2.msra.mxu0 0.0
    %258 = vmatprep.subr.mxu0 0.0
    %259 = vmatpush2.msra.mxu0 0.0
    %260 = vmatprep.mubr.f32.mxu0 0.0
    %v261 = vand.u32 %v28, 4294901760
    %v262 = vsub.f32 %v28, %v261
    %263 = vmatmul.mubr.f32.gmra.mxu0 %v262
    %v264 = vpop.f32.mrf.mxu0
    %v265 = vadd.f32 %v189, %v264
    %v266 = vpop.f32.mrf.mxu0
    %267 = vdwg.mxu0
    %268 = vmatprep.subr.mxu0 0.0
    %269 = vmatpush1.msra.mxu0 0.0
    %270 = vmatprep.subr.mxu0 0.0
    %271 = vmatpush1.msra.mxu0 0.0
    %272 = vmatprep.subr.mxu0 0.0
    %273 = vmatpush1.msra.mxu0 0.0
    %274 = vmatprep.subr.mxu0 0.0
    %275 = vmatpush1.msra.mxu0 0.0
    %276 = vmatprep.subr.mxu0 0.0
    %277 = vmatpush1.msra.mxu0 0.0
    %278 = vmatprep.subr.mxu0 0.0
    %279 = vmatpush1.msra.mxu0 0.0
    %280 = vmatprep.subr.mxu0 0.0
    %281 = vmatpush1.msra.mxu0 0.0
    %282 = vmatprep.subr.mxu0 0.0
    %283 = vmatpush1.msra.mxu0 0.0
    %284 = vmatprep.subr.mxu0 0.0
    %285 = vmatpush1.msra.mxu0 0.0
    %286 = vmatprep.subr.mxu0 0.0
    %287 = vmatpush1.msra.mxu0 0.0
    %288 = vmatprep.subr.mxu0 0.0
    %289 = vmatpush1.msra.mxu0 0.0
    %290 = vmatprep.subr.mxu0 0.0
    %291 = vmatpush1.msra.mxu0 0.0
    %292 = vmatprep.subr.mxu0 0.0
    %293 = vmatpush1.msra.mxu0 0.0
    %294 = vmatprep.subr.mxu0 0.0
    %295 = vmatpush1.msra.mxu0 0.0
    %296 = vmatprep.subr.mxu0 0.0
    %v297 = vand.u32 %v32, 4294901760
    %298 = vmatpush1.msra.mxu0 %v297
    %299 = vmatprep.subr.mxu0 0.0
    %v300 = vand.u32 %v12, 4294901760
    %301 = vmatpush1.msra.mxu0 %v300
    %302 = vmatprep.subr.mxu0 0.0
    %303 = vmatpush2.msra.mxu0 0.0
    %304 = vmatprep.subr.mxu0 0.0
    %305 = vmatpush2.msra.mxu0 0.0
    %306 = vmatprep.subr.mxu0 0.0
    %307 = vmatpush2.msra.mxu0 0.0
    %308 = vmatprep.subr.mxu0 0.0
    %309 = vmatpush2.msra.mxu0 0.0
    %310 = vmatprep.subr.mxu0 0.0
    %311 = vmatpush2.msra.mxu0 0.0
    %312 = vmatprep.subr.mxu0 0.0
    %313 = vmatpush2.msra.mxu0 0.0
    %314 = vmatprep.subr.mxu0 0.0
    %315 = vmatpush2.msra.mxu0 0.0
    %316 = vmatprep.subr.mxu0 0.0
    %317 = vmatpush2.msra.mxu0 0.0
    %318 = vmatprep.subr.mxu0 0.0
    %319 = vmatpush2.msra.mxu0 0.0
    %320 = vmatprep.subr.mxu0 0.0
    %321 = vmatpush2.msra.mxu0 0.0
    %322 = vmatprep.subr.mxu0 0.0
    %323 = vmatpush2.msra.mxu0 0.0
    %324 = vmatprep.subr.mxu0 0.0
    %325 = vmatpush2.msra.mxu0 0.0
    %326 = vmatprep.subr.mxu0 0.0
    %327 = vmatpush2.msra.mxu0 0.0
    %328 = vmatprep.subr.mxu0 0.0
    %329 = vmatpush2.msra.mxu0 0.0
    %330 = vmatprep.subr.mxu0 0.0
    %331 = vmatpush2.msra.mxu0 0.0
    %332 = vmatprep.subr.mxu0 0.0
    %333 = vmatpush2.msra.mxu0 0.0
    %334 = vmatprep.mubr.f32.mxu0 0.0
    %v335 = vand.u32 %v28, 4294901760
    %v336 = vsub.f32 %v28, %v335
    %v337 = vand.u32 %v336, 4294901760
    %338 = vmatmul.mubr.f32.gmra.mxu0 %v337
    %v339 = vpop.f32.mrf.mxu0
    %v340 = vadd.f32 %v265, %v339
    %v341 = vpop.f32.mrf.mxu0
    %342 = vdwg.mxu0
    %343 = vmatprep.subr.mxu0 0.0
    %344 = vmatpush1.msra.mxu0 0.0
    %345 = vmatprep.subr.mxu0 0.0
    %346 = vmatpush1.msra.mxu0 0.0
    %347 = vmatprep.subr.mxu0 0.0
    %348 = vmatpush1.msra.mxu0 0.0
    %349 = vmatprep.subr.mxu0 0.0
    %350 = vmatpush1.msra.mxu0 0.0
    %351 = vmatprep.subr.mxu0 0.0
    %352 = vmatpush1.msra.mxu0 0.0
    %353 = vmatprep.subr.mxu0 0.0
    %354 = vmatpush1.msra.mxu0 0.0
    %355 = vmatprep.subr.mxu0 0.0
    %356 = vmatpush1.msra.mxu0 0.0
    %357 = vmatprep.subr.mxu0 0.0
    %358 = vmatpush1.msra.mxu0 0.0
    %359 = vmatprep.subr.mxu0 0.0
    %360 = vmatpush1.msra.mxu0 0.0
    %361 = vmatprep.subr.mxu0 0.0
    %362 = vmatpush1.msra.mxu0 0.0
    %363 = vmatprep.subr.mxu0 0.0
    %364 = vmatpush1.msra.mxu0 0.0
    %365 = vmatprep.subr.mxu0 0.0
    %366 = vmatpush1.msra.mxu0 0.0
    %367 = vmatprep.subr.mxu0 0.0
    %368 = vmatpush1.msra.mxu0 0.0
    %369 = vmatprep.subr.mxu0 0.0
    %370 = vmatpush1.msra.mxu0 0.0
    %371 = vmatprep.subr.mxu0 0.0
    %v372 = vand.u32 %v32, 4294901760
    %v373 = vsub.f32 %v32, %v372
    %v374 = vand.u32 %v373, 4294901760
    %375 = vmatpush1.msra.mxu0 %v374
    %376 = vmatprep.subr.mxu0 0.0
    %v377 = vand.u32 %v12, 4294901760
    %v378 = vsub.f32 %v12, %v377
    %v379 = vand.u32 %v378, 4294901760
    %380 = vmatpush1.msra.mxu0 %v379
    %381 = vmatprep.subr.mxu0 0.0
    %382 = vmatpush2.msra.mxu0 0.0
    %383 = vmatprep.subr.mxu0 0.0
    %384 = vmatpush2.msra.mxu0 0.0
    %385 = vmatprep.subr.mxu0 0.0
    %386 = vmatpush2.msra.mxu0 0.0
    %387 = vmatprep.subr.mxu0 0.0
    %388 = vmatpush2.msra.mxu0 0.0
    %389 = vmatprep.subr.mxu0 0.0
    %390 = vmatpush2.msra.mxu0 0.0
    %391 = vmatprep.subr.mxu0 0.0
    %392 = vmatpush2.msra.mxu0 0.0
    %393 = vmatprep.subr.mxu0 0.0
    %394 = vmatpush2.msra.mxu0 0.0
    %395 = vmatprep.subr.mxu0 0.0
    %396 = vmatpush2.msra.mxu0 0.0
    %397 = vmatprep.subr.mxu0 0.0
    %398 = vmatpush2.msra.mxu0 0.0
    %399 = vmatprep.subr.mxu0 0.0
    %400 = vmatpush2.msra.mxu0 0.0
    %401 = vmatprep.subr.mxu0 0.0
    %402 = vmatpush2.msra.mxu0 0.0
    %403 = vmatprep.subr.mxu0 0.0
    %404 = vmatpush2.msra.mxu0 0.0
    %405 = vmatprep.subr.mxu0 0.0
    %406 = vmatpush2.msra.mxu0 0.0
    %407 = vmatprep.subr.mxu0 0.0
    %408 = vmatpush2.msra.mxu0 0.0
    %409 = vmatprep.subr.mxu0 0.0
    %410 = vmatpush2.msra.mxu0 0.0
    %411 = vmatprep.subr.mxu0 0.0
    %412 = vmatpush2.msra.mxu0 0.0
    %413 = vmatprep.mubr.f32.mxu0 0.0
    %v414 = vand.u32 %v28, 4294901760
    %415 = vmatmul.mubr.f32.gmra.mxu0 %v414
    %v416 = vpop.f32.mrf.mxu0
    %v417 = vadd.f32 %v340, %v416
    %v418 = vpop.f32.mrf.mxu0
    %419 = vdwg.mxu0
    %420 = vmatprep.subr.mxu0 0.0
    %421 = vmatpush1.msra.mxu0 0.0
    %422 = vmatprep.subr.mxu0 0.0
    %423 = vmatpush1.msra.mxu0 0.0
    %424 = vmatprep.subr.mxu0 0.0
    %425 = vmatpush1.msra.mxu0 0.0
    %426 = vmatprep.subr.mxu0 0.0
    %427 = vmatpush1.msra.mxu0 0.0
    %428 = vmatprep.subr.mxu0 0.0
    %429 = vmatpush1.msra.mxu0 0.0
    %430 = vmatprep.subr.mxu0 0.0
    %431 = vmatpush1.msra.mxu0 0.0
    %432 = vmatprep.subr.mxu0 0.0
    %433 = vmatpush1.msra.mxu0 0.0
    %434 = vmatprep.subr.mxu0 0.0
    %435 = vmatpush1.msra.mxu0 0.0
    %436 = vmatprep.subr.mxu0 0.0
    %437 = vmatpush1.msra.mxu0 0.0
    %438 = vmatprep.subr.mxu0 0.0
    %439 = vmatpush1.msra.mxu0 0.0
    %440 = vmatprep.subr.mxu0 0.0
    %441 = vmatpush1.msra.mxu0 0.0
    %442 = vmatprep.subr.mxu0 0.0
    %443 = vmatpush1.msra.mxu0 0.0
    %444 = vmatprep.subr.mxu0 0.0
    %445 = vmatpush1.msra.mxu0 0.0
    %446 = vmatprep.subr.mxu0 0.0
    %447 = vmatpush1.msra.mxu0 0.0
    %448 = vmatprep.subr.mxu0 0.0
    %v449 = vand.u32 %v32, 4294901760
    %450 = vmatpush1.msra.mxu0 %v449
    %451 = vmatprep.subr.mxu0 0.0
    %v452 = vand.u32 %v12, 4294901760
    %453 = vmatpush1.msra.mxu0 %v452
    %454 = vmatprep.subr.mxu0 0.0
    %455 = vmatpush2.msra.mxu0 0.0
    %456 = vmatprep.subr.mxu0 0.0
    %457 = vmatpush2.msra.mxu0 0.0
    %458 = vmatprep.subr.mxu0 0.0
    %459 = vmatpush2.msra.mxu0 0.0
    %460 = vmatprep.subr.mxu0 0.0
    %461 = vmatpush2.msra.mxu0 0.0
    %462 = vmatprep.subr.mxu0 0.0
    %463 = vmatpush2.msra.mxu0 0.0
    %464 = vmatprep.subr.mxu0 0.0
    %465 = vmatpush2.msra.mxu0 0.0
    %466 = vmatprep.subr.mxu0 0.0
    %467 = vmatpush2.msra.mxu0 0.0
    %468 = vmatprep.subr.mxu0 0.0
    %469 = vmatpush2.msra.mxu0 0.0
    %470 = vmatprep.subr.mxu0 0.0
    %471 = vmatpush2.msra.mxu0 0.0
    %472 = vmatprep.subr.mxu0 0.0
    %473 = vmatpush2.msra.mxu0 0.0
    %474 = vmatprep.subr.mxu0 0.0
    %475 = vmatpush2.msra.mxu0 0.0
    %476 = vmatprep.subr.mxu0 0.0
    %477 = vmatpush2.msra.mxu0 0.0
    %478 = vmatprep.subr.mxu0 0.0
    %479 = vmatpush2.msra.mxu0 0.0
    %480 = vmatprep.subr.mxu0 0.0
    %481 = vmatpush2.msra.mxu0 0.0
    %482 = vmatprep.subr.mxu0 0.0
    %483 = vmatpush2.msra.mxu0 0.0
    %484 = vmatprep.subr.mxu0 0.0
    %485 = vmatpush2.msra.mxu0 0.0
    %486 = vmatprep.mubr.f32.mxu0 0.0
    %v487 = vand.u32 %v28, 4294901760
    %488 = vmatmul.mubr.f32.gmra.mxu0 %v487
    %v489 = vpop.f32.mrf.mxu0
    %v490 = vadd.f32 %v417, %v489
    %v491 = vpop.f32.mrf.mxu0
    %492 = vdwg.mxu0
    %vm493 = vcmask 64512
    %494 = vst.msk [vmem:[#allocation2] sm:$0xff] %vm493, %v490
    %495 = vrot.lane.b32.xlu0 %v25, 96
    %v496 = vpop.permute.xlu0 %495
    %v497 = vsel %vm26, %v496, 0
    %499 = vmatprep.subr.mxu0 0.0
    %500 = vmatpush1.msra.mxu0 0.0
    %501 = vmatprep.subr.mxu0 0.0
    %502 = vmatpush1.msra.mxu0 0.0
    %503 = vmatprep.subr.mxu0 0.0
    %504 = vmatpush1.msra.mxu0 0.0
    %505 = vmatprep.subr.mxu0 0.0
    %506 = vmatpush1.msra.mxu0 0.0
    %507 = vmatprep.subr.mxu0 0.0
    %508 = vmatpush1.msra.mxu0 0.0
    %509 = vmatprep.subr.mxu0 0.0
    %510 = vmatpush1.msra.mxu0 0.0
    %511 = vmatprep.subr.mxu0 0.0
    %512 = vmatpush1.msra.mxu0 0.0
    %513 = vmatprep.subr.mxu0 0.0
    %514 = vmatpush1.msra.mxu0 0.0
    %515 = vmatprep.subr.mxu0 0.0
    %516 = vmatpush1.msra.mxu0 0.0
    %517 = vmatprep.subr.mxu0 0.0
    %518 = vmatpush1.msra.mxu0 0.0
    %519 = vmatprep.subr.mxu0 0.0
    %520 = vmatpush1.msra.mxu0 0.0
    %521 = vmatprep.subr.mxu0 0.0
    %522 = vmatpush1.msra.mxu0 0.0
    %523 = vmatprep.subr.mxu0 0.0
    %524 = vmatpush1.msra.mxu0 0.0
    %525 = vmatprep.subr.mxu0 0.0
    %526 = vmatpush1.msra.mxu0 0.0
    %527 = vmatprep.subr.mxu0 0.0
    %v528 = vand.u32 %v32, 4294901760
    %529 = vmatpush1.msra.mxu0 %v528
    %530 = vmatprep.subr.mxu0 0.0
    %v531 = vand.u32 %v12, 4294901760
    %532 = vmatpush1.msra.mxu0 %v531
    %533 = vmatprep.subr.mxu0 0.0
    %534 = vmatpush2.msra.mxu0 0.0
    %535 = vmatprep.subr.mxu0 0.0
    %536 = vmatpush2.msra.mxu0 0.0
    %537 = vmatprep.subr.mxu0 0.0
    %538 = vmatpush2.msra.mxu0 0.0
    %539 = vmatprep.subr.mxu0 0.0
    %540 = vmatpush2.msra.mxu0 0.0
    %541 = vmatprep.subr.mxu0 0.0
    %542 = vmatpush2.msra.mxu0 0.0
    %543 = vmatprep.subr.mxu0 0.0
    %544 = vmatpush2.msra.mxu0 0.0
    %545 = vmatprep.subr.mxu0 0.0
    %546 = vmatpush2.msra.mxu0 0.0
    %547 = vmatprep.subr.mxu0 0.0
    %548 = vmatpush2.msra.mxu0 0.0
    %549 = vmatprep.subr.mxu0 0.0
    %550 = vmatpush2.msra.mxu0 0.0
    %551 = vmatprep.subr.mxu0 0.0
    %552 = vmatpush2.msra.mxu0 0.0
    %553 = vmatprep.subr.mxu0 0.0
    %554 = vmatpush2.msra.mxu0 0.0
    %555 = vmatprep.subr.mxu0 0.0
    %556 = vmatpush2.msra.mxu0 0.0
    %557 = vmatprep.subr.mxu0 0.0
    %558 = vmatpush2.msra.mxu0 0.0
    %559 = vmatprep.subr.mxu0 0.0
    %560 = vmatpush2.msra.mxu0 0.0
    %561 = vmatprep.subr.mxu0 0.0
    %562 = vmatpush2.msra.mxu0 0.0
    %563 = vmatprep.subr.mxu0 0.0
    %564 = vmatpush2.msra.mxu0 0.0
    %565 = vmatprep.mubr.f32.mxu0 0.0
    %v566 = vand.u32 %v497, 4294901760
    %v567 = vsub.f32 %v497, %v566
    %v568 = vand.u32 %v567, 4294901760
    %v569 = vsub.f32 %v567, %v568
    %v570 = vand.u32 %v569, 4294901760
    %571 = vmatmul.mubr.f32.gmra.mxu0 %v570
    %v572 = vpop.f32.mrf.mxu0
    %v573 = vadd.f32 0.0, %v572
    %v574 = vpop.f32.mrf.mxu0
    %575 = vdwg.mxu0
    %576 = vmatprep.subr.mxu0 0.0
    %577 = vmatpush1.msra.mxu0 0.0
    %578 = vmatprep.subr.mxu0 0.0
    %579 = vmatpush1.msra.mxu0 0.0
    %580 = vmatprep.subr.mxu0 0.0
    %581 = vmatpush1.msra.mxu0 0.0
    %582 = vmatprep.subr.mxu0 0.0
    %583 = vmatpush1.msra.mxu0 0.0
    %584 = vmatprep.subr.mxu0 0.0
    %585 = vmatpush1.msra.mxu0 0.0
    %586 = vmatprep.subr.mxu0 0.0
    %587 = vmatpush1.msra.mxu0 0.0
    %588 = vmatprep.subr.mxu0 0.0
    %589 = vmatpush1.msra.mxu0 0.0
    %590 = vmatprep.subr.mxu0 0.0
    %591 = vmatpush1.msra.mxu0 0.0
    %592 = vmatprep.subr.mxu0 0.0
    %593 = vmatpush1.msra.mxu0 0.0
    %594 = vmatprep.subr.mxu0 0.0
    %595 = vmatpush1.msra.mxu0 0.0
    %596 = vmatprep.subr.mxu0 0.0
    %597 = vmatpush1.msra.mxu0 0.0
    %598 = vmatprep.subr.mxu0 0.0
    %599 = vmatpush1.msra.mxu0 0.0
    %600 = vmatprep.subr.mxu0 0.0
    %601 = vmatpush1.msra.mxu0 0.0
    %602 = vmatprep.subr.mxu0 0.0
    %603 = vmatpush1.msra.mxu0 0.0
    %604 = vmatprep.subr.mxu0 0.0
    %v605 = vand.u32 %v32, 4294901760
    %v606 = vsub.f32 %v32, %v605
    %v607 = vand.u32 %v606, 4294901760
    %v608 = vsub.f32 %v606, %v607
    %v609 = vand.u32 %v608, 4294901760
    %610 = vmatpush1.msra.mxu0 %v609
    %611 = vmatprep.subr.mxu0 0.0
    %v612 = vand.u32 %v12, 4294901760
    %v613 = vsub.f32 %v12, %v612
    %v614 = vand.u32 %v613, 4294901760
    %v615 = vsub.f32 %v613, %v614
    %v616 = vand.u32 %v615, 4294901760
    %617 = vmatpush1.msra.mxu0 %v616
    %618 = vmatprep.subr.mxu0 0.0
    %619 = vmatpush2.msra.mxu0 0.0
    %620 = vmatprep.subr.mxu0 0.0
    %621 = vmatpush2.msra.mxu0 0.0
    %622 = vmatprep.subr.mxu0 0.0
    %623 = vmatpush2.msra.mxu0 0.0
    %624 = vmatprep.subr.mxu0 0.0
    %625 = vmatpush2.msra.mxu0 0.0
    %626 = vmatprep.subr.mxu0 0.0
    %627 = vmatpush2.msra.mxu0 0.0
    %628 = vmatprep.subr.mxu0 0.0
    %629 = vmatpush2.msra.mxu0 0.0
    %630 = vmatprep.subr.mxu0 0.0
    %631 = vmatpush2.msra.mxu0 0.0
    %632 = vmatprep.subr.mxu0 0.0
    %633 = vmatpush2.msra.mxu0 0.0
    %634 = vmatprep.subr.mxu0 0.0
    %635 = vmatpush2.msra.mxu0 0.0
    %636 = vmatprep.subr.mxu0 0.0
    %637 = vmatpush2.msra.mxu0 0.0
    %638 = vmatprep.subr.mxu0 0.0
    %639 = vmatpush2.msra.mxu0 0.0
    %640 = vmatprep.subr.mxu0 0.0
    %641 = vmatpush2.msra.mxu0 0.0
    %642 = vmatprep.subr.mxu0 0.0
    %643 = vmatpush2.msra.mxu0 0.0
    %644 = vmatprep.subr.mxu0 0.0
    %645 = vmatpush2.msra.mxu0 0.0
    %646 = vmatprep.subr.mxu0 0.0
    %647 = vmatpush2.msra.mxu0 0.0
    %648 = vmatprep.subr.mxu0 0.0
    %649 = vmatpush2.msra.mxu0 0.0
    %650 = vmatprep.mubr.f32.mxu0 0.0
    %v651 = vand.u32 %v497, 4294901760
    %652 = vmatmul.mubr.f32.gmra.mxu0 %v651
    %v653 = vpop.f32.mrf.mxu0
    %v654 = vadd.f32 %v573, %v653
    %v655 = vpop.f32.mrf.mxu0
    %656 = vdwg.mxu0
    %657 = vmatprep.subr.mxu0 0.0
    %658 = vmatpush1.msra.mxu0 0.0
    %659 = vmatprep.subr.mxu0 0.0
    %660 = vmatpush1.msra.mxu0 0.0
    %661 = vmatprep.subr.mxu0 0.0
    %662 = vmatpush1.msra.mxu0 0.0
    %663 = vmatprep.subr.mxu0 0.0
    %664 = vmatpush1.msra.mxu0 0.0
    %665 = vmatprep.subr.mxu0 0.0
    %666 = vmatpush1.msra.mxu0 0.0
    %667 = vmatprep.subr.mxu0 0.0
    %668 = vmatpush1.msra.mxu0 0.0
    %669 = vmatprep.subr.mxu0 0.0
    %670 = vmatpush1.msra.mxu0 0.0
    %671 = vmatprep.subr.mxu0 0.0
    %672 = vmatpush1.msra.mxu0 0.0
    %673 = vmatprep.subr.mxu0 0.0
    %674 = vmatpush1.msra.mxu0 0.0
    %675 = vmatprep.subr.mxu0 0.0
    %676 = vmatpush1.msra.mxu0 0.0
    %677 = vmatprep.subr.mxu0 0.0
    %678 = vmatpush1.msra.mxu0 0.0
    %679 = vmatprep.subr.mxu0 0.0
    %680 = vmatpush1.msra.mxu0 0.0
    %681 = vmatprep.subr.mxu0 0.0
    %682 = vmatpush1.msra.mxu0 0.0
    %683 = vmatprep.subr.mxu0 0.0
    %684 = vmatpush1.msra.mxu0 0.0
    %685 = vmatprep.subr.mxu0 0.0
    %v686 = vand.u32 %v32, 4294901760
    %v687 = vsub.f32 %v32, %v686
    %688 = vmatpush1.msra.mxu0 %v687
    %689 = vmatprep.subr.mxu0 0.0
    %v690 = vand.u32 %v12, 4294901760
    %v691 = vsub.f32 %v12, %v690
    %692 = vmatpush1.msra.mxu0 %v691
    %693 = vmatprep.subr.mxu0 0.0
    %694 = vmatpush2.msra.mxu0 0.0
    %695 = vmatprep.subr.mxu0 0.0
    %696 = vmatpush2.msra.mxu0 0.0
    %697 = vmatprep.subr.mxu0 0.0
    %698 = vmatpush2.msra.mxu0 0.0
    %699 = vmatprep.subr.mxu0 0.0
    %700 = vmatpush2.msra.mxu0 0.0
    %701 = vmatprep.subr.mxu0 0.0
    %702 = vmatpush2.msra.mxu0 0.0
    %703 = vmatprep.subr.mxu0 0.0
    %704 = vmatpush2.msra.mxu0 0.0
    %705 = vmatprep.subr.mxu0 0.0
    %706 = vmatpush2.msra.mxu0 0.0
    %707 = vmatprep.subr.mxu0 0.0
    %708 = vmatpush2.msra.mxu0 0.0
    %709 = vmatprep.subr.mxu0 0.0
    %710 = vmatpush2.msra.mxu0 0.0
    %711 = vmatprep.subr.mxu0 0.0
    %712 = vmatpush2.msra.mxu0 0.0
    %713 = vmatprep.subr.mxu0 0.0
    %714 = vmatpush2.msra.mxu0 0.0
    %715 = vmatprep.subr.mxu0 0.0
    %716 = vmatpush2.msra.mxu0 0.0
    %717 = vmatprep.subr.mxu0 0.0
    %718 = vmatpush2.msra.mxu0 0.0
    %719 = vmatprep.subr.mxu0 0.0
    %720 = vmatpush2.msra.mxu0 0.0
    %721 = vmatprep.subr.mxu0 0.0
    %722 = vmatpush2.msra.mxu0 0.0
    %723 = vmatprep.subr.mxu0 0.0
    %724 = vmatpush2.msra.mxu0 0.0
    %725 = vmatprep.mubr.f32.mxu0 0.0
    %v726 = vand.u32 %v497, 4294901760
    %v727 = vsub.f32 %v497, %v726
    %728 = vmatmul.mubr.f32.gmra.mxu0 %v727
    %v729 = vpop.f32.mrf.mxu0
    %v730 = vadd.f32 %v654, %v729
    %v731 = vpop.f32.mrf.mxu0
    %732 = vdwg.mxu0
    %733 = vmatprep.subr.mxu0 0.0
    %734 = vmatpush1.msra.mxu0 0.0
    %735 = vmatprep.subr.mxu0 0.0
    %736 = vmatpush1.msra.mxu0 0.0
    %737 = vmatprep.subr.mxu0 0.0
    %738 = vmatpush1.msra.mxu0 0.0
    %739 = vmatprep.subr.mxu0 0.0
    %740 = vmatpush1.msra.mxu0 0.0
    %741 = vmatprep.subr.mxu0 0.0
    %742 = vmatpush1.msra.mxu0 0.0
    %743 = vmatprep.subr.mxu0 0.0
    %744 = vmatpush1.msra.mxu0 0.0
    %745 = vmatprep.subr.mxu0 0.0
    %746 = vmatpush1.msra.mxu0 0.0
    %747 = vmatprep.subr.mxu0 0.0
    %748 = vmatpush1.msra.mxu0 0.0
    %749 = vmatprep.subr.mxu0 0.0
    %750 = vmatpush1.msra.mxu0 0.0
    %751 = vmatprep.subr.mxu0 0.0
    %752 = vmatpush1.msra.mxu0 0.0
    %753 = vmatprep.subr.mxu0 0.0
    %754 = vmatpush1.msra.mxu0 0.0
    %755 = vmatprep.subr.mxu0 0.0
    %756 = vmatpush1.msra.mxu0 0.0
    %757 = vmatprep.subr.mxu0 0.0
    %758 = vmatpush1.msra.mxu0 0.0
    %759 = vmatprep.subr.mxu0 0.0
    %760 = vmatpush1.msra.mxu0 0.0
    %761 = vmatprep.subr.mxu0 0.0
    %v762 = vand.u32 %v32, 4294901760
    %763 = vmatpush1.msra.mxu0 %v762
    %764 = vmatprep.subr.mxu0 0.0
    %v765 = vand.u32 %v12, 4294901760
    %766 = vmatpush1.msra.mxu0 %v765
    %767 = vmatprep.subr.mxu0 0.0
    %768 = vmatpush2.msra.mxu0 0.0
    %769 = vmatprep.subr.mxu0 0.0
    %770 = vmatpush2.msra.mxu0 0.0
    %771 = vmatprep.subr.mxu0 0.0
    %772 = vmatpush2.msra.mxu0 0.0
    %773 = vmatprep.subr.mxu0 0.0
    %774 = vmatpush2.msra.mxu0 0.0
    %775 = vmatprep.subr.mxu0 0.0
    %776 = vmatpush2.msra.mxu0 0.0
    %777 = vmatprep.subr.mxu0 0.0
    %778 = vmatpush2.msra.mxu0 0.0
    %779 = vmatprep.subr.mxu0 0.0
    %780 = vmatpush2.msra.mxu0 0.0
    %781 = vmatprep.subr.mxu0 0.0
    %782 = vmatpush2.msra.mxu0 0.0
    %783 = vmatprep.subr.mxu0 0.0
    %784 = vmatpush2.msra.mxu0 0.0
    %785 = vmatprep.subr.mxu0 0.0
    %786 = vmatpush2.msra.mxu0 0.0
    %787 = vmatprep.subr.mxu0 0.0
    %788 = vmatpush2.msra.mxu0 0.0
    %789 = vmatprep.subr.mxu0 0.0
    %790 = vmatpush2.msra.mxu0 0.0
    %791 = vmatprep.subr.mxu0 0.0
    %792 = vmatpush2.msra.mxu0 0.0
    %793 = vmatprep.subr.mxu0 0.0
    %794 = vmatpush2.msra.mxu0 0.0
    %795 = vmatprep.subr.mxu0 0.0
    %796 = vmatpush2.msra.mxu0 0.0
    %797 = vmatprep.subr.mxu0 0.0
    %798 = vmatpush2.msra.mxu0 0.0
    %799 = vmatprep.mubr.f32.mxu0 0.0
    %v800 = vand.u32 %v497, 4294901760
    %v801 = vsub.f32 %v497, %v800
    %v802 = vand.u32 %v801, 4294901760
    %803 = vmatmul.mubr.f32.gmra.mxu0 %v802
    %v804 = vpop.f32.mrf.mxu0
    %v805 = vadd.f32 %v730, %v804
    %v806 = vpop.f32.mrf.mxu0
    %807 = vdwg.mxu0
    %808 = vmatprep.subr.mxu0 0.0
    %809 = vmatpush1.msra.mxu0 0.0
    %810 = vmatprep.subr.mxu0 0.0
    %811 = vmatpush1.msra.mxu0 0.0
    %812 = vmatprep.subr.mxu0 0.0
    %813 = vmatpush1.msra.mxu0 0.0
    %814 = vmatprep.subr.mxu0 0.0
    %815 = vmatpush1.msra.mxu0 0.0
    %816 = vmatprep.subr.mxu0 0.0
    %817 = vmatpush1.msra.mxu0 0.0
    %818 = vmatprep.subr.mxu0 0.0
    %819 = vmatpush1.msra.mxu0 0.0
    %820 = vmatprep.subr.mxu0 0.0
    %821 = vmatpush1.msra.mxu0 0.0
    %822 = vmatprep.subr.mxu0 0.0
    %823 = vmatpush1.msra.mxu0 0.0
    %824 = vmatprep.subr.mxu0 0.0
    %825 = vmatpush1.msra.mxu0 0.0
    %826 = vmatprep.subr.mxu0 0.0
    %827 = vmatpush1.msra.mxu0 0.0
    %828 = vmatprep.subr.mxu0 0.0
    %829 = vmatpush1.msra.mxu0 0.0
    %830 = vmatprep.subr.mxu0 0.0
    %831 = vmatpush1.msra.mxu0 0.0
    %832 = vmatprep.subr.mxu0 0.0
    %833 = vmatpush1.msra.mxu0 0.0
    %834 = vmatprep.subr.mxu0 0.0
    %835 = vmatpush1.msra.mxu0 0.0
    %836 = vmatprep.subr.mxu0 0.0
    %v837 = vand.u32 %v32, 4294901760
    %v838 = vsub.f32 %v32, %v837
    %v839 = vand.u32 %v838, 4294901760
    %840 = vmatpush1.msra.mxu0 %v839
    %841 = vmatprep.subr.mxu0 0.0
    %v842 = vand.u32 %v12, 4294901760
    %v843 = vsub.f32 %v12, %v842
    %v844 = vand.u32 %v843, 4294901760
    %845 = vmatpush1.msra.mxu0 %v844
    %846 = vmatprep.subr.mxu0 0.0
    %847 = vmatpush2.msra.mxu0 0.0
    %848 = vmatprep.subr.mxu0 0.0
    %849 = vmatpush2.msra.mxu0 0.0
    %850 = vmatprep.subr.mxu0 0.0
    %851 = vmatpush2.msra.mxu0 0.0
    %852 = vmatprep.subr.mxu0 0.0
    %853 = vmatpush2.msra.mxu0 0.0
    %854 = vmatprep.subr.mxu0 0.0
    %855 = vmatpush2.msra.mxu0 0.0
    %856 = vmatprep.subr.mxu0 0.0
    %857 = vmatpush2.msra.mxu0 0.0
    %858 = vmatprep.subr.mxu0 0.0
    %859 = vmatpush2.msra.mxu0 0.0
    %860 = vmatprep.subr.mxu0 0.0
    %861 = vmatpush2.msra.mxu0 0.0
    %862 = vmatprep.subr.mxu0 0.0
    %863 = vmatpush2.msra.mxu0 0.0
    %864 = vmatprep.subr.mxu0 0.0
    %865 = vmatpush2.msra.mxu0 0.0
    %866 = vmatprep.subr.mxu0 0.0
    %867 = vmatpush2.msra.mxu0 0.0
    %868 = vmatprep.subr.mxu0 0.0
    %869 = vmatpush2.msra.mxu0 0.0
    %870 = vmatprep.subr.mxu0 0.0
    %871 = vmatpush2.msra.mxu0 0.0
    %872 = vmatprep.subr.mxu0 0.0
    %873 = vmatpush2.msra.mxu0 0.0
    %874 = vmatprep.subr.mxu0 0.0
    %875 = vmatpush2.msra.mxu0 0.0
    %876 = vmatprep.subr.mxu0 0.0
    %877 = vmatpush2.msra.mxu0 0.0
    %878 = vmatprep.mubr.f32.mxu0 0.0
    %v879 = vand.u32 %v497, 4294901760
    %880 = vmatmul.mubr.f32.gmra.mxu0 %v879
    %v881 = vpop.f32.mrf.mxu0
    %v882 = vadd.f32 %v805, %v881
    %v883 = vpop.f32.mrf.mxu0
    %884 = vdwg.mxu0
    %885 = vmatprep.subr.mxu0 0.0
    %886 = vmatpush1.msra.mxu0 0.0
    %887 = vmatprep.subr.mxu0 0.0
    %888 = vmatpush1.msra.mxu0 0.0
    %889 = vmatprep.subr.mxu0 0.0
    %890 = vmatpush1.msra.mxu0 0.0
    %891 = vmatprep.subr.mxu0 0.0
    %892 = vmatpush1.msra.mxu0 0.0
    %893 = vmatprep.subr.mxu0 0.0
    %894 = vmatpush1.msra.mxu0 0.0
    %895 = vmatprep.subr.mxu0 0.0
    %896 = vmatpush1.msra.mxu0 0.0
    %897 = vmatprep.subr.mxu0 0.0
    %898 = vmatpush1.msra.mxu0 0.0
    %899 = vmatprep.subr.mxu0 0.0
    %900 = vmatpush1.msra.mxu0 0.0
    %901 = vmatprep.subr.mxu0 0.0
    %902 = vmatpush1.msra.mxu0 0.0
    %903 = vmatprep.subr.mxu0 0.0
    %904 = vmatpush1.msra.mxu0 0.0
    %905 = vmatprep.subr.mxu0 0.0
    %906 = vmatpush1.msra.mxu0 0.0
    %907 = vmatprep.subr.mxu0 0.0
    %908 = vmatpush1.msra.mxu0 0.0
    %909 = vmatprep.subr.mxu0 0.0
    %910 = vmatpush1.msra.mxu0 0.0
    %911 = vmatprep.subr.mxu0 0.0
    %912 = vmatpush1.msra.mxu0 0.0
    %913 = vmatprep.subr.mxu0 0.0
    %v914 = vand.u32 %v32, 4294901760
    %915 = vmatpush1.msra.mxu0 %v914
    %916 = vmatprep.subr.mxu0 0.0
    %v917 = vand.u32 %v12, 4294901760
    %918 = vmatpush1.msra.mxu0 %v917
    %919 = vmatprep.subr.mxu0 0.0
    %920 = vmatpush2.msra.mxu0 0.0
    %921 = vmatprep.subr.mxu0 0.0
    %922 = vmatpush2.msra.mxu0 0.0
    %923 = vmatprep.subr.mxu0 0.0
    %924 = vmatpush2.msra.mxu0 0.0
    %925 = vmatprep.subr.mxu0 0.0
    %926 = vmatpush2.msra.mxu0 0.0
    %927 = vmatprep.subr.mxu0 0.0
    %928 = vmatpush2.msra.mxu0 0.0
    %929 = vmatprep.subr.mxu0 0.0
    %930 = vmatpush2.msra.mxu0 0.0
    %931 = vmatprep.subr.mxu0 0.0
    %932 = vmatpush2.msra.mxu0 0.0
    %933 = vmatprep.subr.mxu0 0.0
    %934 = vmatpush2.msra.mxu0 0.0
    %935 = vmatprep.subr.mxu0 0.0
    %936 = vmatpush2.msra.mxu0 0.0
    %937 = vmatprep.subr.mxu0 0.0
    %938 = vmatpush2.msra.mxu0 0.0
    %939 = vmatprep.subr.mxu0 0.0
    %940 = vmatpush2.msra.mxu0 0.0
    %941 = vmatprep.subr.mxu0 0.0
    %942 = vmatpush2.msra.mxu0 0.0
    %943 = vmatprep.subr.mxu0 0.0
    %944 = vmatpush2.msra.mxu0 0.0
    %945 = vmatprep.subr.mxu0 0.0
    %946 = vmatpush2.msra.mxu0 0.0
    %947 = vmatprep.subr.mxu0 0.0
    %948 = vmatpush2.msra.mxu0 0.0
    %949 = vmatprep.subr.mxu0 0.0
    %950 = vmatpush2.msra.mxu0 0.0
    %951 = vmatprep.mubr.f32.mxu0 0.0
    %v952 = vand.u32 %v497, 4294901760
    %953 = vmatmul.mubr.f32.gmra.mxu0 %v952
    %v954 = vpop.f32.mrf.mxu0
    %v955 = vadd.f32 %v882, %v954
    %v956 = vpop.f32.mrf.mxu0
    %957 = vdwg.mxu0
    %959 = vrot.lane.b32.xlu0 %v955, 8
    %v960 = vpop.permute.xlu0 %959
    %vm962 = vcmask 130112
    %963 = vst.msk [vmem:[#allocation2] sm:$0xff] %vm962, %v960
    %964 = vrot.lane.b32.xlu0 %v25, 64
    %v965 = vpop.permute.xlu0 %964
    %v966 = vsel %vm26, %v965, 0
    %968 = vmatprep.subr.mxu0 0.0
    %969 = vmatpush1.msra.mxu0 0.0
    %970 = vmatprep.subr.mxu0 0.0
    %971 = vmatpush1.msra.mxu0 0.0
    %972 = vmatprep.subr.mxu0 0.0
    %973 = vmatpush1.msra.mxu0 0.0
    %974 = vmatprep.subr.mxu0 0.0
    %975 = vmatpush1.msra.mxu0 0.0
    %976 = vmatprep.subr.mxu0 0.0
    %977 = vmatpush1.msra.mxu0 0.0
    %978 = vmatprep.subr.mxu0 0.0
    %979 = vmatpush1.msra.mxu0 0.0
    %980 = vmatprep.subr.mxu0 0.0
    %981 = vmatpush1.msra.mxu0 0.0
    %982 = vmatprep.subr.mxu0 0.0
    %983 = vmatpush1.msra.mxu0 0.0
    %984 = vmatprep.subr.mxu0 0.0
    %985 = vmatpush1.msra.mxu0 0.0
    %986 = vmatprep.subr.mxu0 0.0
    %987 = vmatpush1.msra.mxu0 0.0
    %988 = vmatprep.subr.mxu0 0.0
    %989 = vmatpush1.msra.mxu0 0.0
    %990 = vmatprep.subr.mxu0 0.0
    %991 = vmatpush1.msra.mxu0 0.0
    %992 = vmatprep.subr.mxu0 0.0
    %993 = vmatpush1.msra.mxu0 0.0
    %994 = vmatprep.subr.mxu0 0.0
    %995 = vmatpush1.msra.mxu0 0.0
    %996 = vmatprep.subr.mxu0 0.0
    %v997 = vand.u32 %v32, 4294901760
    %998 = vmatpush1.msra.mxu0 %v997
    %999 = vmatprep.subr.mxu0 0.0
    %v1000 = vand.u32 %v12, 4294901760
    %1001 = vmatpush1.msra.mxu0 %v1000
    %1002 = vmatprep.subr.mxu0 0.0
    %1003 = vmatpush2.msra.mxu0 0.0
    %1004 = vmatprep.subr.mxu0 0.0
    %1005 = vmatpush2.msra.mxu0 0.0
    %1006 = vmatprep.subr.mxu0 0.0
    %1007 = vmatpush2.msra.mxu0 0.0
    %1008 = vmatprep.subr.mxu0 0.0
    %1009 = vmatpush2.msra.mxu0 0.0
    %1010 = vmatprep.subr.mxu0 0.0
    %1011 = vmatpush2.msra.mxu0 0.0
    %1012 = vmatprep.subr.mxu0 0.0
    %1013 = vmatpush2.msra.mxu0 0.0
    %1014 = vmatprep.subr.mxu0 0.0
    %1015 = vmatpush2.msra.mxu0 0.0
    %1016 = vmatprep.subr.mxu0 0.0
    %1017 = vmatpush2.msra.mxu0 0.0
    %1018 = vmatprep.subr.mxu0 0.0
    %1019 = vmatpush2.msra.mxu0 0.0
    %1020 = vmatprep.subr.mxu0 0.0
    %1021 = vmatpush2.msra.mxu0 0.0
    %1022 = vmatprep.subr.mxu0 0.0
    %1023 = vmatpush2.msra.mxu0 0.0
    %1024 = vmatprep.subr.mxu0 0.0
    %1025 = vmatpush2.msra.mxu0 0.0
    %1026 = vmatprep.subr.mxu0 0.0
    %1027 = vmatpush2.msra.mxu0 0.0
    %1028 = vmatprep.subr.mxu0 0.0
    %1029 = vmatpush2.msra.mxu0 0.0
    %1030 = vmatprep.subr.mxu0 0.0
    %1031 = vmatpush2.msra.mxu0 0.0
    %1032 = vmatprep.subr.mxu0 0.0
    %1033 = vmatpush2.msra.mxu0 0.0
    %1034 = vmatprep.mubr.f32.mxu0 0.0
    %v1035 = vand.u32 %v966, 4294901760
    %v1036 = vsub.f32 %v966, %v1035
    %v1037 = vand.u32 %v1036, 4294901760
    %v1038 = vsub.f32 %v1036, %v1037
    %v1039 = vand.u32 %v1038, 4294901760
    %1040 = vmatmul.mubr.f32.gmra.mxu0 %v1039
    %v1041 = vpop.f32.mrf.mxu0
    %v1042 = vadd.f32 0.0, %v1041
    %v1043 = vpop.f32.mrf.mxu0
    %1044 = vdwg.mxu0
    %1045 = vmatprep.subr.mxu0 0.0
    %1046 = vmatpush1.msra.mxu0 0.0
    %1047 = vmatprep.subr.mxu0 0.0
    %1048 = vmatpush1.msra.mxu0 0.0
    %1049 = vmatprep.subr.mxu0 0.0
    %1050 = vmatpush1.msra.mxu0 0.0
    %1051 = vmatprep.subr.mxu0 0.0
    %1052 = vmatpush1.msra.mxu0 0.0
    %1053 = vmatprep.subr.mxu0 0.0
    %1054 = vmatpush1.msra.mxu0 0.0
    %1055 = vmatprep.subr.mxu0 0.0
    %1056 = vmatpush1.msra.mxu0 0.0
    %1057 = vmatprep.subr.mxu0 0.0
    %1058 = vmatpush1.msra.mxu0 0.0
    %1059 = vmatprep.subr.mxu0 0.0
    %1060 = vmatpush1.msra.mxu0 0.0
    %1061 = vmatprep.subr.mxu0 0.0
    %1062 = vmatpush1.msra.mxu0 0.0
    %1063 = vmatprep.subr.mxu0 0.0
    %1064 = vmatpush1.msra.mxu0 0.0
    %1065 = vmatprep.subr.mxu0 0.0
    %1066 = vmatpush1.msra.mxu0 0.0
    %1067 = vmatprep.subr.mxu0 0.0
    %1068 = vmatpush1.msra.mxu0 0.0
    %1069 = vmatprep.subr.mxu0 0.0
    %1070 = vmatpush1.msra.mxu0 0.0
    %1071 = vmatprep.subr.mxu0 0.0
    %1072 = vmatpush1.msra.mxu0 0.0
    %1073 = vmatprep.subr.mxu0 0.0
    %v1074 = vand.u32 %v32, 4294901760
    %v1075 = vsub.f32 %v32, %v1074
    %v1076 = vand.u32 %v1075, 4294901760
    %v1077 = vsub.f32 %v1075, %v1076
    %v1078 = vand.u32 %v1077, 4294901760
    %1079 = vmatpush1.msra.mxu0 %v1078
    %1080 = vmatprep.subr.mxu0 0.0
    %v1081 = vand.u32 %v12, 4294901760
    %v1082 = vsub.f32 %v12, %v1081
    %v1083 = vand.u32 %v1082, 4294901760
    %v1084 = vsub.f32 %v1082, %v1083
    %v1085 = vand.u32 %v1084, 4294901760
    %1086 = vmatpush1.msra.mxu0 %v1085
    %1087 = vmatprep.subr.mxu0 0.0
    %1088 = vmatpush2.msra.mxu0 0.0
    %1089 = vmatprep.subr.mxu0 0.0
    %1090 = vmatpush2.msra.mxu0 0.0
    %1091 = vmatprep.subr.mxu0 0.0
    %1092 = vmatpush2.msra.mxu0 0.0
    %1093 = vmatprep.subr.mxu0 0.0
    %1094 = vmatpush2.msra.mxu0 0.0
    %1095 = vmatprep.subr.mxu0 0.0
    %1096 = vmatpush2.msra.mxu0 0.0
    %1097 = vmatprep.subr.mxu0 0.0
    %1098 = vmatpush2.msra.mxu0 0.0
    %1099 = vmatprep.subr.mxu0 0.0
    %1100 = vmatpush2.msra.mxu0 0.0
    %1101 = vmatprep.subr.mxu0 0.0
    %1102 = vmatpush2.msra.mxu0 0.0
    %1103 = vmatprep.subr.mxu0 0.0
    %1104 = vmatpush2.msra.mxu0 0.0
    %1105 = vmatprep.subr.mxu0 0.0
    %1106 = vmatpush2.msra.mxu0 0.0
    %1107 = vmatprep.subr.mxu0 0.0
    %1108 = vmatpush2.msra.mxu0 0.0
    %1109 = vmatprep.subr.mxu0 0.0
    %1110 = vmatpush2.msra.mxu0 0.0
    %1111 = vmatprep.subr.mxu0 0.0
    %1112 = vmatpush2.msra.mxu0 0.0
    %1113 = vmatprep.subr.mxu0 0.0
    %1114 = vmatpush2.msra.mxu0 0.0
    %1115 = vmatprep.subr.mxu0 0.0
    %1116 = vmatpush2.msra.mxu0 0.0
    %1117 = vmatprep.subr.mxu0 0.0
    %1118 = vmatpush2.msra.mxu0 0.0
    %1119 = vmatprep.mubr.f32.mxu0 0.0
    %v1120 = vand.u32 %v966, 4294901760
    %1121 = vmatmul.mubr.f32.gmra.mxu0 %v1120
    %v1122 = vpop.f32.mrf.mxu0
    %v1123 = vadd.f32 %v1042, %v1122
    %v1124 = vpop.f32.mrf.mxu0
    %1125 = vdwg.mxu0
    %1126 = vmatprep.subr.mxu0 0.0
    %1127 = vmatpush1.msra.mxu0 0.0
    %1128 = vmatprep.subr.mxu0 0.0
    %1129 = vmatpush1.msra.mxu0 0.0
    %1130 = vmatprep.subr.mxu0 0.0
    %1131 = vmatpush1.msra.mxu0 0.0
    %1132 = vmatprep.subr.mxu0 0.0
    %1133 = vmatpush1.msra.mxu0 0.0
    %1134 = vmatprep.subr.mxu0 0.0
    %1135 = vmatpush1.msra.mxu0 0.0
    %1136 = vmatprep.subr.mxu0 0.0
    %1137 = vmatpush1.msra.mxu0 0.0
    %1138 = vmatprep.subr.mxu0 0.0
    %1139 = vmatpush1.msra.mxu0 0.0
    %1140 = vmatprep.subr.mxu0 0.0
    %1141 = vmatpush1.msra.mxu0 0.0
    %1142 = vmatprep.subr.mxu0 0.0
    %1143 = vmatpush1.msra.mxu0 0.0
    %1144 = vmatprep.subr.mxu0 0.0
    %1145 = vmatpush1.msra.mxu0 0.0
    %1146 = vmatprep.subr.mxu0 0.0
    %1147 = vmatpush1.msra.mxu0 0.0
    %1148 = vmatprep.subr.mxu0 0.0
    %1149 = vmatpush1.msra.mxu0 0.0
    %1150 = vmatprep.subr.mxu0 0.0
    %1151 = vmatpush1.msra.mxu0 0.0
    %1152 = vmatprep.subr.mxu0 0.0
    %1153 = vmatpush1.msra.mxu0 0.0
    %1154 = vmatprep.subr.mxu0 0.0
    %v1155 = vand.u32 %v32, 4294901760
    %v1156 = vsub.f32 %v32, %v1155
    %1157 = vmatpush1.msra.mxu0 %v1156
    %1158 = vmatprep.subr.mxu0 0.0
    %v1159 = vand.u32 %v12, 4294901760
    %v1160 = vsub.f32 %v12, %v1159
    %1161 = vmatpush1.msra.mxu0 %v1160
    %1162 = vmatprep.subr.mxu0 0.0
    %1163 = vmatpush2.msra.mxu0 0.0
    %1164 = vmatprep.subr.mxu0 0.0
    %1165 = vmatpush2.msra.mxu0 0.0
    %1166 = vmatprep.subr.mxu0 0.0
    %1167 = vmatpush2.msra.mxu0 0.0
    %1168 = vmatprep.subr.mxu0 0.0
    %1169 = vmatpush2.msra.mxu0 0.0
    %1170 = vmatprep.subr.mxu0 0.0
    %1171 = vmatpush2.msra.mxu0 0.0
    %1172 = vmatprep.subr.mxu0 0.0
    %1173 = vmatpush2.msra.mxu0 0.0
    %1174 = vmatprep.subr.mxu0 0.0
    %1175 = vmatpush2.msra.mxu0 0.0
    %1176 = vmatprep.subr.mxu0 0.0
    %1177 = vmatpush2.msra.mxu0 0.0
    %1178 = vmatprep.subr.mxu0 0.0
    %1179 = vmatpush2.msra.mxu0 0.0
    %1180 = vmatprep.subr.mxu0 0.0
    %1181 = vmatpush2.msra.mxu0 0.0
    %1182 = vmatprep.subr.mxu0 0.0
    %1183 = vmatpush2.msra.mxu0 0.0
    %1184 = vmatprep.subr.mxu0 0.0
    %1185 = vmatpush2.msra.mxu0 0.0
    %1186 = vmatprep.subr.mxu0 0.0
    %1187 = vmatpush2.msra.mxu0 0.0
    %1188 = vmatprep.subr.mxu0 0.0
    %1189 = vmatpush2.msra.mxu0 0.0
    %1190 = vmatprep.subr.mxu0 0.0
    %1191 = vmatpush2.msra.mxu0 0.0
    %1192 = vmatprep.subr.mxu0 0.0
    %1193 = vmatpush2.msra.mxu0 0.0
    %1194 = vmatprep.mubr.f32.mxu0 0.0
    %v1195 = vand.u32 %v966, 4294901760
    %v1196 = vsub.f32 %v966, %v1195
    %1197 = vmatmul.mubr.f32.gmra.mxu0 %v1196
    %v1198 = vpop.f32.mrf.mxu0
    %v1199 = vadd.f32 %v1123, %v1198
    %v1200 = vpop.f32.mrf.mxu0
    %1201 = vdwg.mxu0
    %1202 = vmatprep.subr.mxu0 0.0
    %1203 = vmatpush1.msra.mxu0 0.0
    %1204 = vmatprep.subr.mxu0 0.0
    %1205 = vmatpush1.msra.mxu0 0.0
    %1206 = vmatprep.subr.mxu0 0.0
    %1207 = vmatpush1.msra.mxu0 0.0
    %1208 = vmatprep.subr.mxu0 0.0
    %1209 = vmatpush1.msra.mxu0 0.0
    %1210 = vmatprep.subr.mxu0 0.0
    %1211 = vmatpush1.msra.mxu0 0.0
    %1212 = vmatprep.subr.mxu0 0.0
    %1213 = vmatpush1.msra.mxu0 0.0
    %1214 = vmatprep.subr.mxu0 0.0
    %1215 = vmatpush1.msra.mxu0 0.0
    %1216 = vmatprep.subr.mxu0 0.0
    %1217 = vmatpush1.msra.mxu0 0.0
    %1218 = vmatprep.subr.mxu0 0.0
    %1219 = vmatpush1.msra.mxu0 0.0
    %1220 = vmatprep.subr.mxu0 0.0
    %1221 = vmatpush1.msra.mxu0 0.0
    %1222 = vmatprep.subr.mxu0 0.0
    %1223 = vmatpush1.msra.mxu0 0.0
    %1224 = vmatprep.subr.mxu0 0.0
    %1225 = vmatpush1.msra.mxu0 0.0
    %1226 = vmatprep.subr.mxu0 0.0
    %1227 = vmatpush1.msra.mxu0 0.0
    %1228 = vmatprep.subr.mxu0 0.0
    %1229 = vmatpush1.msra.mxu0 0.0
    %1230 = vmatprep.subr.mxu0 0.0
    %v1231 = vand.u32 %v32, 4294901760
    %1232 = vmatpush1.msra.mxu0 %v1231
    %1233 = vmatprep.subr.mxu0 0.0
    %v1234 = vand.u32 %v12, 4294901760
    %1235 = vmatpush1.msra.mxu0 %v1234
    %1236 = vmatprep.subr.mxu0 0.0
    %1237 = vmatpush2.msra.mxu0 0.0
    %1238 = vmatprep.subr.mxu0 0.0
    %1239 = vmatpush2.msra.mxu0 0.0
    %1240 = vmatprep.subr.mxu0 0.0
    %1241 = vmatpush2.msra.mxu0 0.0
    %1242 = vmatprep.subr.mxu0 0.0
    %1243 = vmatpush2.msra.mxu0 0.0
    %1244 = vmatprep.subr.mxu0 0.0
    %1245 = vmatpush2.msra.mxu0 0.0
    %1246 = vmatprep.subr.mxu0 0.0
    %1247 = vmatpush2.msra.mxu0 0.0
    %1248 = vmatprep.subr.mxu0 0.0
    %1249 = vmatpush2.msra.mxu0 0.0
    %1250 = vmatprep.subr.mxu0 0.0
    %1251 = vmatpush2.msra.mxu0 0.0
    %1252 = vmatprep.subr.mxu0 0.0
    %1253 = vmatpush2.msra.mxu0 0.0
    %1254 = vmatprep.subr.mxu0 0.0
    %1255 = vmatpush2.msra.mxu0 0.0
    %1256 = vmatprep.subr.mxu0 0.0
    %1257 = vmatpush2.msra.mxu0 0.0
    %1258 = vmatprep.subr.mxu0 0.0
    %1259 = vmatpush2.msra.mxu0 0.0
    %1260 = vmatprep.subr.mxu0 0.0
    %1261 = vmatpush2.msra.mxu0 0.0
    %1262 = vmatprep.subr.mxu0 0.0
    %1263 = vmatpush2.msra.mxu0 0.0
    %1264 = vmatprep.subr.mxu0 0.0
    %1265 = vmatpush2.msra.mxu0 0.0
    %1266 = vmatprep.subr.mxu0 0.0
    %1267 = vmatpush2.msra.mxu0 0.0
    %1268 = vmatprep.mubr.f32.mxu0 0.0
    %v1269 = vand.u32 %v966, 4294901760
    %v1270 = vsub.f32 %v966, %v1269
    %v1271 = vand.u32 %v1270, 4294901760
    %1272 = vmatmul.mubr.f32.gmra.mxu0 %v1271
    %v1273 = vpop.f32.mrf.mxu0
    %v1274 = vadd.f32 %v1199, %v1273
    %v1275 = vpop.f32.mrf.mxu0
    %1276 = vdwg.mxu0
    %1277 = vmatprep.subr.mxu0 0.0
    %1278 = vmatpush1.msra.mxu0 0.0
    %1279 = vmatprep.subr.mxu0 0.0
    %1280 = vmatpush1.msra.mxu0 0.0
    %1281 = vmatprep.subr.mxu0 0.0
    %1282 = vmatpush1.msra.mxu0 0.0
    %1283 = vmatprep.subr.mxu0 0.0
    %1284 = vmatpush1.msra.mxu0 0.0
    %1285 = vmatprep.subr.mxu0 0.0
    %1286 = vmatpush1.msra.mxu0 0.0
    %1287 = vmatprep.subr.mxu0 0.0
    %1288 = vmatpush1.msra.mxu0 0.0
    %1289 = vmatprep.subr.mxu0 0.0
    %1290 = vmatpush1.msra.mxu0 0.0
    %1291 = vmatprep.subr.mxu0 0.0
    %1292 = vmatpush1.msra.mxu0 0.0
    %1293 = vmatprep.subr.mxu0 0.0
    %1294 = vmatpush1.msra.mxu0 0.0
    %1295 = vmatprep.subr.mxu0 0.0
    %1296 = vmatpush1.msra.mxu0 0.0
    %1297 = vmatprep.subr.mxu0 0.0
    %1298 = vmatpush1.msra.mxu0 0.0
    %1299 = vmatprep.subr.mxu0 0.0
    %1300 = vmatpush1.msra.mxu0 0.0
    %1301 = vmatprep.subr.mxu0 0.0
    %1302 = vmatpush1.msra.mxu0 0.0
    %1303 = vmatprep.subr.mxu0 0.0
    %1304 = vmatpush1.msra.mxu0 0.0
    %1305 = vmatprep.subr.mxu0 0.0
    %v1306 = vand.u32 %v32, 4294901760
    %v1307 = vsub.f32 %v32, %v1306
    %v1308 = vand.u32 %v1307, 4294901760
    %1309 = vmatpush1.msra.mxu0 %v1308
    %1310 = vmatprep.subr.mxu0 0.0
    %v1311 = vand.u32 %v12, 4294901760
    %v1312 = vsub.f32 %v12, %v1311
    %v1313 = vand.u32 %v1312, 4294901760
    %1314 = vmatpush1.msra.mxu0 %v1313
    %1315 = vmatprep.subr.mxu0 0.0
    %1316 = vmatpush2.msra.mxu0 0.0
    %1317 = vmatprep.subr.mxu0 0.0
    %1318 = vmatpush2.msra.mxu0 0.0
    %1319 = vmatprep.subr.mxu0 0.0
    %1320 = vmatpush2.msra.mxu0 0.0
    %1321 = vmatprep.subr.mxu0 0.0
    %1322 = vmatpush2.msra.mxu0 0.0
    %1323 = vmatprep.subr.mxu0 0.0
    %1324 = vmatpush2.msra.mxu0 0.0
    %1325 = vmatprep.subr.mxu0 0.0
    %1326 = vmatpush2.msra.mxu0 0.0
    %1327 = vmatprep.subr.mxu0 0.0
    %1328 = vmatpush2.msra.mxu0 0.0
    %1329 = vmatprep.subr.mxu0 0.0
    %1330 = vmatpush2.msra.mxu0 0.0
    %1331 = vmatprep.subr.mxu0 0.0
    %1332 = vmatpush2.msra.mxu0 0.0
    %1333 = vmatprep.subr.mxu0 0.0
    %1334 = vmatpush2.msra.mxu0 0.0
    %1335 = vmatprep.subr.mxu0 0.0
    %1336 = vmatpush2.msra.mxu0 0.0
    %1337 = vmatprep.subr.mxu0 0.0
    %1338 = vmatpush2.msra.mxu0 0.0
    %1339 = vmatprep.subr.mxu0 0.0
    %1340 = vmatpush2.msra.mxu0 0.0
    %1341 = vmatprep.subr.mxu0 0.0
    %1342 = vmatpush2.msra.mxu0 0.0
    %1343 = vmatprep.subr.mxu0 0.0
    %1344 = vmatpush2.msra.mxu0 0.0
    %1345 = vmatprep.subr.mxu0 0.0
    %1346 = vmatpush2.msra.mxu0 0.0
    %1347 = vmatprep.mubr.f32.mxu0 0.0
    %v1348 = vand.u32 %v966, 4294901760
    %1349 = vmatmul.mubr.f32.gmra.mxu0 %v1348
    %v1350 = vpop.f32.mrf.mxu0
    %v1351 = vadd.f32 %v1274, %v1350
    %v1352 = vpop.f32.mrf.mxu0
    %1353 = vdwg.mxu0
    %1354 = vmatprep.subr.mxu0 0.0
    %1355 = vmatpush1.msra.mxu0 0.0
    %1356 = vmatprep.subr.mxu0 0.0
    %1357 = vmatpush1.msra.mxu0 0.0
    %1358 = vmatprep.subr.mxu0 0.0
    %1359 = vmatpush1.msra.mxu0 0.0
    %1360 = vmatprep.subr.mxu0 0.0
    %1361 = vmatpush1.msra.mxu0 0.0
    %1362 = vmatprep.subr.mxu0 0.0
    %1363 = vmatpush1.msra.mxu0 0.0
    %1364 = vmatprep.subr.mxu0 0.0
    %1365 = vmatpush1.msra.mxu0 0.0
    %1366 = vmatprep.subr.mxu0 0.0
    %1367 = vmatpush1.msra.mxu0 0.0
    %1368 = vmatprep.subr.mxu0 0.0
    %1369 = vmatpush1.msra.mxu0 0.0
    %1370 = vmatprep.subr.mxu0 0.0
    %1371 = vmatpush1.msra.mxu0 0.0
    %1372 = vmatprep.subr.mxu0 0.0
    %1373 = vmatpush1.msra.mxu0 0.0
    %1374 = vmatprep.subr.mxu0 0.0
    %1375 = vmatpush1.msra.mxu0 0.0
    %1376 = vmatprep.subr.mxu0 0.0
    %1377 = vmatpush1.msra.mxu0 0.0
    %1378 = vmatprep.subr.mxu0 0.0
    %1379 = vmatpush1.msra.mxu0 0.0
    %1380 = vmatprep.subr.mxu0 0.0
    %1381 = vmatpush1.msra.mxu0 0.0
    %1382 = vmatprep.subr.mxu0 0.0
    %v1383 = vand.u32 %v32, 4294901760
    %1384 = vmatpush1.msra.mxu0 %v1383
    %1385 = vmatprep.subr.mxu0 0.0
    %v1386 = vand.u32 %v12, 4294901760
    %1387 = vmatpush1.msra.mxu0 %v1386
    %1388 = vmatprep.subr.mxu0 0.0
    %1389 = vmatpush2.msra.mxu0 0.0
    %1390 = vmatprep.subr.mxu0 0.0
    %1391 = vmatpush2.msra.mxu0 0.0
    %1392 = vmatprep.subr.mxu0 0.0
    %1393 = vmatpush2.msra.mxu0 0.0
    %1394 = vmatprep.subr.mxu0 0.0
    %1395 = vmatpush2.msra.mxu0 0.0
    %1396 = vmatprep.subr.mxu0 0.0
    %1397 = vmatpush2.msra.mxu0 0.0
    %1398 = vmatprep.subr.mxu0 0.0
    %1399 = vmatpush2.msra.mxu0 0.0
    %1400 = vmatprep.subr.mxu0 0.0
    %1401 = vmatpush2.msra.mxu0 0.0
    %1402 = vmatprep.subr.mxu0 0.0
    %1403 = vmatpush2.msra.mxu0 0.0
    %1404 = vmatprep.subr.mxu0 0.0
    %1405 = vmatpush2.msra.mxu0 0.0
    %1406 = vmatprep.subr.mxu0 0.0
    %1407 = vmatpush2.msra.mxu0 0.0
    %1408 = vmatprep.subr.mxu0 0.0
    %1409 = vmatpush2.msra.mxu0 0.0
    %1410 = vmatprep.subr.mxu0 0.0
    %1411 = vmatpush2.msra.mxu0 0.0
    %1412 = vmatprep.subr.mxu0 0.0
    %1413 = vmatpush2.msra.mxu0 0.0
    %1414 = vmatprep.subr.mxu0 0.0
    %1415 = vmatpush2.msra.mxu0 0.0
    %1416 = vmatprep.subr.mxu0 0.0
    %1417 = vmatpush2.msra.mxu0 0.0
    %1418 = vmatprep.subr.mxu0 0.0
    %1419 = vmatpush2.msra.mxu0 0.0
    %1420 = vmatprep.mubr.f32.mxu0 0.0
    %v1421 = vand.u32 %v966, 4294901760
    %1422 = vmatmul.mubr.f32.gmra.mxu0 %v1421
    %v1423 = vpop.f32.mrf.mxu0
    %v1424 = vadd.f32 %v1351, %v1423
    %v1425 = vpop.f32.mrf.mxu0
    %1426 = vdwg.mxu0
    %1428 = vrot.lane.b32.xlu0 %v1424, 16
    %v1429 = vpop.permute.xlu0 %1428
    %vm1431 = vcmask 195712
    %1432 = vst.msk [vmem:[#allocation2] sm:$0xff] %vm1431, %v1429
    %1433 = vrot.lane.b32.xlu0 %v25, 32
    %v1434 = vpop.permute.xlu0 %1433
    %v1435 = vsel %vm26, %v1434, 0
    %1437 = vmatprep.subr.mxu0 0.0
    %1438 = vmatpush1.msra.mxu0 0.0
    %1439 = vmatprep.subr.mxu0 0.0
    %1440 = vmatpush1.msra.mxu0 0.0
    %1441 = vmatprep.subr.mxu0 0.0
    %1442 = vmatpush1.msra.mxu0 0.0
    %1443 = vmatprep.subr.mxu0 0.0
    %1444 = vmatpush1.msra.mxu0 0.0
    %1445 = vmatprep.subr.mxu0 0.0
    %1446 = vmatpush1.msra.mxu0 0.0
    %1447 = vmatprep.subr.mxu0 0.0
    %1448 = vmatpush1.msra.mxu0 0.0
    %1449 = vmatprep.subr.mxu0 0.0
    %1450 = vmatpush1.msra.mxu0 0.0
    %1451 = vmatprep.subr.mxu0 0.0
    %1452 = vmatpush1.msra.mxu0 0.0
    %1453 = vmatprep.subr.mxu0 0.0
    %1454 = vmatpush1.msra.mxu0 0.0
    %1455 = vmatprep.subr.mxu0 0.0
    %1456 = vmatpush1.msra.mxu0 0.0
    %1457 = vmatprep.subr.mxu0 0.0
    %1458 = vmatpush1.msra.mxu0 0.0
    %1459 = vmatprep.subr.mxu0 0.0
    %1460 = vmatpush1.msra.mxu0 0.0
    %1461 = vmatprep.subr.mxu0 0.0
    %1462 = vmatpush1.msra.mxu0 0.0
    %1463 = vmatprep.subr.mxu0 0.0
    %1464 = vmatpush1.msra.mxu0 0.0
    %1465 = vmatprep.subr.mxu0 0.0
    %v1466 = vand.u32 %v32, 4294901760
    %1467 = vmatpush1.msra.mxu0 %v1466
    %1468 = vmatprep.subr.mxu0 0.0
    %v1469 = vand.u32 %v12, 4294901760
    %1470 = vmatpush1.msra.mxu0 %v1469
    %1471 = vmatprep.subr.mxu0 0.0
    %1472 = vmatpush2.msra.mxu0 0.0
    %1473 = vmatprep.subr.mxu0 0.0
    %1474 = vmatpush2.msra.mxu0 0.0
    %1475 = vmatprep.subr.mxu0 0.0
    %1476 = vmatpush2.msra.mxu0 0.0
    %1477 = vmatprep.subr.mxu0 0.0
    %1478 = vmatpush2.msra.mxu0 0.0
    %1479 = vmatprep.subr.mxu0 0.0
    %1480 = vmatpush2.msra.mxu0 0.0
    %1481 = vmatprep.subr.mxu0 0.0
    %1482 = vmatpush2.msra.mxu0 0.0
    %1483 = vmatprep.subr.mxu0 0.0
    %1484 = vmatpush2.msra.mxu0 0.0
    %1485 = vmatprep.subr.mxu0 0.0
    %1486 = vmatpush2.msra.mxu0 0.0
    %1487 = vmatprep.subr.mxu0 0.0
    %1488 = vmatpush2.msra.mxu0 0.0
    %1489 = vmatprep.subr.mxu0 0.0
    %1490 = vmatpush2.msra.mxu0 0.0
    %1491 = vmatprep.subr.mxu0 0.0
    %1492 = vmatpush2.msra.mxu0 0.0
    %1493 = vmatprep.subr.mxu0 0.0
    %1494 = vmatpush2.msra.mxu0 0.0
    %1495 = vmatprep.subr.mxu0 0.0
    %1496 = vmatpush2.msra.mxu0 0.0
    %1497 = vmatprep.subr.mxu0 0.0
    %1498 = vmatpush2.msra.mxu0 0.0
    %1499 = vmatprep.subr.mxu0 0.0
    %1500 = vmatpush2.msra.mxu0 0.0
    %1501 = vmatprep.subr.mxu0 0.0
    %1502 = vmatpush2.msra.mxu0 0.0
    %1503 = vmatprep.mubr.f32.mxu0 0.0
    %v1504 = vand.u32 %v1435, 4294901760
    %v1505 = vsub.f32 %v1435, %v1504
    %v1506 = vand.u32 %v1505, 4294901760
    %v1507 = vsub.f32 %v1505, %v1506
    %v1508 = vand.u32 %v1507, 4294901760
    %1509 = vmatmul.mubr.f32.gmra.mxu0 %v1508
    %v1510 = vpop.f32.mrf.mxu0
    %v1511 = vadd.f32 0.0, %v1510
    %v1512 = vpop.f32.mrf.mxu0
    %1513 = vdwg.mxu0
    %1514 = vmatprep.subr.mxu0 0.0
    %1515 = vmatpush1.msra.mxu0 0.0
    %1516 = vmatprep.subr.mxu0 0.0
    %1517 = vmatpush1.msra.mxu0 0.0
    %1518 = vmatprep.subr.mxu0 0.0
    %1519 = vmatpush1.msra.mxu0 0.0
    %1520 = vmatprep.subr.mxu0 0.0
    %1521 = vmatpush1.msra.mxu0 0.0
    %1522 = vmatprep.subr.mxu0 0.0
    %1523 = vmatpush1.msra.mxu0 0.0
    %1524 = vmatprep.subr.mxu0 0.0
    %1525 = vmatpush1.msra.mxu0 0.0
    %1526 = vmatprep.subr.mxu0 0.0
    %1527 = vmatpush1.msra.mxu0 0.0
    %1528 = vmatprep.subr.mxu0 0.0
    %1529 = vmatpush1.msra.mxu0 0.0
    %1530 = vmatprep.subr.mxu0 0.0
    %1531 = vmatpush1.msra.mxu0 0.0
    %1532 = vmatprep.subr.mxu0 0.0
    %1533 = vmatpush1.msra.mxu0 0.0
    %1534 = vmatprep.subr.mxu0 0.0
    %1535 = vmatpush1.msra.mxu0 0.0
    %1536 = vmatprep.subr.mxu0 0.0
    %1537 = vmatpush1.msra.mxu0 0.0
    %1538 = vmatprep.subr.mxu0 0.0
    %1539 = vmatpush1.msra.mxu0 0.0
    %1540 = vmatprep.subr.mxu0 0.0
    %1541 = vmatpush1.msra.mxu0 0.0
    %1542 = vmatprep.subr.mxu0 0.0
    %v1543 = vand.u32 %v32, 4294901760
    %v1544 = vsub.f32 %v32, %v1543
    %v1545 = vand.u32 %v1544, 4294901760
    %v1546 = vsub.f32 %v1544, %v1545
    %v1547 = vand.u32 %v1546, 4294901760
    %1548 = vmatpush1.msra.mxu0 %v1547
    %1549 = vmatprep.subr.mxu0 0.0
    %v1550 = vand.u32 %v12, 4294901760
    %v1551 = vsub.f32 %v12, %v1550
    %v1552 = vand.u32 %v1551, 4294901760
    %v1553 = vsub.f32 %v1551, %v1552
    %v1554 = vand.u32 %v1553, 4294901760
    %1555 = vmatpush1.msra.mxu0 %v1554
    %1556 = vmatprep.subr.mxu0 0.0
    %1557 = vmatpush2.msra.mxu0 0.0
    %1558 = vmatprep.subr.mxu0 0.0
    %1559 = vmatpush2.msra.mxu0 0.0
    %1560 = vmatprep.subr.mxu0 0.0
    %1561 = vmatpush2.msra.mxu0 0.0
    %1562 = vmatprep.subr.mxu0 0.0
    %1563 = vmatpush2.msra.mxu0 0.0
    %1564 = vmatprep.subr.mxu0 0.0
    %1565 = vmatpush2.msra.mxu0 0.0
    %1566 = vmatprep.subr.mxu0 0.0
    %1567 = vmatpush2.msra.mxu0 0.0
    %1568 = vmatprep.subr.mxu0 0.0
    %1569 = vmatpush2.msra.mxu0 0.0
    %1570 = vmatprep.subr.mxu0 0.0
    %1571 = vmatpush2.msra.mxu0 0.0
    %1572 = vmatprep.subr.mxu0 0.0
    %1573 = vmatpush2.msra.mxu0 0.0
    %1574 = vmatprep.subr.mxu0 0.0
    %1575 = vmatpush2.msra.mxu0 0.0
    %1576 = vmatprep.subr.mxu0 0.0
    %1577 = vmatpush2.msra.mxu0 0.0
    %1578 = vmatprep.subr.mxu0 0.0
    %1579 = vmatpush2.msra.mxu0 0.0
    %1580 = vmatprep.subr.mxu0 0.0
    %1581 = vmatpush2.msra.mxu0 0.0
    %1582 = vmatprep.subr.mxu0 0.0
    %1583 = vmatpush2.msra.mxu0 0.0
    %1584 = vmatprep.subr.mxu0 0.0
    %1585 = vmatpush2.msra.mxu0 0.0
    %1586 = vmatprep.subr.mxu0 0.0
    %1587 = vmatpush2.msra.mxu0 0.0
    %1588 = vmatprep.mubr.f32.mxu0 0.0
    %v1589 = vand.u32 %v1435, 4294901760
    %1590 = vmatmul.mubr.f32.gmra.mxu0 %v1589
    %v1591 = vpop.f32.mrf.mxu0
    %v1592 = vadd.f32 %v1511, %v1591
    %v1593 = vpop.f32.mrf.mxu0
    %1594 = vdwg.mxu0
    %1595 = vmatprep.subr.mxu0 0.0
    %1596 = vmatpush1.msra.mxu0 0.0
    %1597 = vmatprep.subr.mxu0 0.0
    %1598 = vmatpush1.msra.mxu0 0.0
    %1599 = vmatprep.subr.mxu0 0.0
    %1600 = vmatpush1.msra.mxu0 0.0
    %1601 = vmatprep.subr.mxu0 0.0
    %1602 = vmatpush1.msra.mxu0 0.0
    %1603 = vmatprep.subr.mxu0 0.0
    %1604 = vmatpush1.msra.mxu0 0.0
    %1605 = vmatprep.subr.mxu0 0.0
    %1606 = vmatpush1.msra.mxu0 0.0
    %1607 = vmatprep.subr.mxu0 0.0
    %1608 = vmatpush1.msra.mxu0 0.0
    %1609 = vmatprep.subr.mxu0 0.0
    %1610 = vmatpush1.msra.mxu0 0.0
    %1611 = vmatprep.subr.mxu0 0.0
    %1612 = vmatpush1.msra.mxu0 0.0
    %1613 = vmatprep.subr.mxu0 0.0
    %1614 = vmatpush1.msra.mxu0 0.0
    %1615 = vmatprep.subr.mxu0 0.0
    %1616 = vmatpush1.msra.mxu0 0.0
    %1617 = vmatprep.subr.mxu0 0.0
    %1618 = vmatpush1.msra.mxu0 0.0
    %1619 = vmatprep.subr.mxu0 0.0
    %1620 = vmatpush1.msra.mxu0 0.0
    %1621 = vmatprep.subr.mxu0 0.0
    %1622 = vmatpush1.msra.mxu0 0.0
    %1623 = vmatprep.subr.mxu0 0.0
    %v1624 = vand.u32 %v32, 4294901760
    %v1625 = vsub.f32 %v32, %v1624
    %1626 = vmatpush1.msra.mxu0 %v1625
    %1627 = vmatprep.subr.mxu0 0.0
    %v1628 = vand.u32 %v12, 4294901760
    %v1629 = vsub.f32 %v12, %v1628
    %1630 = vmatpush1.msra.mxu0 %v1629
    %1631 = vmatprep.subr.mxu0 0.0
    %1632 = vmatpush2.msra.mxu0 0.0
    %1633 = vmatprep.subr.mxu0 0.0
    %1634 = vmatpush2.msra.mxu0 0.0
    %1635 = vmatprep.subr.mxu0 0.0
    %1636 = vmatpush2.msra.mxu0 0.0
    %1637 = vmatprep.subr.mxu0 0.0
    %1638 = vmatpush2.msra.mxu0 0.0
    %1639 = vmatprep.subr.mxu0 0.0
    %1640 = vmatpush2.msra.mxu0 0.0
    %1641 = vmatprep.subr.mxu0 0.0
    %1642 = vmatpush2.msra.mxu0 0.0
    %1643 = vmatprep.subr.mxu0 0.0
    %1644 = vmatpush2.msra.mxu0 0.0
    %1645 = vmatprep.subr.mxu0 0.0
    %1646 = vmatpush2.msra.mxu0 0.0
    %1647 = vmatprep.subr.mxu0 0.0
    %1648 = vmatpush2.msra.mxu0 0.0
    %1649 = vmatprep.subr.mxu0 0.0
    %1650 = vmatpush2.msra.mxu0 0.0
    %1651 = vmatprep.subr.mxu0 0.0
    %1652 = vmatpush2.msra.mxu0 0.0
    %1653 = vmatprep.subr.mxu0 0.0
    %1654 = vmatpush2.msra.mxu0 0.0
    %1655 = vmatprep.subr.mxu0 0.0
    %1656 = vmatpush2.msra.mxu0 0.0
    %1657 = vmatprep.subr.mxu0 0.0
    %1658 = vmatpush2.msra.mxu0 0.0
    %1659 = vmatprep.subr.mxu0 0.0
    %1660 = vmatpush2.msra.mxu0 0.0
    %1661 = vmatprep.subr.mxu0 0.0
    %1662 = vmatpush2.msra.mxu0 0.0
    %1663 = vmatprep.mubr.f32.mxu0 0.0
    %v1664 = vand.u32 %v1435, 4294901760
    %v1665 = vsub.f32 %v1435, %v1664
    %1666 = vmatmul.mubr.f32.gmra.mxu0 %v1665
    %v1667 = vpop.f32.mrf.mxu0
    %v1668 = vadd.f32 %v1592, %v1667
    %v1669 = vpop.f32.mrf.mxu0
    %1670 = vdwg.mxu0
    %1671 = vmatprep.subr.mxu0 0.0
    %1672 = vmatpush1.msra.mxu0 0.0
    %1673 = vmatprep.subr.mxu0 0.0
    %1674 = vmatpush1.msra.mxu0 0.0
    %1675 = vmatprep.subr.mxu0 0.0
    %1676 = vmatpush1.msra.mxu0 0.0
    %1677 = vmatprep.subr.mxu0 0.0
    %1678 = vmatpush1.msra.mxu0 0.0
    %1679 = vmatprep.subr.mxu0 0.0
    %1680 = vmatpush1.msra.mxu0 0.0
    %1681 = vmatprep.subr.mxu0 0.0
    %1682 = vmatpush1.msra.mxu0 0.0
    %1683 = vmatprep.subr.mxu0 0.0
    %1684 = vmatpush1.msra.mxu0 0.0
    %1685 = vmatprep.subr.mxu0 0.0
    %1686 = vmatpush1.msra.mxu0 0.0
    %1687 = vmatprep.subr.mxu0 0.0
    %1688 = vmatpush1.msra.mxu0 0.0
    %1689 = vmatprep.subr.mxu0 0.0
    %1690 = vmatpush1.msra.mxu0 0.0
    %1691 = vmatprep.subr.mxu0 0.0
    %1692 = vmatpush1.msra.mxu0 0.0
    %1693 = vmatprep.subr.mxu0 0.0
    %1694 = vmatpush1.msra.mxu0 0.0
    %1695 = vmatprep.subr.mxu0 0.0
    %1696 = vmatpush1.msra.mxu0 0.0
    %1697 = vmatprep.subr.mxu0 0.0
    %1698 = vmatpush1.msra.mxu0 0.0
    %1699 = vmatprep.subr.mxu0 0.0
    %v1700 = vand.u32 %v32, 4294901760
    %1701 = vmatpush1.msra.mxu0 %v1700
    %1702 = vmatprep.subr.mxu0 0.0
    %v1703 = vand.u32 %v12, 4294901760
    %1704 = vmatpush1.msra.mxu0 %v1703
    %1705 = vmatprep.subr.mxu0 0.0
    %1706 = vmatpush2.msra.mxu0 0.0
    %1707 = vmatprep.subr.mxu0 0.0
    %1708 = vmatpush2.msra.mxu0 0.0
    %1709 = vmatprep.subr.mxu0 0.0
    %1710 = vmatpush2.msra.mxu0 0.0
    %1711 = vmatprep.subr.mxu0 0.0
    %1712 = vmatpush2.msra.mxu0 0.0
    %1713 = vmatprep.subr.mxu0 0.0
    %1714 = vmatpush2.msra.mxu0 0.0
    %1715 = vmatprep.subr.mxu0 0.0
    %1716 = vmatpush2.msra.mxu0 0.0
    %1717 = vmatprep.subr.mxu0 0.0
    %1718 = vmatpush2.msra.mxu0 0.0
    %1719 = vmatprep.subr.mxu0 0.0
    %1720 = vmatpush2.msra.mxu0 0.0
    %1721 = vmatprep.subr.mxu0 0.0
    %1722 = vmatpush2.msra.mxu0 0.0
    %1723 = vmatprep.subr.mxu0 0.0
    %1724 = vmatpush2.msra.mxu0 0.0
    %1725 = vmatprep.subr.mxu0 0.0
    %1726 = vmatpush2.msra.mxu0 0.0
    %1727 = vmatprep.subr.mxu0 0.0
    %1728 = vmatpush2.msra.mxu0 0.0
    %1729 = vmatprep.subr.mxu0 0.0
    %1730 = vmatpush2.msra.mxu0 0.0
    %1731 = vmatprep.subr.mxu0 0.0
    %1732 = vmatpush2.msra.mxu0 0.0
    %1733 = vmatprep.subr.mxu0 0.0
    %1734 = vmatpush2.msra.mxu0 0.0
    %1735 = vmatprep.subr.mxu0 0.0
    %1736 = vmatpush2.msra.mxu0 0.0
    %1737 = vmatprep.mubr.f32.mxu0 0.0
    %v1738 = vand.u32 %v1435, 4294901760
    %v1739 = vsub.f32 %v1435, %v1738
    %v1740 = vand.u32 %v1739, 4294901760
    %1741 = vmatmul.mubr.f32.gmra.mxu0 %v1740
    %v1742 = vpop.f32.mrf.mxu0
    %v1743 = vadd.f32 %v1668, %v1742
    %v1744 = vpop.f32.mrf.mxu0
    %1745 = vdwg.mxu0
    %1746 = vmatprep.subr.mxu0 0.0
    %1747 = vmatpush1.msra.mxu0 0.0
    %1748 = vmatprep.subr.mxu0 0.0
    %1749 = vmatpush1.msra.mxu0 0.0
    %1750 = vmatprep.subr.mxu0 0.0
    %1751 = vmatpush1.msra.mxu0 0.0
    %1752 = vmatprep.subr.mxu0 0.0
    %1753 = vmatpush1.msra.mxu0 0.0
    %1754 = vmatprep.subr.mxu0 0.0
    %1755 = vmatpush1.msra.mxu0 0.0
    %1756 = vmatprep.subr.mxu0 0.0
    %1757 = vmatpush1.msra.mxu0 0.0
    %1758 = vmatprep.subr.mxu0 0.0
    %1759 = vmatpush1.msra.mxu0 0.0
    %1760 = vmatprep.subr.mxu0 0.0
    %1761 = vmatpush1.msra.mxu0 0.0
    %1762 = vmatprep.subr.mxu0 0.0
    %1763 = vmatpush1.msra.mxu0 0.0
    %1764 = vmatprep.subr.mxu0 0.0
    %1765 = vmatpush1.msra.mxu0 0.0
    %1766 = vmatprep.subr.mxu0 0.0
    %1767 = vmatpush1.msra.mxu0 0.0
    %1768 = vmatprep.subr.mxu0 0.0
    %1769 = vmatpush1.msra.mxu0 0.0
    %1770 = vmatprep.subr.mxu0 0.0
    %1771 = vmatpush1.msra.mxu0 0.0
    %1772 = vmatprep.subr.mxu0 0.0
    %1773 = vmatpush1.msra.mxu0 0.0
    %1774 = vmatprep.subr.mxu0 0.0
    %v1775 = vand.u32 %v32, 4294901760
    %v1776 = vsub.f32 %v32, %v1775
    %v1777 = vand.u32 %v1776, 4294901760
    %1778 = vmatpush1.msra.mxu0 %v1777
    %1779 = vmatprep.subr.mxu0 0.0
    %v1780 = vand.u32 %v12, 4294901760
    %v1781 = vsub.f32 %v12, %v1780
    %v1782 = vand.u32 %v1781, 4294901760
    %1783 = vmatpush1.msra.mxu0 %v1782
    %1784 = vmatprep.subr.mxu0 0.0
    %1785 = vmatpush2.msra.mxu0 0.0
    %1786 = vmatprep.subr.mxu0 0.0
    %1787 = vmatpush2.msra.mxu0 0.0
    %1788 = vmatprep.subr.mxu0 0.0
    %1789 = vmatpush2.msra.mxu0 0.0
    %1790 = vmatprep.subr.mxu0 0.0
    %1791 = vmatpush2.msra.mxu0 0.0
    %1792 = vmatprep.subr.mxu0 0.0
    %1793 = vmatpush2.msra.mxu0 0.0
    %1794 = vmatprep.subr.mxu0 0.0
    %1795 = vmatpush2.msra.mxu0 0.0
    %1796 = vmatprep.subr.mxu0 0.0
    %1797 = vmatpush2.msra.mxu0 0.0
    %1798 = vmatprep.subr.mxu0 0.0
    %1799 = vmatpush2.msra.mxu0 0.0
    %1800 = vmatprep.subr.mxu0 0.0
    %1801 = vmatpush2.msra.mxu0 0.0
    %1802 = vmatprep.subr.mxu0 0.0
    %1803 = vmatpush2.msra.mxu0 0.0
    %1804 = vmatprep.subr.mxu0 0.0
    %1805 = vmatpush2.msra.mxu0 0.0
    %1806 = vmatprep.subr.mxu0 0.0
    %1807 = vmatpush2.msra.mxu0 0.0
    %1808 = vmatprep.subr.mxu0 0.0
    %1809 = vmatpush2.msra.mxu0 0.0
    %1810 = vmatprep.subr.mxu0 0.0
    %1811 = vmatpush2.msra.mxu0 0.0
    %1812 = vmatprep.subr.mxu0 0.0
    %1813 = vmatpush2.msra.mxu0 0.0
    %1814 = vmatprep.subr.mxu0 0.0
    %1815 = vmatpush2.msra.mxu0 0.0
    %1816 = vmatprep.mubr.f32.mxu0 0.0
    %v1817 = vand.u32 %v1435, 4294901760
    %1818 = vmatmul.mubr.f32.gmra.mxu0 %v1817
    %v1819 = vpop.f32.mrf.mxu0
    %v1820 = vadd.f32 %v1743, %v1819
    %v1821 = vpop.f32.mrf.mxu0
    %1822 = vdwg.mxu0
    %1823 = vmatprep.subr.mxu0 0.0
    %1824 = vmatpush1.msra.mxu0 0.0
    %1825 = vmatprep.subr.mxu0 0.0
    %1826 = vmatpush1.msra.mxu0 0.0
    %1827 = vmatprep.subr.mxu0 0.0
    %1828 = vmatpush1.msra.mxu0 0.0
    %1829 = vmatprep.subr.mxu0 0.0
    %1830 = vmatpush1.msra.mxu0 0.0
    %1831 = vmatprep.subr.mxu0 0.0
    %1832 = vmatpush1.msra.mxu0 0.0
    %1833 = vmatprep.subr.mxu0 0.0
    %1834 = vmatpush1.msra.mxu0 0.0
    %1835 = vmatprep.subr.mxu0 0.0
    %1836 = vmatpush1.msra.mxu0 0.0
    %1837 = vmatprep.subr.mxu0 0.0
    %1838 = vmatpush1.msra.mxu0 0.0
    %1839 = vmatprep.subr.mxu0 0.0
    %1840 = vmatpush1.msra.mxu0 0.0
    %1841 = vmatprep.subr.mxu0 0.0
    %1842 = vmatpush1.msra.mxu0 0.0
    %1843 = vmatprep.subr.mxu0 0.0
    %1844 = vmatpush1.msra.mxu0 0.0
    %1845 = vmatprep.subr.mxu0 0.0
    %1846 = vmatpush1.msra.mxu0 0.0
    %1847 = vmatprep.subr.mxu0 0.0
    %1848 = vmatpush1.msra.mxu0 0.0
    %1849 = vmatprep.subr.mxu0 0.0
    %1850 = vmatpush1.msra.mxu0 0.0
    %1851 = vmatprep.subr.mxu0 0.0
    %v1852 = vand.u32 %v32, 4294901760
    %1853 = vmatpush1.msra.mxu0 %v1852
    %1854 = vmatprep.subr.mxu0 0.0
    %v1855 = vand.u32 %v12, 4294901760
    %1856 = vmatpush1.msra.mxu0 %v1855
    %1857 = vmatprep.subr.mxu0 0.0
    %1858 = vmatpush2.msra.mxu0 0.0
    %1859 = vmatprep.subr.mxu0 0.0
    %1860 = vmatpush2.msra.mxu0 0.0
    %1861 = vmatprep.subr.mxu0 0.0
    %1862 = vmatpush2.msra.mxu0 0.0
    %1863 = vmatprep.subr.mxu0 0.0
    %1864 = vmatpush2.msra.mxu0 0.0
    %1865 = vmatprep.subr.mxu0 0.0
    %1866 = vmatpush2.msra.mxu0 0.0
    %1867 = vmatprep.subr.mxu0 0.0
    %1868 = vmatpush2.msra.mxu0 0.0
    %1869 = vmatprep.subr.mxu0 0.0
    %1870 = vmatpush2.msra.mxu0 0.0
    %1871 = vmatprep.subr.mxu0 0.0
    %1872 = vmatpush2.msra.mxu0 0.0
    %1873 = vmatprep.subr.mxu0 0.0
    %1874 = vmatpush2.msra.mxu0 0.0
    %1875 = vmatprep.subr.mxu0 0.0
    %1876 = vmatpush2.msra.mxu0 0.0
    %1877 = vmatprep.subr.mxu0 0.0
    %1878 = vmatpush2.msra.mxu0 0.0
    %1879 = vmatprep.subr.mxu0 0.0
    %1880 = vmatpush2.msra.mxu0 0.0
    %1881 = vmatprep.subr.mxu0 0.0
    %1882 = vmatpush2.msra.mxu0 0.0
    %1883 = vmatprep.subr.mxu0 0.0
    %1884 = vmatpush2.msra.mxu0 0.0
    %1885 = vmatprep.subr.mxu0 0.0
    %1886 = vmatpush2.msra.mxu0 0.0
    %1887 = vmatprep.subr.mxu0 0.0
    %1888 = vmatpush2.msra.mxu0 0.0
    %1889 = vmatprep.mubr.f32.mxu0 0.0
    %v1890 = vand.u32 %v1435, 4294901760
    %1891 = vmatmul.mubr.f32.gmra.mxu0 %v1890
    %v1892 = vpop.f32.mrf.mxu0
    %v1893 = vadd.f32 %v1820, %v1892
    %v1894 = vpop.f32.mrf.mxu0
    %1895 = vdwg.mxu0
    %1897 = vrot.lane.b32.xlu0 %v1893, 24
    %v1898 = vpop.permute.xlu0 %1897
    %vm1900 = vcmask 261312
    %1901 = vst.msk [vmem:[#allocation2] sm:$0xff] %vm1900, %v1898
    %1903 = vrot.lane.b32.xlu0 %v15, 112
    %v1904 = vpop.permute.xlu0 %1903
    %v1906 = vmax.f32 %v15, %v1904
    %1908 = vrot.lane.b32.xlu0 %v1906, 127
    %v1909 = vpop.permute.xlu0 %1908
    %v1911 = vmax.f32 %v1906, %v1909
    %v1913 = vsel %vm26, %v1911, 0
    %1915 = vmatprep.subr.mxu0 0.0
    %1916 = vmatpush1.msra.mxu0 0.0
    %1917 = vmatprep.subr.mxu0 0.0
    %1918 = vmatpush1.msra.mxu0 0.0
    %1919 = vmatprep.subr.mxu0 0.0
    %1920 = vmatpush1.msra.mxu0 0.0
    %1921 = vmatprep.subr.mxu0 0.0
    %1922 = vmatpush1.msra.mxu0 0.0
    %1923 = vmatprep.subr.mxu0 0.0
    %1924 = vmatpush1.msra.mxu0 0.0
    %1925 = vmatprep.subr.mxu0 0.0
    %1926 = vmatpush1.msra.mxu0 0.0
    %1927 = vmatprep.subr.mxu0 0.0
    %1928 = vmatpush1.msra.mxu0 0.0
    %1929 = vmatprep.subr.mxu0 0.0
    %1930 = vmatpush1.msra.mxu0 0.0
    %1931 = vmatprep.subr.mxu0 0.0
    %1932 = vmatpush1.msra.mxu0 0.0
    %1933 = vmatprep.subr.mxu0 0.0
    %1934 = vmatpush1.msra.mxu0 0.0
    %1935 = vmatprep.subr.mxu0 0.0
    %1936 = vmatpush1.msra.mxu0 0.0
    %1937 = vmatprep.subr.mxu0 0.0
    %1938 = vmatpush1.msra.mxu0 0.0
    %1939 = vmatprep.subr.mxu0 0.0
    %1940 = vmatpush1.msra.mxu0 0.0
    %1941 = vmatprep.subr.mxu0 0.0
    %1942 = vmatpush1.msra.mxu0 0.0
    %1943 = vmatprep.subr.mxu0 0.0
    %v1944 = vand.u32 %v32, 4294901760
    %1945 = vmatpush1.msra.mxu0 %v1944
    %1946 = vmatprep.subr.mxu0 0.0
    %v1947 = vand.u32 %v12, 4294901760
    %1948 = vmatpush1.msra.mxu0 %v1947
    %1949 = vmatprep.subr.mxu0 0.0
    %1950 = vmatpush2.msra.mxu0 0.0
    %1951 = vmatprep.subr.mxu0 0.0
    %1952 = vmatpush2.msra.mxu0 0.0
    %1953 = vmatprep.subr.mxu0 0.0
    %1954 = vmatpush2.msra.mxu0 0.0
    %1955 = vmatprep.subr.mxu0 0.0
    %1956 = vmatpush2.msra.mxu0 0.0
    %1957 = vmatprep.subr.mxu0 0.0
    %1958 = vmatpush2.msra.mxu0 0.0
    %1959 = vmatprep.subr.mxu0 0.0
    %1960 = vmatpush2.msra.mxu0 0.0
    %1961 = vmatprep.subr.mxu0 0.0
    %1962 = vmatpush2.msra.mxu0 0.0
    %1963 = vmatprep.subr.mxu0 0.0
    %1964 = vmatpush2.msra.mxu0 0.0
    %1965 = vmatprep.subr.mxu0 0.0
    %1966 = vmatpush2.msra.mxu0 0.0
    %1967 = vmatprep.subr.mxu0 0.0
    %1968 = vmatpush2.msra.mxu0 0.0
    %1969 = vmatprep.subr.mxu0 0.0
    %1970 = vmatpush2.msra.mxu0 0.0
    %1971 = vmatprep.subr.mxu0 0.0
    %1972 = vmatpush2.msra.mxu0 0.0
    %1973 = vmatprep.subr.mxu0 0.0
    %1974 = vmatpush2.msra.mxu0 0.0
    %1975 = vmatprep.subr.mxu0 0.0
    %1976 = vmatpush2.msra.mxu0 0.0
    %1977 = vmatprep.subr.mxu0 0.0
    %1978 = vmatpush2.msra.mxu0 0.0
    %1979 = vmatprep.subr.mxu0 0.0
    %1980 = vmatpush2.msra.mxu0 0.0
    %1981 = vmatprep.mubr.f32.mxu0 0.0
    %v1982 = vand.u32 %v1913, 4294901760
    %v1983 = vsub.f32 %v1913, %v1982
    %v1984 = vand.u32 %v1983, 4294901760
    %v1985 = vsub.f32 %v1983, %v1984
    %v1986 = vand.u32 %v1985, 4294901760
    %1987 = vmatmul.mubr.f32.gmra.mxu0 %v1986
    %v1988 = vpop.f32.mrf.mxu0
    %v1989 = vadd.f32 0.0, %v1988
    %v1990 = vpop.f32.mrf.mxu0
    %1991 = vdwg.mxu0
    %1992 = vmatprep.subr.mxu0 0.0
    %1993 = vmatpush1.msra.mxu0 0.0
    %1994 = vmatprep.subr.mxu0 0.0
    %1995 = vmatpush1.msra.mxu0 0.0
    %1996 = vmatprep.subr.mxu0 0.0
    %1997 = vmatpush1.msra.mxu0 0.0
    %1998 = vmatprep.subr.mxu0 0.0
    %1999 = vmatpush1.msra.mxu0 0.0
    %2000 = vmatprep.subr.mxu0 0.0
    %2001 = vmatpush1.msra.mxu0 0.0
    %2002 = vmatprep.subr.mxu0 0.0
    %2003 = vmatpush1.msra.mxu0 0.0
    %2004 = vmatprep.subr.mxu0 0.0
    %2005 = vmatpush1.msra.mxu0 0.0
    %2006 = vmatprep.subr.mxu0 0.0
    %2007 = vmatpush1.msra.mxu0 0.0
    %2008 = vmatprep.subr.mxu0 0.0
    %2009 = vmatpush1.msra.mxu0 0.0
    %2010 = vmatprep.subr.mxu0 0.0
    %2011 = vmatpush1.msra.mxu0 0.0
    %2012 = vmatprep.subr.mxu0 0.0
    %2013 = vmatpush1.msra.mxu0 0.0
    %2014 = vmatprep.subr.mxu0 0.0
    %2015 = vmatpush1.msra.mxu0 0.0
    %2016 = vmatprep.subr.mxu0 0.0
    %2017 = vmatpush1.msra.mxu0 0.0
    %2018 = vmatprep.subr.mxu0 0.0
    %2019 = vmatpush1.msra.mxu0 0.0
    %2020 = vmatprep.subr.mxu0 0.0
    %v2021 = vand.u32 %v32, 4294901760
    %v2022 = vsub.f32 %v32, %v2021
    %v2023 = vand.u32 %v2022, 4294901760
    %v2024 = vsub.f32 %v2022, %v2023
    %v2025 = vand.u32 %v2024, 4294901760
    %2026 = vmatpush1.msra.mxu0 %v2025
    %2027 = vmatprep.subr.mxu0 0.0
    %v2028 = vand.u32 %v12, 4294901760
    %v2029 = vsub.f32 %v12, %v2028
    %v2030 = vand.u32 %v2029, 4294901760
    %v2031 = vsub.f32 %v2029, %v2030
    %v2032 = vand.u32 %v2031, 4294901760
    %2033 = vmatpush1.msra.mxu0 %v2032
    %2034 = vmatprep.subr.mxu0 0.0
    %2035 = vmatpush2.msra.mxu0 0.0
    %2036 = vmatprep.subr.mxu0 0.0
    %2037 = vmatpush2.msra.mxu0 0.0
    %2038 = vmatprep.subr.mxu0 0.0
    %2039 = vmatpush2.msra.mxu0 0.0
    %2040 = vmatprep.subr.mxu0 0.0
    %2041 = vmatpush2.msra.mxu0 0.0
    %2042 = vmatprep.subr.mxu0 0.0
    %2043 = vmatpush2.msra.mxu0 0.0
    %2044 = vmatprep.subr.mxu0 0.0
    %2045 = vmatpush2.msra.mxu0 0.0
    %2046 = vmatprep.subr.mxu0 0.0
    %2047 = vmatpush2.msra.mxu0 0.0
    %2048 = vmatprep.subr.mxu0 0.0
    %2049 = vmatpush2.msra.mxu0 0.0
    %2050 = vmatprep.subr.mxu0 0.0
    %2051 = vmatpush2.msra.mxu0 0.0
    %2052 = vmatprep.subr.mxu0 0.0
    %2053 = vmatpush2.msra.mxu0 0.0
    %2054 = vmatprep.subr.mxu0 0.0
    %2055 = vmatpush2.msra.mxu0 0.0
    %2056 = vmatprep.subr.mxu0 0.0
    %2057 = vmatpush2.msra.mxu0 0.0
    %2058 = vmatprep.subr.mxu0 0.0
    %2059 = vmatpush2.msra.mxu0 0.0
    %2060 = vmatprep.subr.mxu0 0.0
    %2061 = vmatpush2.msra.mxu0 0.0
    %2062 = vmatprep.subr.mxu0 0.0
    %2063 = vmatpush2.msra.mxu0 0.0
    %2064 = vmatprep.subr.mxu0 0.0
    %2065 = vmatpush2.msra.mxu0 0.0
    %2066 = vmatprep.mubr.f32.mxu0 0.0
    %v2067 = vand.u32 %v1913, 4294901760
    %2068 = vmatmul.mubr.f32.gmra.mxu0 %v2067
    %v2069 = vpop.f32.mrf.mxu0
    %v2070 = vadd.f32 %v1989, %v2069
    %v2071 = vpop.f32.mrf.mxu0
    %2072 = vdwg.mxu0
    %2073 = vmatprep.subr.mxu0 0.0
    %2074 = vmatpush1.msra.mxu0 0.0
    %2075 = vmatprep.subr.mxu0 0.0
    %2076 = vmatpush1.msra.mxu0 0.0
    %2077 = vmatprep.subr.mxu0 0.0
    %2078 = vmatpush1.msra.mxu0 0.0
    %2079 = vmatprep.subr.mxu0 0.0
    %2080 = vmatpush1.msra.mxu0 0.0
    %2081 = vmatprep.subr.mxu0 0.0
    %2082 = vmatpush1.msra.mxu0 0.0
    %2083 = vmatprep.subr.mxu0 0.0
    %2084 = vmatpush1.msra.mxu0 0.0
    %2085 = vmatprep.subr.mxu0 0.0
    %2086 = vmatpush1.msra.mxu0 0.0
    %2087 = vmatprep.subr.mxu0 0.0
    %2088 = vmatpush1.msra.mxu0 0.0
    %2089 = vmatprep.subr.mxu0 0.0
    %2090 = vmatpush1.msra.mxu0 0.0
    %2091 = vmatprep.subr.mxu0 0.0
    %2092 = vmatpush1.msra.mxu0 0.0
    %2093 = vmatprep.subr.mxu0 0.0
    %2094 = vmatpush1.msra.mxu0 0.0
    %2095 = vmatprep.subr.mxu0 0.0
    %2096 = vmatpush1.msra.mxu0 0.0
    %2097 = vmatprep.subr.mxu0 0.0
    %2098 = vmatpush1.msra.mxu0 0.0
    %2099 = vmatprep.subr.mxu0 0.0
    %2100 = vmatpush1.msra.mxu0 0.0
    %2101 = vmatprep.subr.mxu0 0.0
    %v2102 = vand.u32 %v32, 4294901760
    %v2103 = vsub.f32 %v32, %v2102
    %2104 = vmatpush1.msra.mxu0 %v2103
    %2105 = vmatprep.subr.mxu0 0.0
    %v2106 = vand.u32 %v12, 4294901760
    %v2107 = vsub.f32 %v12, %v2106
    %2108 = vmatpush1.msra.mxu0 %v2107
    %2109 = vmatprep.subr.mxu0 0.0
    %2110 = vmatpush2.msra.mxu0 0.0
    %2111 = vmatprep.subr.mxu0 0.0
    %2112 = vmatpush2.msra.mxu0 0.0
    %2113 = vmatprep.subr.mxu0 0.0
    %2114 = vmatpush2.msra.mxu0 0.0
    %2115 = vmatprep.subr.mxu0 0.0
    %2116 = vmatpush2.msra.mxu0 0.0
    %2117 = vmatprep.subr.mxu0 0.0
    %2118 = vmatpush2.msra.mxu0 0.0
    %2119 = vmatprep.subr.mxu0 0.0
    %2120 = vmatpush2.msra.mxu0 0.0
    %2121 = vmatprep.subr.mxu0 0.0
    %2122 = vmatpush2.msra.mxu0 0.0
    %2123 = vmatprep.subr.mxu0 0.0
    %2124 = vmatpush2.msra.mxu0 0.0
    %2125 = vmatprep.subr.mxu0 0.0
    %2126 = vmatpush2.msra.mxu0 0.0
    %2127 = vmatprep.subr.mxu0 0.0
    %2128 = vmatpush2.msra.mxu0 0.0
    %2129 = vmatprep.subr.mxu0 0.0
    %2130 = vmatpush2.msra.mxu0 0.0
    %2131 = vmatprep.subr.mxu0 0.0
    %2132 = vmatpush2.msra.mxu0 0.0
    %2133 = vmatprep.subr.mxu0 0.0
    %2134 = vmatpush2.msra.mxu0 0.0
    %2135 = vmatprep.subr.mxu0 0.0
    %2136 = vmatpush2.msra.mxu0 0.0
    %2137 = vmatprep.subr.mxu0 0.0
    %2138 = vmatpush2.msra.mxu0 0.0
    %2139 = vmatprep.subr.mxu0 0.0
    %2140 = vmatpush2.msra.mxu0 0.0
    %2141 = vmatprep.mubr.f32.mxu0 0.0
    %v2142 = vand.u32 %v1913, 4294901760
    %v2143 = vsub.f32 %v1913, %v2142
    %2144 = vmatmul.mubr.f32.gmra.mxu0 %v2143
    %v2145 = vpop.f32.mrf.mxu0
    %v2146 = vadd.f32 %v2070, %v2145
    %v2147 = vpop.f32.mrf.mxu0
    %2148 = vdwg.mxu0
    %2149 = vmatprep.subr.mxu0 0.0
    %2150 = vmatpush1.msra.mxu0 0.0
    %2151 = vmatprep.subr.mxu0 0.0
    %2152 = vmatpush1.msra.mxu0 0.0
    %2153 = vmatprep.subr.mxu0 0.0
    %2154 = vmatpush1.msra.mxu0 0.0
    %2155 = vmatprep.subr.mxu0 0.0
    %2156 = vmatpush1.msra.mxu0 0.0
    %2157 = vmatprep.subr.mxu0 0.0
    %2158 = vmatpush1.msra.mxu0 0.0
    %2159 = vmatprep.subr.mxu0 0.0
    %2160 = vmatpush1.msra.mxu0 0.0
    %2161 = vmatprep.subr.mxu0 0.0
    %2162 = vmatpush1.msra.mxu0 0.0
    %2163 = vmatprep.subr.mxu0 0.0
    %2164 = vmatpush1.msra.mxu0 0.0
    %2165 = vmatprep.subr.mxu0 0.0
    %2166 = vmatpush1.msra.mxu0 0.0
    %2167 = vmatprep.subr.mxu0 0.0
    %2168 = vmatpush1.msra.mxu0 0.0
    %2169 = vmatprep.subr.mxu0 0.0
    %2170 = vmatpush1.msra.mxu0 0.0
    %2171 = vmatprep.subr.mxu0 0.0
    %2172 = vmatpush1.msra.mxu0 0.0
    %2173 = vmatprep.subr.mxu0 0.0
    %2174 = vmatpush1.msra.mxu0 0.0
    %2175 = vmatprep.subr.mxu0 0.0
    %2176 = vmatpush1.msra.mxu0 0.0
    %2177 = vmatprep.subr.mxu0 0.0
    %v2178 = vand.u32 %v32, 4294901760
    %2179 = vmatpush1.msra.mxu0 %v2178
    %2180 = vmatprep.subr.mxu0 0.0
    %v2181 = vand.u32 %v12, 4294901760
    %2182 = vmatpush1.msra.mxu0 %v2181
    %2183 = vmatprep.subr.mxu0 0.0
    %2184 = vmatpush2.msra.mxu0 0.0
    %2185 = vmatprep.subr.mxu0 0.0
    %2186 = vmatpush2.msra.mxu0 0.0
    %2187 = vmatprep.subr.mxu0 0.0
    %2188 = vmatpush2.msra.mxu0 0.0
    %2189 = vmatprep.subr.mxu0 0.0
    %2190 = vmatpush2.msra.mxu0 0.0
    %2191 = vmatprep.subr.mxu0 0.0
    %2192 = vmatpush2.msra.mxu0 0.0
    %2193 = vmatprep.subr.mxu0 0.0
    %2194 = vmatpush2.msra.mxu0 0.0
    %2195 = vmatprep.subr.mxu0 0.0
    %2196 = vmatpush2.msra.mxu0 0.0
    %2197 = vmatprep.subr.mxu0 0.0
    %2198 = vmatpush2.msra.mxu0 0.0
    %2199 = vmatprep.subr.mxu0 0.0
    %2200 = vmatpush2.msra.mxu0 0.0
    %2201 = vmatprep.subr.mxu0 0.0
    %2202 = vmatpush2.msra.mxu0 0.0
    %2203 = vmatprep.subr.mxu0 0.0
    %2204 = vmatpush2.msra.mxu0 0.0
    %2205 = vmatprep.subr.mxu0 0.0
    %2206 = vmatpush2.msra.mxu0 0.0
    %2207 = vmatprep.subr.mxu0 0.0
    %2208 = vmatpush2.msra.mxu0 0.0
    %2209 = vmatprep.subr.mxu0 0.0
    %2210 = vmatpush2.msra.mxu0 0.0
    %2211 = vmatprep.subr.mxu0 0.0
    %2212 = vmatpush2.msra.mxu0 0.0
    %2213 = vmatprep.subr.mxu0 0.0
    %2214 = vmatpush2.msra.mxu0 0.0
    %2215 = vmatprep.mubr.f32.mxu0 0.0
    %v2216 = vand.u32 %v1913, 4294901760
    %v2217 = vsub.f32 %v1913, %v2216
    %v2218 = vand.u32 %v2217, 4294901760
    %2219 = vmatmul.mubr.f32.gmra.mxu0 %v2218
    %v2220 = vpop.f32.mrf.mxu0
    %v2221 = vadd.f32 %v2146, %v2220
    %v2222 = vpop.f32.mrf.mxu0
    %2223 = vdwg.mxu0
    %2224 = vmatprep.subr.mxu0 0.0
    %2225 = vmatpush1.msra.mxu0 0.0
    %2226 = vmatprep.subr.mxu0 0.0
    %2227 = vmatpush1.msra.mxu0 0.0
    %2228 = vmatprep.subr.mxu0 0.0
    %2229 = vmatpush1.msra.mxu0 0.0
    %2230 = vmatprep.subr.mxu0 0.0
    %2231 = vmatpush1.msra.mxu0 0.0
    %2232 = vmatprep.subr.mxu0 0.0
    %2233 = vmatpush1.msra.mxu0 0.0
    %2234 = vmatprep.subr.mxu0 0.0
    %2235 = vmatpush1.msra.mxu0 0.0
    %2236 = vmatprep.subr.mxu0 0.0
    %2237 = vmatpush1.msra.mxu0 0.0
    %2238 = vmatprep.subr.mxu0 0.0
    %2239 = vmatpush1.msra.mxu0 0.0
    %2240 = vmatprep.subr.mxu0 0.0
    %2241 = vmatpush1.msra.mxu0 0.0
    %2242 = vmatprep.subr.mxu0 0.0
    %2243 = vmatpush1.msra.mxu0 0.0
    %2244 = vmatprep.subr.mxu0 0.0
    %2245 = vmatpush1.msra.mxu0 0.0
    %2246 = vmatprep.subr.mxu0 0.0
    %2247 = vmatpush1.msra.mxu0 0.0
    %2248 = vmatprep.subr.mxu0 0.0
    %2249 = vmatpush1.msra.mxu0 0.0
    %2250 = vmatprep.subr.mxu0 0.0
    %2251 = vmatpush1.msra.mxu0 0.0
    %2252 = vmatprep.subr.mxu0 0.0
    %v2253 = vand.u32 %v32, 4294901760
    %v2254 = vsub.f32 %v32, %v2253
    %v2255 = vand.u32 %v2254, 4294901760
    %2256 = vmatpush1.msra.mxu0 %v2255
    %2257 = vmatprep.subr.mxu0 0.0
    %v2258 = vand.u32 %v12, 4294901760
    %v2259 = vsub.f32 %v12, %v2258
    %v2260 = vand.u32 %v2259, 4294901760
    %2261 = vmatpush1.msra.mxu0 %v2260
    %2262 = vmatprep.subr.mxu0 0.0
    %2263 = vmatpush2.msra.mxu0 0.0
    %2264 = vmatprep.subr.mxu0 0.0
    %2265 = vmatpush2.msra.mxu0 0.0
    %2266 = vmatprep.subr.mxu0 0.0
    %2267 = vmatpush2.msra.mxu0 0.0
    %2268 = vmatprep.subr.mxu0 0.0
    %2269 = vmatpush2.msra.mxu0 0.0
    %2270 = vmatprep.subr.mxu0 0.0
    %2271 = vmatpush2.msra.mxu0 0.0
    %2272 = vmatprep.subr.mxu0 0.0
    %2273 = vmatpush2.msra.mxu0 0.0
    %2274 = vmatprep.subr.mxu0 0.0
    %2275 = vmatpush2.msra.mxu0 0.0
    %2276 = vmatprep.subr.mxu0 0.0
    %2277 = vmatpush2.msra.mxu0 0.0
    %2278 = vmatprep.subr.mxu0 0.0
    %2279 = vmatpush2.msra.mxu0 0.0
    %2280 = vmatprep.subr.mxu0 0.0
    %2281 = vmatpush2.msra.mxu0 0.0
    %2282 = vmatprep.subr.mxu0 0.0
    %2283 = vmatpush2.msra.mxu0 0.0
    %2284 = vmatprep.subr.mxu0 0.0
    %2285 = vmatpush2.msra.mxu0 0.0
    %2286 = vmatprep.subr.mxu0 0.0
    %2287 = vmatpush2.msra.mxu0 0.0
    %2288 = vmatprep.subr.mxu0 0.0
    %2289 = vmatpush2.msra.mxu0 0.0
    %2290 = vmatprep.subr.mxu0 0.0
    %2291 = vmatpush2.msra.mxu0 0.0
    %2292 = vmatprep.subr.mxu0 0.0
    %2293 = vmatpush2.msra.mxu0 0.0
    %2294 = vmatprep.mubr.f32.mxu0 0.0
    %v2295 = vand.u32 %v1913, 4294901760
    %2296 = vmatmul.mubr.f32.gmra.mxu0 %v2295
    %v2297 = vpop.f32.mrf.mxu0
    %v2298 = vadd.f32 %v2221, %v2297
    %v2299 = vpop.f32.mrf.mxu0
    %2300 = vdwg.mxu0
    %2301 = vmatprep.subr.mxu0 0.0
    %2302 = vmatpush1.msra.mxu0 0.0
    %2303 = vmatprep.subr.mxu0 0.0
    %2304 = vmatpush1.msra.mxu0 0.0
    %2305 = vmatprep.subr.mxu0 0.0
    %2306 = vmatpush1.msra.mxu0 0.0
    %2307 = vmatprep.subr.mxu0 0.0
    %2308 = vmatpush1.msra.mxu0 0.0
    %2309 = vmatprep.subr.mxu0 0.0
    %2310 = vmatpush1.msra.mxu0 0.0
    %2311 = vmatprep.subr.mxu0 0.0
    %2312 = vmatpush1.msra.mxu0 0.0
    %2313 = vmatprep.subr.mxu0 0.0
    %2314 = vmatpush1.msra.mxu0 0.0
    %2315 = vmatprep.subr.mxu0 0.0
    %2316 = vmatpush1.msra.mxu0 0.0
    %2317 = vmatprep.subr.mxu0 0.0
    %2318 = vmatpush1.msra.mxu0 0.0
    %2319 = vmatprep.subr.mxu0 0.0
    %2320 = vmatpush1.msra.mxu0 0.0
    %2321 = vmatprep.subr.mxu0 0.0
    %2322 = vmatpush1.msra.mxu0 0.0
    %2323 = vmatprep.subr.mxu0 0.0
    %2324 = vmatpush1.msra.mxu0 0.0
    %2325 = vmatprep.subr.mxu0 0.0
    %2326 = vmatpush1.msra.mxu0 0.0
    %2327 = vmatprep.subr.mxu0 0.0
    %2328 = vmatpush1.msra.mxu0 0.0
    %2329 = vmatprep.subr.mxu0 0.0
    %v2330 = vand.u32 %v32, 4294901760
    %2331 = vmatpush1.msra.mxu0 %v2330
    %2332 = vmatprep.subr.mxu0 0.0
    %v2333 = vand.u32 %v12, 4294901760
    %2334 = vmatpush1.msra.mxu0 %v2333
    %2335 = vmatprep.subr.mxu0 0.0
    %2336 = vmatpush2.msra.mxu0 0.0
    %2337 = vmatprep.subr.mxu0 0.0
    %2338 = vmatpush2.msra.mxu0 0.0
    %2339 = vmatprep.subr.mxu0 0.0
    %2340 = vmatpush2.msra.mxu0 0.0
    %2341 = vmatprep.subr.mxu0 0.0
    %2342 = vmatpush2.msra.mxu0 0.0
    %2343 = vmatprep.subr.mxu0 0.0
    %2344 = vmatpush2.msra.mxu0 0.0
    %2345 = vmatprep.subr.mxu0 0.0
    %2346 = vmatpush2.msra.mxu0 0.0
    %2347 = vmatprep.subr.mxu0 0.0
    %2348 = vmatpush2.msra.mxu0 0.0
    %2349 = vmatprep.subr.mxu0 0.0
    %2350 = vmatpush2.msra.mxu0 0.0
    %2351 = vmatprep.subr.mxu0 0.0
    %2352 = vmatpush2.msra.mxu0 0.0
    %2353 = vmatprep.subr.mxu0 0.0
    %2354 = vmatpush2.msra.mxu0 0.0
    %2355 = vmatprep.subr.mxu0 0.0
    %2356 = vmatpush2.msra.mxu0 0.0
    %2357 = vmatprep.subr.mxu0 0.0
    %2358 = vmatpush2.msra.mxu0 0.0
    %2359 = vmatprep.subr.mxu0 0.0
    %2360 = vmatpush2.msra.mxu0 0.0
    %2361 = vmatprep.subr.mxu0 0.0
    %2362 = vmatpush2.msra.mxu0 0.0
    %2363 = vmatprep.subr.mxu0 0.0
    %2364 = vmatpush2.msra.mxu0 0.0
    %2365 = vmatprep.subr.mxu0 0.0
    %2366 = vmatpush2.msra.mxu0 0.0
    %2367 = vmatprep.mubr.f32.mxu0 0.0
    %v2368 = vand.u32 %v1913, 4294901760
    %2369 = vmatmul.mubr.f32.gmra.mxu0 %v2368
    %v2370 = vpop.f32.mrf.mxu0
    %v2371 = vadd.f32 %v2298, %v2370
    %v2372 = vpop.f32.mrf.mxu0
    %2373 = vdwg.mxu0
    %2375 = vrot.lane.b32.xlu0 %v2371, 32
    %v2376 = vpop.permute.xlu0 %2375
    %vm2378 = vcmask 326912
    %2379 = vst.msk [vmem:[#allocation2] sm:$0xff] %vm2378, %v2376
    %2380 = vrot.lane.b32.xlu0 %v1911, 96
    %v2381 = vpop.permute.xlu0 %2380
    %v2382 = vsel %vm26, %v2381, 0
    %2384 = vmatprep.subr.mxu0 0.0
    %2385 = vmatpush1.msra.mxu0 0.0
    %2386 = vmatprep.subr.mxu0 0.0
    %2387 = vmatpush1.msra.mxu0 0.0
    %2388 = vmatprep.subr.mxu0 0.0
    %2389 = vmatpush1.msra.mxu0 0.0
    %2390 = vmatprep.subr.mxu0 0.0
    %2391 = vmatpush1.msra.mxu0 0.0
    %2392 = vmatprep.subr.mxu0 0.0
    %2393 = vmatpush1.msra.mxu0 0.0
    %2394 = vmatprep.subr.mxu0 0.0
    %2395 = vmatpush1.msra.mxu0 0.0
    %2396 = vmatprep.subr.mxu0 0.0
    %2397 = vmatpush1.msra.mxu0 0.0
    %2398 = vmatprep.subr.mxu0 0.0
    %2399 = vmatpush1.msra.mxu0 0.0
    %2400 = vmatprep.subr.mxu0 0.0
    %2401 = vmatpush1.msra.mxu0 0.0
    %2402 = vmatprep.subr.mxu0 0.0
    %2403 = vmatpush1.msra.mxu0 0.0
    %2404 = vmatprep.subr.mxu0 0.0
    %2405 = vmatpush1.msra.mxu0 0.0
    %2406 = vmatprep.subr.mxu0 0.0
    %2407 = vmatpush1.msra.mxu0 0.0
    %2408 = vmatprep.subr.mxu0 0.0
    %2409 = vmatpush1.msra.mxu0 0.0
    %2410 = vmatprep.subr.mxu0 0.0
    %2411 = vmatpush1.msra.mxu0 0.0
    %2412 = vmatprep.subr.mxu0 0.0
    %v2413 = vand.u32 %v32, 4294901760
    %2414 = vmatpush1.msra.mxu0 %v2413
    %2415 = vmatprep.subr.mxu0 0.0
    %v2416 = vand.u32 %v12, 4294901760
    %2417 = vmatpush1.msra.mxu0 %v2416
    %2418 = vmatprep.subr.mxu0 0.0
    %2419 = vmatpush2.msra.mxu0 0.0
    %2420 = vmatprep.subr.mxu0 0.0
    %2421 = vmatpush2.msra.mxu0 0.0
    %2422 = vmatprep.subr.mxu0 0.0
    %2423 = vmatpush2.msra.mxu0 0.0
    %2424 = vmatprep.subr.mxu0 0.0
    %2425 = vmatpush2.msra.mxu0 0.0
    %2426 = vmatprep.subr.mxu0 0.0
    %2427 = vmatpush2.msra.mxu0 0.0
    %2428 = vmatprep.subr.mxu0 0.0
    %2429 = vmatpush2.msra.mxu0 0.0
    %2430 = vmatprep.subr.mxu0 0.0
    %2431 = vmatpush2.msra.mxu0 0.0
    %2432 = vmatprep.subr.mxu0 0.0
    %2433 = vmatpush2.msra.mxu0 0.0
    %2434 = vmatprep.subr.mxu0 0.0
    %2435 = vmatpush2.msra.mxu0 0.0
    %2436 = vmatprep.subr.mxu0 0.0
    %2437 = vmatpush2.msra.mxu0 0.0
    %2438 = vmatprep.subr.mxu0 0.0
    %2439 = vmatpush2.msra.mxu0 0.0
    %2440 = vmatprep.subr.mxu0 0.0
    %2441 = vmatpush2.msra.mxu0 0.0
    %2442 = vmatprep.subr.mxu0 0.0
    %2443 = vmatpush2.msra.mxu0 0.0
    %2444 = vmatprep.subr.mxu0 0.0
    %2445 = vmatpush2.msra.mxu0 0.0
    %2446 = vmatprep.subr.mxu0 0.0
    %2447 = vmatpush2.msra.mxu0 0.0
    %2448 = vmatprep.subr.mxu0 0.0
    %2449 = vmatpush2.msra.mxu0 0.0
    %2450 = vmatprep.mubr.f32.mxu0 0.0
    %v2451 = vand.u32 %v2382, 4294901760
    %v2452 = vsub.f32 %v2382, %v2451
    %v2453 = vand.u32 %v2452, 4294901760
    %v2454 = vsub.f32 %v2452, %v2453
    %v2455 = vand.u32 %v2454, 4294901760
    %2456 = vmatmul.mubr.f32.gmra.mxu0 %v2455
    %v2457 = vpop.f32.mrf.mxu0
    %v2458 = vadd.f32 0.0, %v2457
    %v2459 = vpop.f32.mrf.mxu0
    %2460 = vdwg.mxu0
    %2461 = vmatprep.subr.mxu0 0.0
    %2462 = vmatpush1.msra.mxu0 0.0
    %2463 = vmatprep.subr.mxu0 0.0
    %2464 = vmatpush1.msra.mxu0 0.0
    %2465 = vmatprep.subr.mxu0 0.0
    %2466 = vmatpush1.msra.mxu0 0.0
    %2467 = vmatprep.subr.mxu0 0.0
    %2468 = vmatpush1.msra.mxu0 0.0
    %2469 = vmatprep.subr.mxu0 0.0
    %2470 = vmatpush1.msra.mxu0 0.0
    %2471 = vmatprep.subr.mxu0 0.0
    %2472 = vmatpush1.msra.mxu0 0.0
    %2473 = vmatprep.subr.mxu0 0.0
    %2474 = vmatpush1.msra.mxu0 0.0
    %2475 = vmatprep.subr.mxu0 0.0
    %2476 = vmatpush1.msra.mxu0 0.0
    %2477 = vmatprep.subr.mxu0 0.0
    %2478 = vmatpush1.msra.mxu0 0.0
    %2479 = vmatprep.subr.mxu0 0.0
    %2480 = vmatpush1.msra.mxu0 0.0
    %2481 = vmatprep.subr.mxu0 0.0
    %2482 = vmatpush1.msra.mxu0 0.0
    %2483 = vmatprep.subr.mxu0 0.0
    %2484 = vmatpush1.msra.mxu0 0.0
    %2485 = vmatprep.subr.mxu0 0.0
    %2486 = vmatpush1.msra.mxu0 0.0
    %2487 = vmatprep.subr.mxu0 0.0
    %2488 = vmatpush1.msra.mxu0 0.0
    %2489 = vmatprep.subr.mxu0 0.0
    %v2490 = vand.u32 %v32, 4294901760
    %v2491 = vsub.f32 %v32, %v2490
    %v2492 = vand.u32 %v2491, 4294901760
    %v2493 = vsub.f32 %v2491, %v2492
    %v2494 = vand.u32 %v2493, 4294901760
    %2495 = vmatpush1.msra.mxu0 %v2494
    %2496 = vmatprep.subr.mxu0 0.0
    %v2497 = vand.u32 %v12, 4294901760
    %v2498 = vsub.f32 %v12, %v2497
    %v2499 = vand.u32 %v2498, 4294901760
    %v2500 = vsub.f32 %v2498, %v2499
    %v2501 = vand.u32 %v2500, 4294901760
    %2502 = vmatpush1.msra.mxu0 %v2501
    %2503 = vmatprep.subr.mxu0 0.0
    %2504 = vmatpush2.msra.mxu0 0.0
    %2505 = vmatprep.subr.mxu0 0.0
    %2506 = vmatpush2.msra.mxu0 0.0
    %2507 = vmatprep.subr.mxu0 0.0
    %2508 = vmatpush2.msra.mxu0 0.0
    %2509 = vmatprep.subr.mxu0 0.0
    %2510 = vmatpush2.msra.mxu0 0.0
    %2511 = vmatprep.subr.mxu0 0.0
    %2512 = vmatpush2.msra.mxu0 0.0
    %2513 = vmatprep.subr.mxu0 0.0
    %2514 = vmatpush2.msra.mxu0 0.0
    %2515 = vmatprep.subr.mxu0 0.0
    %2516 = vmatpush2.msra.mxu0 0.0
    %2517 = vmatprep.subr.mxu0 0.0
    %2518 = vmatpush2.msra.mxu0 0.0
    %2519 = vmatprep.subr.mxu0 0.0
    %2520 = vmatpush2.msra.mxu0 0.0
    %2521 = vmatprep.subr.mxu0 0.0
    %2522 = vmatpush2.msra.mxu0 0.0
    %2523 = vmatprep.subr.mxu0 0.0
    %2524 = vmatpush2.msra.mxu0 0.0
    %2525 = vmatprep.subr.mxu0 0.0
    %2526 = vmatpush2.msra.mxu0 0.0
    %2527 = vmatprep.subr.mxu0 0.0
    %2528 = vmatpush2.msra.mxu0 0.0
    %2529 = vmatprep.subr.mxu0 0.0
    %2530 = vmatpush2.msra.mxu0 0.0
    %2531 = vmatprep.subr.mxu0 0.0
    %2532 = vmatpush2.msra.mxu0 0.0
    %2533 = vmatprep.subr.mxu0 0.0
    %2534 = vmatpush2.msra.mxu0 0.0
    %2535 = vmatprep.mubr.f32.mxu0 0.0
    %v2536 = vand.u32 %v2382, 4294901760
    %2537 = vmatmul.mubr.f32.gmra.mxu0 %v2536
    %v2538 = vpop.f32.mrf.mxu0
    %v2539 = vadd.f32 %v2458, %v2538
    %v2540 = vpop.f32.mrf.mxu0
    %2541 = vdwg.mxu0
    %2542 = vmatprep.subr.mxu0 0.0
    %2543 = vmatpush1.msra.mxu0 0.0
    %2544 = vmatprep.subr.mxu0 0.0
    %2545 = vmatpush1.msra.mxu0 0.0
    %2546 = vmatprep.subr.mxu0 0.0
    %2547 = vmatpush1.msra.mxu0 0.0
    %2548 = vmatprep.subr.mxu0 0.0
    %2549 = vmatpush1.msra.mxu0 0.0
    %2550 = vmatprep.subr.mxu0 0.0
    %2551 = vmatpush1.msra.mxu0 0.0
    %2552 = vmatprep.subr.mxu0 0.0
    %2553 = vmatpush1.msra.mxu0 0.0
    %2554 = vmatprep.subr.mxu0 0.0
    %2555 = vmatpush1.msra.mxu0 0.0
    %2556 = vmatprep.subr.mxu0 0.0
    %2557 = vmatpush1.msra.mxu0 0.0
    %2558 = vmatprep.subr.mxu0 0.0
    %2559 = vmatpush1.msra.mxu0 0.0
    %2560 = vmatprep.subr.mxu0 0.0
    %2561 = vmatpush1.msra.mxu0 0.0
    %2562 = vmatprep.subr.mxu0 0.0
    %2563 = vmatpush1.msra.mxu0 0.0
    %2564 = vmatprep.subr.mxu0 0.0
    %2565 = vmatpush1.msra.mxu0 0.0
    %2566 = vmatprep.subr.mxu0 0.0
    %2567 = vmatpush1.msra.mxu0 0.0
    %2568 = vmatprep.subr.mxu0 0.0
    %2569 = vmatpush1.msra.mxu0 0.0
    %2570 = vmatprep.subr.mxu0 0.0
    %v2571 = vand.u32 %v32, 4294901760
    %v2572 = vsub.f32 %v32, %v2571
    %2573 = vmatpush1.msra.mxu0 %v2572
    %2574 = vmatprep.subr.mxu0 0.0
    %v2575 = vand.u32 %v12, 4294901760
    %v2576 = vsub.f32 %v12, %v2575
    %2577 = vmatpush1.msra.mxu0 %v2576
    %2578 = vmatprep.subr.mxu0 0.0
    %2579 = vmatpush2.msra.mxu0 0.0
    %2580 = vmatprep.subr.mxu0 0.0
    %2581 = vmatpush2.msra.mxu0 0.0
    %2582 = vmatprep.subr.mxu0 0.0
    %2583 = vmatpush2.msra.mxu0 0.0
    %2584 = vmatprep.subr.mxu0 0.0
    %2585 = vmatpush2.msra.mxu0 0.0
    %2586 = vmatprep.subr.mxu0 0.0
    %2587 = vmatpush2.msra.mxu0 0.0
    %2588 = vmatprep.subr.mxu0 0.0
    %2589 = vmatpush2.msra.mxu0 0.0
    %2590 = vmatprep.subr.mxu0 0.0
    %2591 = vmatpush2.msra.mxu0 0.0
    %2592 = vmatprep.subr.mxu0 0.0
    %2593 = vmatpush2.msra.mxu0 0.0
    %2594 = vmatprep.subr.mxu0 0.0
    %2595 = vmatpush2.msra.mxu0 0.0
    %2596 = vmatprep.subr.mxu0 0.0
    %2597 = vmatpush2.msra.mxu0 0.0
    %2598 = vmatprep.subr.mxu0 0.0
    %2599 = vmatpush2.msra.mxu0 0.0
    %2600 = vmatprep.subr.mxu0 0.0
    %2601 = vmatpush2.msra.mxu0 0.0
    %2602 = vmatprep.subr.mxu0 0.0
    %2603 = vmatpush2.msra.mxu0 0.0
    %2604 = vmatprep.subr.mxu0 0.0
    %2605 = vmatpush2.msra.mxu0 0.0
    %2606 = vmatprep.subr.mxu0 0.0
    %2607 = vmatpush2.msra.mxu0 0.0
    %2608 = vmatprep.subr.mxu0 0.0
    %2609 = vmatpush2.msra.mxu0 0.0
    %2610 = vmatprep.mubr.f32.mxu0 0.0
    %v2611 = vand.u32 %v2382, 4294901760
    %v2612 = vsub.f32 %v2382, %v2611
    %2613 = vmatmul.mubr.f32.gmra.mxu0 %v2612
    %v2614 = vpop.f32.mrf.mxu0
    %v2615 = vadd.f32 %v2539, %v2614
    %v2616 = vpop.f32.mrf.mxu0
    %2617 = vdwg.mxu0
    %2618 = vmatprep.subr.mxu0 0.0
    %2619 = vmatpush1.msra.mxu0 0.0
    %2620 = vmatprep.subr.mxu0 0.0
    %2621 = vmatpush1.msra.mxu0 0.0
    %2622 = vmatprep.subr.mxu0 0.0
    %2623 = vmatpush1.msra.mxu0 0.0
    %2624 = vmatprep.subr.mxu0 0.0
    %2625 = vmatpush1.msra.mxu0 0.0
    %2626 = vmatprep.subr.mxu0 0.0
    %2627 = vmatpush1.msra.mxu0 0.0
    %2628 = vmatprep.subr.mxu0 0.0
    %2629 = vmatpush1.msra.mxu0 0.0
    %2630 = vmatprep.subr.mxu0 0.0
    %2631 = vmatpush1.msra.mxu0 0.0
    %2632 = vmatprep.subr.mxu0 0.0
    %2633 = vmatpush1.msra.mxu0 0.0
    %2634 = vmatprep.subr.mxu0 0.0
    %2635 = vmatpush1.msra.mxu0 0.0
    %2636 = vmatprep.subr.mxu0 0.0
    %2637 = vmatpush1.msra.mxu0 0.0
    %2638 = vmatprep.subr.mxu0 0.0
    %2639 = vmatpush1.msra.mxu0 0.0
    %2640 = vmatprep.subr.mxu0 0.0
    %2641 = vmatpush1.msra.mxu0 0.0
    %2642 = vmatprep.subr.mxu0 0.0
    %2643 = vmatpush1.msra.mxu0 0.0
    %2644 = vmatprep.subr.mxu0 0.0
    %2645 = vmatpush1.msra.mxu0 0.0
    %2646 = vmatprep.subr.mxu0 0.0
    %v2647 = vand.u32 %v32, 4294901760
    %2648 = vmatpush1.msra.mxu0 %v2647
    %2649 = vmatprep.subr.mxu0 0.0
    %v2650 = vand.u32 %v12, 4294901760
    %2651 = vmatpush1.msra.mxu0 %v2650
    %2652 = vmatprep.subr.mxu0 0.0
    %2653 = vmatpush2.msra.mxu0 0.0
    %2654 = vmatprep.subr.mxu0 0.0
    %2655 = vmatpush2.msra.mxu0 0.0
    %2656 = vmatprep.subr.mxu0 0.0
    %2657 = vmatpush2.msra.mxu0 0.0
    %2658 = vmatprep.subr.mxu0 0.0
    %2659 = vmatpush2.msra.mxu0 0.0
    %2660 = vmatprep.subr.mxu0 0.0
    %2661 = vmatpush2.msra.mxu0 0.0
    %2662 = vmatprep.subr.mxu0 0.0
    %2663 = vmatpush2.msra.mxu0 0.0
    %2664 = vmatprep.subr.mxu0 0.0
    %2665 = vmatpush2.msra.mxu0 0.0
    %2666 = vmatprep.subr.mxu0 0.0
    %2667 = vmatpush2.msra.mxu0 0.0
    %2668 = vmatprep.subr.mxu0 0.0
    %2669 = vmatpush2.msra.mxu0 0.0
    %2670 = vmatprep.subr.mxu0 0.0
    %2671 = vmatpush2.msra.mxu0 0.0
    %2672 = vmatprep.subr.mxu0 0.0
    %2673 = vmatpush2.msra.mxu0 0.0
    %2674 = vmatprep.subr.mxu0 0.0
    %2675 = vmatpush2.msra.mxu0 0.0
    %2676 = vmatprep.subr.mxu0 0.0
    %2677 = vmatpush2.msra.mxu0 0.0
    %2678 = vmatprep.subr.mxu0 0.0
    %2679 = vmatpush2.msra.mxu0 0.0
    %2680 = vmatprep.subr.mxu0 0.0
    %2681 = vmatpush2.msra.mxu0 0.0
    %2682 = vmatprep.subr.mxu0 0.0
    %2683 = vmatpush2.msra.mxu0 0.0
    %2684 = vmatprep.mubr.f32.mxu0 0.0
    %v2685 = vand.u32 %v2382, 4294901760
    %v2686 = vsub.f32 %v2382, %v2685
    %v2687 = vand.u32 %v2686, 4294901760
    %2688 = vmatmul.mubr.f32.gmra.mxu0 %v2687
    %v2689 = vpop.f32.mrf.mxu0
    %v2690 = vadd.f32 %v2615, %v2689
    %v2691 = vpop.f32.mrf.mxu0
    %2692 = vdwg.mxu0
    %2693 = vmatprep.subr.mxu0 0.0
    %2694 = vmatpush1.msra.mxu0 0.0
    %2695 = vmatprep.subr.mxu0 0.0
    %2696 = vmatpush1.msra.mxu0 0.0
    %2697 = vmatprep.subr.mxu0 0.0
    %2698 = vmatpush1.msra.mxu0 0.0
    %2699 = vmatprep.subr.mxu0 0.0
    %2700 = vmatpush1.msra.mxu0 0.0
    %2701 = vmatprep.subr.mxu0 0.0
    %2702 = vmatpush1.msra.mxu0 0.0
    %2703 = vmatprep.subr.mxu0 0.0
    %2704 = vmatpush1.msra.mxu0 0.0
    %2705 = vmatprep.subr.mxu0 0.0
    %2706 = vmatpush1.msra.mxu0 0.0
    %2707 = vmatprep.subr.mxu0 0.0
    %2708 = vmatpush1.msra.mxu0 0.0
    %2709 = vmatprep.subr.mxu0 0.0
    %2710 = vmatpush1.msra.mxu0 0.0
    %2711 = vmatprep.subr.mxu0 0.0
    %2712 = vmatpush1.msra.mxu0 0.0
    %2713 = vmatprep.subr.mxu0 0.0
    %2714 = vmatpush1.msra.mxu0 0.0
    %2715 = vmatprep.subr.mxu0 0.0
    %2716 = vmatpush1.msra.mxu0 0.0
    %2717 = vmatprep.subr.mxu0 0.0
    %2718 = vmatpush1.msra.mxu0 0.0
    %2719 = vmatprep.subr.mxu0 0.0
    %2720 = vmatpush1.msra.mxu0 0.0
    %2721 = vmatprep.subr.mxu0 0.0
    %v2722 = vand.u32 %v32, 4294901760
    %v2723 = vsub.f32 %v32, %v2722
    %v2724 = vand.u32 %v2723, 4294901760
    %2725 = vmatpush1.msra.mxu0 %v2724
    %2726 = vmatprep.subr.mxu0 0.0
    %v2727 = vand.u32 %v12, 4294901760
    %v2728 = vsub.f32 %v12, %v2727
    %v2729 = vand.u32 %v2728, 4294901760
    %2730 = vmatpush1.msra.mxu0 %v2729
    %2731 = vmatprep.subr.mxu0 0.0
    %2732 = vmatpush2.msra.mxu0 0.0
    %2733 = vmatprep.subr.mxu0 0.0
    %2734 = vmatpush2.msra.mxu0 0.0
    %2735 = vmatprep.subr.mxu0 0.0
    %2736 = vmatpush2.msra.mxu0 0.0
    %2737 = vmatprep.subr.mxu0 0.0
    %2738 = vmatpush2.msra.mxu0 0.0
    %2739 = vmatprep.subr.mxu0 0.0
    %2740 = vmatpush2.msra.mxu0 0.0
    %2741 = vmatprep.subr.mxu0 0.0
    %2742 = vmatpush2.msra.mxu0 0.0
    %2743 = vmatprep.subr.mxu0 0.0
    %2744 = vmatpush2.msra.mxu0 0.0
    %2745 = vmatprep.subr.mxu0 0.0
    %2746 = vmatpush2.msra.mxu0 0.0
    %2747 = vmatprep.subr.mxu0 0.0
    %2748 = vmatpush2.msra.mxu0 0.0
    %2749 = vmatprep.subr.mxu0 0.0
    %2750 = vmatpush2.msra.mxu0 0.0
    %2751 = vmatprep.subr.mxu0 0.0
    %2752 = vmatpush2.msra.mxu0 0.0
    %2753 = vmatprep.subr.mxu0 0.0
    %2754 = vmatpush2.msra.mxu0 0.0
    %2755 = vmatprep.subr.mxu0 0.0
    %2756 = vmatpush2.msra.mxu0 0.0
    %2757 = vmatprep.subr.mxu0 0.0
    %2758 = vmatpush2.msra.mxu0 0.0
    %2759 = vmatprep.subr.mxu0 0.0
    %2760 = vmatpush2.msra.mxu0 0.0
    %2761 = vmatprep.subr.mxu0 0.0
    %2762 = vmatpush2.msra.mxu0 0.0
    %2763 = vmatprep.mubr.f32.mxu0 0.0
    %v2764 = vand.u32 %v2382, 4294901760
    %2765 = vmatmul.mubr.f32.gmra.mxu0 %v2764
    %v2766 = vpop.f32.mrf.mxu0
    %v2767 = vadd.f32 %v2690, %v2766
    %v2768 = vpop.f32.mrf.mxu0
    %2769 = vdwg.mxu0
    %2770 = vmatprep.subr.mxu0 0.0
    %2771 = vmatpush1.msra.mxu0 0.0
    %2772 = vmatprep.subr.mxu0 0.0
    %2773 = vmatpush1.msra.mxu0 0.0
    %2774 = vmatprep.subr.mxu0 0.0
    %2775 = vmatpush1.msra.mxu0 0.0
    %2776 = vmatprep.subr.mxu0 0.0
    %2777 = vmatpush1.msra.mxu0 0.0
    %2778 = vmatprep.subr.mxu0 0.0
    %2779 = vmatpush1.msra.mxu0 0.0
    %2780 = vmatprep.subr.mxu0 0.0
    %2781 = vmatpush1.msra.mxu0 0.0
    %2782 = vmatprep.subr.mxu0 0.0
    %2783 = vmatpush1.msra.mxu0 0.0
    %2784 = vmatprep.subr.mxu0 0.0
    %2785 = vmatpush1.msra.mxu0 0.0
    %2786 = vmatprep.subr.mxu0 0.0
    %2787 = vmatpush1.msra.mxu0 0.0
    %2788 = vmatprep.subr.mxu0 0.0
    %2789 = vmatpush1.msra.mxu0 0.0
    %2790 = vmatprep.subr.mxu0 0.0
    %2791 = vmatpush1.msra.mxu0 0.0
    %2792 = vmatprep.subr.mxu0 0.0
    %2793 = vmatpush1.msra.mxu0 0.0
    %2794 = vmatprep.subr.mxu0 0.0
    %2795 = vmatpush1.msra.mxu0 0.0
    %2796 = vmatprep.subr.mxu0 0.0
    %2797 = vmatpush1.msra.mxu0 0.0
    %2798 = vmatprep.subr.mxu0 0.0
    %v2799 = vand.u32 %v32, 4294901760
    %2800 = vmatpush1.msra.mxu0 %v2799
    %2801 = vmatprep.subr.mxu0 0.0
    %v2802 = vand.u32 %v12, 4294901760
    %2803 = vmatpush1.msra.mxu0 %v2802
    %2804 = vmatprep.subr.mxu0 0.0
    %2805 = vmatpush2.msra.mxu0 0.0
    %2806 = vmatprep.subr.mxu0 0.0
    %2807 = vmatpush2.msra.mxu0 0.0
    %2808 = vmatprep.subr.mxu0 0.0
    %2809 = vmatpush2.msra.mxu0 0.0
    %2810 = vmatprep.subr.mxu0 0.0
    %2811 = vmatpush2.msra.mxu0 0.0
    %2812 = vmatprep.subr.mxu0 0.0
    %2813 = vmatpush2.msra.mxu0 0.0
    %2814 = vmatprep.subr.mxu0 0.0
    %2815 = vmatpush2.msra.mxu0 0.0
    %2816 = vmatprep.subr.mxu0 0.0
    %2817 = vmatpush2.msra.mxu0 0.0
    %2818 = vmatprep.subr.mxu0 0.0
    %2819 = vmatpush2.msra.mxu0 0.0
    %2820 = vmatprep.subr.mxu0 0.0
    %2821 = vmatpush2.msra.mxu0 0.0
    %2822 = vmatprep.subr.mxu0 0.0
    %2823 = vmatpush2.msra.mxu0 0.0
    %2824 = vmatprep.subr.mxu0 0.0
    %2825 = vmatpush2.msra.mxu0 0.0
    %2826 = vmatprep.subr.mxu0 0.0
    %2827 = vmatpush2.msra.mxu0 0.0
    %2828 = vmatprep.subr.mxu0 0.0
    %2829 = vmatpush2.msra.mxu0 0.0
    %2830 = vmatprep.subr.mxu0 0.0
    %2831 = vmatpush2.msra.mxu0 0.0
    %2832 = vmatprep.subr.mxu0 0.0
    %2833 = vmatpush2.msra.mxu0 0.0
    %2834 = vmatprep.subr.mxu0 0.0
    %2835 = vmatpush2.msra.mxu0 0.0
    %2836 = vmatprep.mubr.f32.mxu0 0.0
    %v2837 = vand.u32 %v2382, 4294901760
    %2838 = vmatmul.mubr.f32.gmra.mxu0 %v2837
    %v2839 = vpop.f32.mrf.mxu0
    %v2840 = vadd.f32 %v2767, %v2839
    %v2841 = vpop.f32.mrf.mxu0
    %2842 = vdwg.mxu0
    %2844 = vrot.lane.b32.xlu0 %v2840, 40
    %v2845 = vpop.permute.xlu0 %2844
    %vm2847 = vcmask 392512
    %2848 = vst.msk [vmem:[#allocation2] sm:$0xff] %vm2847, %v2845
    %2849 = vrot.lane.b32.xlu0 %v1911, 64
    %v2850 = vpop.permute.xlu0 %2849
    %v2851 = vsel %vm26, %v2850, 0
    %2853 = vmatprep.subr.mxu0 0.0
    %2854 = vmatpush1.msra.mxu0 0.0
    %2855 = vmatprep.subr.mxu0 0.0
    %2856 = vmatpush1.msra.mxu0 0.0
    %2857 = vmatprep.subr.mxu0 0.0
    %2858 = vmatpush1.msra.mxu0 0.0
    %2859 = vmatprep.subr.mxu0 0.0
    %2860 = vmatpush1.msra.mxu0 0.0
    %2861 = vmatprep.subr.mxu0 0.0
    %2862 = vmatpush1.msra.mxu0 0.0
    %2863 = vmatprep.subr.mxu0 0.0
    %2864 = vmatpush1.msra.mxu0 0.0
    %2865 = vmatprep.subr.mxu0 0.0
    %2866 = vmatpush1.msra.mxu0 0.0
    %2867 = vmatprep.subr.mxu0 0.0
    %2868 = vmatpush1.msra.mxu0 0.0
    %2869 = vmatprep.subr.mxu0 0.0
    %2870 = vmatpush1.msra.mxu0 0.0
    %2871 = vmatprep.subr.mxu0 0.0
    %2872 = vmatpush1.msra.mxu0 0.0
    %2873 = vmatprep.subr.mxu0 0.0
    %2874 = vmatpush1.msra.mxu0 0.0
    %2875 = vmatprep.subr.mxu0 0.0
    %2876 = vmatpush1.msra.mxu0 0.0
    %2877 = vmatprep.subr.mxu0 0.0
    %2878 = vmatpush1.msra.mxu0 0.0
    %2879 = vmatprep.subr.mxu0 0.0
    %2880 = vmatpush1.msra.mxu0 0.0
    %2881 = vmatprep.subr.mxu0 0.0
    %v2882 = vand.u32 %v32, 4294901760
    %2883 = vmatpush1.msra.mxu0 %v2882
    %2884 = vmatprep.subr.mxu0 0.0
    %v2885 = vand.u32 %v12, 4294901760
    %2886 = vmatpush1.msra.mxu0 %v2885
    %2887 = vmatprep.subr.mxu0 0.0
    %2888 = vmatpush2.msra.mxu0 0.0
    %2889 = vmatprep.subr.mxu0 0.0
    %2890 = vmatpush2.msra.mxu0 0.0
    %2891 = vmatprep.subr.mxu0 0.0
    %2892 = vmatpush2.msra.mxu0 0.0
    %2893 = vmatprep.subr.mxu0 0.0
    %2894 = vmatpush2.msra.mxu0 0.0
    %2895 = vmatprep.subr.mxu0 0.0
    %2896 = vmatpush2.msra.mxu0 0.0
    %2897 = vmatprep.subr.mxu0 0.0
    %2898 = vmatpush2.msra.mxu0 0.0
    %2899 = vmatprep.subr.mxu0 0.0
    %2900 = vmatpush2.msra.mxu0 0.0
    %2901 = vmatprep.subr.mxu0 0.0
    %2902 = vmatpush2.msra.mxu0 0.0
    %2903 = vmatprep.subr.mxu0 0.0
    %2904 = vmatpush2.msra.mxu0 0.0
    %2905 = vmatprep.subr.mxu0 0.0
    %2906 = vmatpush2.msra.mxu0 0.0
    %2907 = vmatprep.subr.mxu0 0.0
    %2908 = vmatpush2.msra.mxu0 0.0
    %2909 = vmatprep.subr.mxu0 0.0
    %2910 = vmatpush2.msra.mxu0 0.0
    %2911 = vmatprep.subr.mxu0 0.0
    %2912 = vmatpush2.msra.mxu0 0.0
    %2913 = vmatprep.subr.mxu0 0.0
    %2914 = vmatpush2.msra.mxu0 0.0
    %2915 = vmatprep.subr.mxu0 0.0
    %2916 = vmatpush2.msra.mxu0 0.0
    %2917 = vmatprep.subr.mxu0 0.0
    %2918 = vmatpush2.msra.mxu0 0.0
    %2919 = vmatprep.mubr.f32.mxu0 0.0
    %v2920 = vand.u32 %v2851, 4294901760
    %v2921 = vsub.f32 %v2851, %v2920
    %v2922 = vand.u32 %v2921, 4294901760
    %v2923 = vsub.f32 %v2921, %v2922
    %v2924 = vand.u32 %v2923, 4294901760
    %2925 = vmatmul.mubr.f32.gmra.mxu0 %v2924
    %v2926 = vpop.f32.mrf.mxu0
    %v2927 = vadd.f32 0.0, %v2926
    %v2928 = vpop.f32.mrf.mxu0
    %2929 = vdwg.mxu0
    %2930 = vmatprep.subr.mxu0 0.0
    %2931 = vmatpush1.msra.mxu0 0.0
    %2932 = vmatprep.subr.mxu0 0.0
    %2933 = vmatpush1.msra.mxu0 0.0
    %2934 = vmatprep.subr.mxu0 0.0
    %2935 = vmatpush1.msra.mxu0 0.0
    %2936 = vmatprep.subr.mxu0 0.0
    %2937 = vmatpush1.msra.mxu0 0.0
    %2938 = vmatprep.subr.mxu0 0.0
    %2939 = vmatpush1.msra.mxu0 0.0
    %2940 = vmatprep.subr.mxu0 0.0
    %2941 = vmatpush1.msra.mxu0 0.0
    %2942 = vmatprep.subr.mxu0 0.0
    %2943 = vmatpush1.msra.mxu0 0.0
    %2944 = vmatprep.subr.mxu0 0.0
    %2945 = vmatpush1.msra.mxu0 0.0
    %2946 = vmatprep.subr.mxu0 0.0
    %2947 = vmatpush1.msra.mxu0 0.0
    %2948 = vmatprep.subr.mxu0 0.0
    %2949 = vmatpush1.msra.mxu0 0.0
    %2950 = vmatprep.subr.mxu0 0.0
    %2951 = vmatpush1.msra.mxu0 0.0
    %2952 = vmatprep.subr.mxu0 0.0
    %2953 = vmatpush1.msra.mxu0 0.0
    %2954 = vmatprep.subr.mxu0 0.0
    %2955 = vmatpush1.msra.mxu0 0.0
    %2956 = vmatprep.subr.mxu0 0.0
    %2957 = vmatpush1.msra.mxu0 0.0
    %2958 = vmatprep.subr.mxu0 0.0
    %v2959 = vand.u32 %v32, 4294901760
    %v2960 = vsub.f32 %v32, %v2959
    %v2961 = vand.u32 %v2960, 4294901760
    %v2962 = vsub.f32 %v2960, %v2961
    %v2963 = vand.u32 %v2962, 4294901760
    %2964 = vmatpush1.msra.mxu0 %v2963
    %2965 = vmatprep.subr.mxu0 0.0
    %v2966 = vand.u32 %v12, 4294901760
    %v2967 = vsub.f32 %v12, %v2966
    %v2968 = vand.u32 %v2967, 4294901760
    %v2969 = vsub.f32 %v2967, %v2968
    %v2970 = vand.u32 %v2969, 4294901760
    %2971 = vmatpush1.msra.mxu0 %v2970
    %2972 = vmatprep.subr.mxu0 0.0
    %2973 = vmatpush2.msra.mxu0 0.0
    %2974 = vmatprep.subr.mxu0 0.0
    %2975 = vmatpush2.msra.mxu0 0.0
    %2976 = vmatprep.subr.mxu0 0.0
    %2977 = vmatpush2.msra.mxu0 0.0
    %2978 = vmatprep.subr.mxu0 0.0
    %2979 = vmatpush2.msra.mxu0 0.0
    %2980 = vmatprep.subr.mxu0 0.0
    %2981 = vmatpush2.msra.mxu0 0.0
    %2982 = vmatprep.subr.mxu0 0.0
    %2983 = vmatpush2.msra.mxu0 0.0
    %2984 = vmatprep.subr.mxu0 0.0
    %2985 = vmatpush2.msra.mxu0 0.0
    %2986 = vmatprep.subr.mxu0 0.0
    %2987 = vmatpush2.msra.mxu0 0.0
    %2988 = vmatprep.subr.mxu0 0.0
    %2989 = vmatpush2.msra.mxu0 0.0
    %2990 = vmatprep.subr.mxu0 0.0
    %2991 = vmatpush2.msra.mxu0 0.0
    %2992 = vmatprep.subr.mxu0 0.0
    %2993 = vmatpush2.msra.mxu0 0.0
    %2994 = vmatprep.subr.mxu0 0.0
    %2995 = vmatpush2.msra.mxu0 0.0
    %2996 = vmatprep.subr.mxu0 0.0
    %2997 = vmatpush2.msra.mxu0 0.0
    %2998 = vmatprep.subr.mxu0 0.0
    %2999 = vmatpush2.msra.mxu0 0.0
    %3000 = vmatprep.subr.mxu0 0.0
    %3001 = vmatpush2.msra.mxu0 0.0
    %3002 = vmatprep.subr.mxu0 0.0
    %3003 = vmatpush2.msra.mxu0 0.0
    %3004 = vmatprep.mubr.f32.mxu0 0.0
    %v3005 = vand.u32 %v2851, 4294901760
    %3006 = vmatmul.mubr.f32.gmra.mxu0 %v3005
    %v3007 = vpop.f32.mrf.mxu0
    %v3008 = vadd.f32 %v2927, %v3007
    %v3009 = vpop.f32.mrf.mxu0
    %3010 = vdwg.mxu0
    %3011 = vmatprep.subr.mxu0 0.0
    %3012 = vmatpush1.msra.mxu0 0.0
    %3013 = vmatprep.subr.mxu0 0.0
    %3014 = vmatpush1.msra.mxu0 0.0
    %3015 = vmatprep.subr.mxu0 0.0
    %3016 = vmatpush1.msra.mxu0 0.0
    %3017 = vmatprep.subr.mxu0 0.0
    %3018 = vmatpush1.msra.mxu0 0.0
    %3019 = vmatprep.subr.mxu0 0.0
    %3020 = vmatpush1.msra.mxu0 0.0
    %3021 = vmatprep.subr.mxu0 0.0
    %3022 = vmatpush1.msra.mxu0 0.0
    %3023 = vmatprep.subr.mxu0 0.0
    %3024 = vmatpush1.msra.mxu0 0.0
    %3025 = vmatprep.subr.mxu0 0.0
    %3026 = vmatpush1.msra.mxu0 0.0
    %3027 = vmatprep.subr.mxu0 0.0
    %3028 = vmatpush1.msra.mxu0 0.0
    %3029 = vmatprep.subr.mxu0 0.0
    %3030 = vmatpush1.msra.mxu0 0.0
    %3031 = vmatprep.subr.mxu0 0.0
    %3032 = vmatpush1.msra.mxu0 0.0
    %3033 = vmatprep.subr.mxu0 0.0
    %3034 = vmatpush1.msra.mxu0 0.0
    %3035 = vmatprep.subr.mxu0 0.0
    %3036 = vmatpush1.msra.mxu0 0.0
    %3037 = vmatprep.subr.mxu0 0.0
    %3038 = vmatpush1.msra.mxu0 0.0
    %3039 = vmatprep.subr.mxu0 0.0
    %v3040 = vand.u32 %v32, 4294901760
    %v3041 = vsub.f32 %v32, %v3040
    %3042 = vmatpush1.msra.mxu0 %v3041
    %3043 = vmatprep.subr.mxu0 0.0
    %v3044 = vand.u32 %v12, 4294901760
    %v3045 = vsub.f32 %v12, %v3044
    %3046 = vmatpush1.msra.mxu0 %v3045
    %3047 = vmatprep.subr.mxu0 0.0
    %3048 = vmatpush2.msra.mxu0 0.0
    %3049 = vmatprep.subr.mxu0 0.0
    %3050 = vmatpush2.msra.mxu0 0.0
    %3051 = vmatprep.subr.mxu0 0.0
    %3052 = vmatpush2.msra.mxu0 0.0
    %3053 = vmatprep.subr.mxu0 0.0
    %3054 = vmatpush2.msra.mxu0 0.0
    %3055 = vmatprep.subr.mxu0 0.0
    %3056 = vmatpush2.msra.mxu0 0.0
    %3057 = vmatprep.subr.mxu0 0.0
    %3058 = vmatpush2.msra.mxu0 0.0
    %3059 = vmatprep.subr.mxu0 0.0
    %3060 = vmatpush2.msra.mxu0 0.0
    %3061 = vmatprep.subr.mxu0 0.0
    %3062 = vmatpush2.msra.mxu0 0.0
    %3063 = vmatprep.subr.mxu0 0.0
    %3064 = vmatpush2.msra.mxu0 0.0
    %3065 = vmatprep.subr.mxu0 0.0
    %3066 = vmatpush2.msra.mxu0 0.0
    %3067 = vmatprep.subr.mxu0 0.0
    %3068 = vmatpush2.msra.mxu0 0.0
    %3069 = vmatprep.subr.mxu0 0.0
    %3070 = vmatpush2.msra.mxu0 0.0
    %3071 = vmatprep.subr.mxu0 0.0
    %3072 = vmatpush2.msra.mxu0 0.0
    %3073 = vmatprep.subr.mxu0 0.0
    %3074 = vmatpush2.msra.mxu0 0.0
    %3075 = vmatprep.subr.mxu0 0.0
    %3076 = vmatpush2.msra.mxu0 0.0
    %3077 = vmatprep.subr.mxu0 0.0
    %3078 = vmatpush2.msra.mxu0 0.0
    %3079 = vmatprep.mubr.f32.mxu0 0.0
    %v3080 = vand.u32 %v2851, 4294901760
    %v3081 = vsub.f32 %v2851, %v3080
    %3082 = vmatmul.mubr.f32.gmra.mxu0 %v3081
    %v3083 = vpop.f32.mrf.mxu0
    %v3084 = vadd.f32 %v3008, %v3083
    %v3085 = vpop.f32.mrf.mxu0
    %3086 = vdwg.mxu0
    %3087 = vmatprep.subr.mxu0 0.0
    %3088 = vmatpush1.msra.mxu0 0.0
    %3089 = vmatprep.subr.mxu0 0.0
    %3090 = vmatpush1.msra.mxu0 0.0
    %3091 = vmatprep.subr.mxu0 0.0
    %3092 = vmatpush1.msra.mxu0 0.0
    %3093 = vmatprep.subr.mxu0 0.0
    %3094 = vmatpush1.msra.mxu0 0.0
    %3095 = vmatprep.subr.mxu0 0.0
    %3096 = vmatpush1.msra.mxu0 0.0
    %3097 = vmatprep.subr.mxu0 0.0
    %3098 = vmatpush1.msra.mxu0 0.0
    %3099 = vmatprep.subr.mxu0 0.0
    %3100 = vmatpush1.msra.mxu0 0.0
    %3101 = vmatprep.subr.mxu0 0.0
    %3102 = vmatpush1.msra.mxu0 0.0
    %3103 = vmatprep.subr.mxu0 0.0
    %3104 = vmatpush1.msra.mxu0 0.0
    %3105 = vmatprep.subr.mxu0 0.0
    %3106 = vmatpush1.msra.mxu0 0.0
    %3107 = vmatprep.subr.mxu0 0.0
    %3108 = vmatpush1.msra.mxu0 0.0
    %3109 = vmatprep.subr.mxu0 0.0
    %3110 = vmatpush1.msra.mxu0 0.0
    %3111 = vmatprep.subr.mxu0 0.0
    %3112 = vmatpush1.msra.mxu0 0.0
    %3113 = vmatprep.subr.mxu0 0.0
    %3114 = vmatpush1.msra.mxu0 0.0
    %3115 = vmatprep.subr.mxu0 0.0
    %v3116 = vand.u32 %v32, 4294901760
    %3117 = vmatpush1.msra.mxu0 %v3116
    %3118 = vmatprep.subr.mxu0 0.0
    %v3119 = vand.u32 %v12, 4294901760
    %3120 = vmatpush1.msra.mxu0 %v3119
    %3121 = vmatprep.subr.mxu0 0.0
    %3122 = vmatpush2.msra.mxu0 0.0
    %3123 = vmatprep.subr.mxu0 0.0
    %3124 = vmatpush2.msra.mxu0 0.0
    %3125 = vmatprep.subr.mxu0 0.0
    %3126 = vmatpush2.msra.mxu0 0.0
    %3127 = vmatprep.subr.mxu0 0.0
    %3128 = vmatpush2.msra.mxu0 0.0
    %3129 = vmatprep.subr.mxu0 0.0
    %3130 = vmatpush2.msra.mxu0 0.0
    %3131 = vmatprep.subr.mxu0 0.0
    %3132 = vmatpush2.msra.mxu0 0.0
    %3133 = vmatprep.subr.mxu0 0.0
    %3134 = vmatpush2.msra.mxu0 0.0
    %3135 = vmatprep.subr.mxu0 0.0
    %3136 = vmatpush2.msra.mxu0 0.0
    %3137 = vmatprep.subr.mxu0 0.0
    %3138 = vmatpush2.msra.mxu0 0.0
    %3139 = vmatprep.subr.mxu0 0.0
    %3140 = vmatpush2.msra.mxu0 0.0
    %3141 = vmatprep.subr.mxu0 0.0
    %3142 = vmatpush2.msra.mxu0 0.0
    %3143 = vmatprep.subr.mxu0 0.0
    %3144 = vmatpush2.msra.mxu0 0.0
    %3145 = vmatprep.subr.mxu0 0.0
    %3146 = vmatpush2.msra.mxu0 0.0
    %3147 = vmatprep.subr.mxu0 0.0
    %3148 = vmatpush2.msra.mxu0 0.0
    %3149 = vmatprep.subr.mxu0 0.0
    %3150 = vmatpush2.msra.mxu0 0.0
    %3151 = vmatprep.subr.mxu0 0.0
    %3152 = vmatpush2.msra.mxu0 0.0
    %3153 = vmatprep.mubr.f32.mxu0 0.0
    %v3154 = vand.u32 %v2851, 4294901760
    %v3155 = vsub.f32 %v2851, %v3154
    %v3156 = vand.u32 %v3155, 4294901760
    %3157 = vmatmul.mubr.f32.gmra.mxu0 %v3156
    %v3158 = vpop.f32.mrf.mxu0
    %v3159 = vadd.f32 %v3084, %v3158
    %v3160 = vpop.f32.mrf.mxu0
    %3161 = vdwg.mxu0
    %3162 = vmatprep.subr.mxu0 0.0
    %3163 = vmatpush1.msra.mxu0 0.0
    %3164 = vmatprep.subr.mxu0 0.0
    %3165 = vmatpush1.msra.mxu0 0.0
    %3166 = vmatprep.subr.mxu0 0.0
    %3167 = vmatpush1.msra.mxu0 0.0
    %3168 = vmatprep.subr.mxu0 0.0
    %3169 = vmatpush1.msra.mxu0 0.0
    %3170 = vmatprep.subr.mxu0 0.0
    %3171 = vmatpush1.msra.mxu0 0.0
    %3172 = vmatprep.subr.mxu0 0.0
    %3173 = vmatpush1.msra.mxu0 0.0
    %3174 = vmatprep.subr.mxu0 0.0
    %3175 = vmatpush1.msra.mxu0 0.0
    %3176 = vmatprep.subr.mxu0 0.0
    %3177 = vmatpush1.msra.mxu0 0.0
    %3178 = vmatprep.subr.mxu0 0.0
    %3179 = vmatpush1.msra.mxu0 0.0
    %3180 = vmatprep.subr.mxu0 0.0
    %3181 = vmatpush1.msra.mxu0 0.0
    %3182 = vmatprep.subr.mxu0 0.0
    %3183 = vmatpush1.msra.mxu0 0.0
    %3184 = vmatprep.subr.mxu0 0.0
    %3185 = vmatpush1.msra.mxu0 0.0
    %3186 = vmatprep.subr.mxu0 0.0
    %3187 = vmatpush1.msra.mxu0 0.0
    %3188 = vmatprep.subr.mxu0 0.0
    %3189 = vmatpush1.msra.mxu0 0.0
    %3190 = vmatprep.subr.mxu0 0.0
    %v3191 = vand.u32 %v32, 4294901760
    %v3192 = vsub.f32 %v32, %v3191
    %v3193 = vand.u32 %v3192, 4294901760
    %3194 = vmatpush1.msra.mxu0 %v3193
    %3195 = vmatprep.subr.mxu0 0.0
    %v3196 = vand.u32 %v12, 4294901760
    %v3197 = vsub.f32 %v12, %v3196
    %v3198 = vand.u32 %v3197, 4294901760
    %3199 = vmatpush1.msra.mxu0 %v3198
    %3200 = vmatprep.subr.mxu0 0.0
    %3201 = vmatpush2.msra.mxu0 0.0
    %3202 = vmatprep.subr.mxu0 0.0
    %3203 = vmatpush2.msra.mxu0 0.0
    %3204 = vmatprep.subr.mxu0 0.0
    %3205 = vmatpush2.msra.mxu0 0.0
    %3206 = vmatprep.subr.mxu0 0.0
    %3207 = vmatpush2.msra.mxu0 0.0
    %3208 = vmatprep.subr.mxu0 0.0
    %3209 = vmatpush2.msra.mxu0 0.0
    %3210 = vmatprep.subr.mxu0 0.0
    %3211 = vmatpush2.msra.mxu0 0.0
    %3212 = vmatprep.subr.mxu0 0.0
    %3213 = vmatpush2.msra.mxu0 0.0
    %3214 = vmatprep.subr.mxu0 0.0
    %3215 = vmatpush2.msra.mxu0 0.0
    %3216 = vmatprep.subr.mxu0 0.0
    %3217 = vmatpush2.msra.mxu0 0.0
    %3218 = vmatprep.subr.mxu0 0.0
    %3219 = vmatpush2.msra.mxu0 0.0
    %3220 = vmatprep.subr.mxu0 0.0
    %3221 = vmatpush2.msra.mxu0 0.0
    %3222 = vmatprep.subr.mxu0 0.0
    %3223 = vmatpush2.msra.mxu0 0.0
    %3224 = vmatprep.subr.mxu0 0.0
    %3225 = vmatpush2.msra.mxu0 0.0
    %3226 = vmatprep.subr.mxu0 0.0
    %3227 = vmatpush2.msra.mxu0 0.0
    %3228 = vmatprep.subr.mxu0 0.0
    %3229 = vmatpush2.msra.mxu0 0.0
    %3230 = vmatprep.subr.mxu0 0.0
    %3231 = vmatpush2.msra.mxu0 0.0
    %3232 = vmatprep.mubr.f32.mxu0 0.0
    %v3233 = vand.u32 %v2851, 4294901760
    %3234 = vmatmul.mubr.f32.gmra.mxu0 %v3233
    %v3235 = vpop.f32.mrf.mxu0
    %v3236 = vadd.f32 %v3159, %v3235
    %v3237 = vpop.f32.mrf.mxu0
    %3238 = vdwg.mxu0
    %3239 = vmatprep.subr.mxu0 0.0
    %3240 = vmatpush1.msra.mxu0 0.0
    %3241 = vmatprep.subr.mxu0 0.0
    %3242 = vmatpush1.msra.mxu0 0.0
    %3243 = vmatprep.subr.mxu0 0.0
    %3244 = vmatpush1.msra.mxu0 0.0
    %3245 = vmatprep.subr.mxu0 0.0
    %3246 = vmatpush1.msra.mxu0 0.0
    %3247 = vmatprep.subr.mxu0 0.0
    %3248 = vmatpush1.msra.mxu0 0.0
    %3249 = vmatprep.subr.mxu0 0.0
    %3250 = vmatpush1.msra.mxu0 0.0
    %3251 = vmatprep.subr.mxu0 0.0
    %3252 = vmatpush1.msra.mxu0 0.0
    %3253 = vmatprep.subr.mxu0 0.0
    %3254 = vmatpush1.msra.mxu0 0.0
    %3255 = vmatprep.subr.mxu0 0.0
    %3256 = vmatpush1.msra.mxu0 0.0
    %3257 = vmatprep.subr.mxu0 0.0
    %3258 = vmatpush1.msra.mxu0 0.0
    %3259 = vmatprep.subr.mxu0 0.0
    %3260 = vmatpush1.msra.mxu0 0.0
    %3261 = vmatprep.subr.mxu0 0.0
    %3262 = vmatpush1.msra.mxu0 0.0
    %3263 = vmatprep.subr.mxu0 0.0
    %3264 = vmatpush1.msra.mxu0 0.0
    %3265 = vmatprep.subr.mxu0 0.0
    %3266 = vmatpush1.msra.mxu0 0.0
    %3267 = vmatprep.subr.mxu0 0.0
    %v3268 = vand.u32 %v32, 4294901760
    %3269 = vmatpush1.msra.mxu0 %v3268
    %3270 = vmatprep.subr.mxu0 0.0
    %v3271 = vand.u32 %v12, 4294901760
    %3272 = vmatpush1.msra.mxu0 %v3271
    %3273 = vmatprep.subr.mxu0 0.0
    %3274 = vmatpush2.msra.mxu0 0.0
    %3275 = vmatprep.subr.mxu0 0.0
    %3276 = vmatpush2.msra.mxu0 0.0
    %3277 = vmatprep.subr.mxu0 0.0
    %3278 = vmatpush2.msra.mxu0 0.0
    %3279 = vmatprep.subr.mxu0 0.0
    %3280 = vmatpush2.msra.mxu0 0.0
    %3281 = vmatprep.subr.mxu0 0.0
    %3282 = vmatpush2.msra.mxu0 0.0
    %3283 = vmatprep.subr.mxu0 0.0
    %3284 = vmatpush2.msra.mxu0 0.0
    %3285 = vmatprep.subr.mxu0 0.0
    %3286 = vmatpush2.msra.mxu0 0.0
    %3287 = vmatprep.subr.mxu0 0.0
    %3288 = vmatpush2.msra.mxu0 0.0
    %3289 = vmatprep.subr.mxu0 0.0
    %3290 = vmatpush2.msra.mxu0 0.0
    %3291 = vmatprep.subr.mxu0 0.0
    %3292 = vmatpush2.msra.mxu0 0.0
    %3293 = vmatprep.subr.mxu0 0.0
    %3294 = vmatpush2.msra.mxu0 0.0
    %3295 = vmatprep.subr.mxu0 0.0
    %3296 = vmatpush2.msra.mxu0 0.0
    %3297 = vmatprep.subr.mxu0 0.0
    %3298 = vmatpush2.msra.mxu0 0.0
    %3299 = vmatprep.subr.mxu0 0.0
    %3300 = vmatpush2.msra.mxu0 0.0
    %3301 = vmatprep.subr.mxu0 0.0
    %3302 = vmatpush2.msra.mxu0 0.0
    %3303 = vmatprep.subr.mxu0 0.0
    %3304 = vmatpush2.msra.mxu0 0.0
    %3305 = vmatprep.mubr.f32.mxu0 0.0
    %v3306 = vand.u32 %v2851, 4294901760
    %3307 = vmatmul.mubr.f32.gmra.mxu0 %v3306
    %v3308 = vpop.f32.mrf.mxu0
    %v3309 = vadd.f32 %v3236, %v3308
    %v3310 = vpop.f32.mrf.mxu0
    %3311 = vdwg.mxu0
    %3313 = vrot.lane.b32.xlu0 %v3309, 48
    %v3314 = vpop.permute.xlu0 %3313
    %vm3316 = vcmask 458112
    %3317 = vst.msk [vmem:[#allocation2] sm:$0xff] %vm3316, %v3314
    %3318 = vrot.lane.b32.xlu0 %v1911, 32
    %v3319 = vpop.permute.xlu0 %3318
    %v3320 = vsel %vm26, %v3319, 0
    %3322 = vmatprep.subr.mxu0 0.0
    %3323 = vmatpush1.msra.mxu0 0.0
    %3324 = vmatprep.subr.mxu0 0.0
    %3325 = vmatpush1.msra.mxu0 0.0
    %3326 = vmatprep.subr.mxu0 0.0
    %3327 = vmatpush1.msra.mxu0 0.0
    %3328 = vmatprep.subr.mxu0 0.0
    %3329 = vmatpush1.msra.mxu0 0.0
    %3330 = vmatprep.subr.mxu0 0.0
    %3331 = vmatpush1.msra.mxu0 0.0
    %3332 = vmatprep.subr.mxu0 0.0
    %3333 = vmatpush1.msra.mxu0 0.0
    %3334 = vmatprep.subr.mxu0 0.0
    %3335 = vmatpush1.msra.mxu0 0.0
    %3336 = vmatprep.subr.mxu0 0.0
    %3337 = vmatpush1.msra.mxu0 0.0
    %3338 = vmatprep.subr.mxu0 0.0
    %3339 = vmatpush1.msra.mxu0 0.0
    %3340 = vmatprep.subr.mxu0 0.0
    %3341 = vmatpush1.msra.mxu0 0.0
    %3342 = vmatprep.subr.mxu0 0.0
    %3343 = vmatpush1.msra.mxu0 0.0
    %3344 = vmatprep.subr.mxu0 0.0
    %3345 = vmatpush1.msra.mxu0 0.0
    %3346 = vmatprep.subr.mxu0 0.0
    %3347 = vmatpush1.msra.mxu0 0.0
    %3348 = vmatprep.subr.mxu0 0.0
    %3349 = vmatpush1.msra.mxu0 0.0
    %3350 = vmatprep.subr.mxu0 0.0
    %v3351 = vand.u32 %v32, 4294901760
    %3352 = vmatpush1.msra.mxu0 %v3351
    %3353 = vmatprep.subr.mxu0 0.0
    %v3354 = vand.u32 %v12, 4294901760
    %3355 = vmatpush1.msra.mxu0 %v3354
    %3356 = vmatprep.subr.mxu0 0.0
    %3357 = vmatpush2.msra.mxu0 0.0
    %3358 = vmatprep.subr.mxu0 0.0
    %3359 = vmatpush2.msra.mxu0 0.0
    %3360 = vmatprep.subr.mxu0 0.0
    %3361 = vmatpush2.msra.mxu0 0.0
    %3362 = vmatprep.subr.mxu0 0.0
    %3363 = vmatpush2.msra.mxu0 0.0
    %3364 = vmatprep.subr.mxu0 0.0
    %3365 = vmatpush2.msra.mxu0 0.0
    %3366 = vmatprep.subr.mxu0 0.0
    %3367 = vmatpush2.msra.mxu0 0.0
    %3368 = vmatprep.subr.mxu0 0.0
    %3369 = vmatpush2.msra.mxu0 0.0
    %3370 = vmatprep.subr.mxu0 0.0
    %3371 = vmatpush2.msra.mxu0 0.0
    %3372 = vmatprep.subr.mxu0 0.0
    %3373 = vmatpush2.msra.mxu0 0.0
    %3374 = vmatprep.subr.mxu0 0.0
    %3375 = vmatpush2.msra.mxu0 0.0
    %3376 = vmatprep.subr.mxu0 0.0
    %3377 = vmatpush2.msra.mxu0 0.0
    %3378 = vmatprep.subr.mxu0 0.0
    %3379 = vmatpush2.msra.mxu0 0.0
    %3380 = vmatprep.subr.mxu0 0.0
    %3381 = vmatpush2.msra.mxu0 0.0
    %3382 = vmatprep.subr.mxu0 0.0
    %3383 = vmatpush2.msra.mxu0 0.0
    %3384 = vmatprep.subr.mxu0 0.0
    %3385 = vmatpush2.msra.mxu0 0.0
    %3386 = vmatprep.subr.mxu0 0.0
    %3387 = vmatpush2.msra.mxu0 0.0
    %3388 = vmatprep.mubr.f32.mxu0 0.0
    %v3389 = vand.u32 %v3320, 4294901760
    %v3390 = vsub.f32 %v3320, %v3389
    %v3391 = vand.u32 %v3390, 4294901760
    %v3392 = vsub.f32 %v3390, %v3391
    %v3393 = vand.u32 %v3392, 4294901760
    %3394 = vmatmul.mubr.f32.gmra.mxu0 %v3393
    %v3395 = vpop.f32.mrf.mxu0
    %v3396 = vadd.f32 0.0, %v3395
    %v3397 = vpop.f32.mrf.mxu0
    %3398 = vdwg.mxu0
    %3399 = vmatprep.subr.mxu0 0.0
    %3400 = vmatpush1.msra.mxu0 0.0
    %3401 = vmatprep.subr.mxu0 0.0
    %3402 = vmatpush1.msra.mxu0 0.0
    %3403 = vmatprep.subr.mxu0 0.0
    %3404 = vmatpush1.msra.mxu0 0.0
    %3405 = vmatprep.subr.mxu0 0.0
    %3406 = vmatpush1.msra.mxu0 0.0
    %3407 = vmatprep.subr.mxu0 0.0
    %3408 = vmatpush1.msra.mxu0 0.0
    %3409 = vmatprep.subr.mxu0 0.0
    %3410 = vmatpush1.msra.mxu0 0.0
    %3411 = vmatprep.subr.mxu0 0.0
    %3412 = vmatpush1.msra.mxu0 0.0
    %3413 = vmatprep.subr.mxu0 0.0
    %3414 = vmatpush1.msra.mxu0 0.0
    %3415 = vmatprep.subr.mxu0 0.0
    %3416 = vmatpush1.msra.mxu0 0.0
    %3417 = vmatprep.subr.mxu0 0.0
    %3418 = vmatpush1.msra.mxu0 0.0
    %3419 = vmatprep.subr.mxu0 0.0
    %3420 = vmatpush1.msra.mxu0 0.0
    %3421 = vmatprep.subr.mxu0 0.0
    %3422 = vmatpush1.msra.mxu0 0.0
    %3423 = vmatprep.subr.mxu0 0.0
    %3424 = vmatpush1.msra.mxu0 0.0
    %3425 = vmatprep.subr.mxu0 0.0
    %3426 = vmatpush1.msra.mxu0 0.0
    %3427 = vmatprep.subr.mxu0 0.0
    %v3428 = vand.u32 %v32, 4294901760
    %v3429 = vsub.f32 %v32, %v3428
    %v3430 = vand.u32 %v3429, 4294901760
    %v3431 = vsub.f32 %v3429, %v3430
    %v3432 = vand.u32 %v3431, 4294901760
    %3433 = vmatpush1.msra.mxu0 %v3432
    %3434 = vmatprep.subr.mxu0 0.0
    %v3435 = vand.u32 %v12, 4294901760
    %v3436 = vsub.f32 %v12, %v3435
    %v3437 = vand.u32 %v3436, 4294901760
    %v3438 = vsub.f32 %v3436, %v3437
    %v3439 = vand.u32 %v3438, 4294901760
    %3440 = vmatpush1.msra.mxu0 %v3439
    %3441 = vmatprep.subr.mxu0 0.0
    %3442 = vmatpush2.msra.mxu0 0.0
    %3443 = vmatprep.subr.mxu0 0.0
    %3444 = vmatpush2.msra.mxu0 0.0
    %3445 = vmatprep.subr.mxu0 0.0
    %3446 = vmatpush2.msra.mxu0 0.0
    %3447 = vmatprep.subr.mxu0 0.0
    %3448 = vmatpush2.msra.mxu0 0.0
    %3449 = vmatprep.subr.mxu0 0.0
    %3450 = vmatpush2.msra.mxu0 0.0
    %3451 = vmatprep.subr.mxu0 0.0
    %3452 = vmatpush2.msra.mxu0 0.0
    %3453 = vmatprep.subr.mxu0 0.0
    %3454 = vmatpush2.msra.mxu0 0.0
    %3455 = vmatprep.subr.mxu0 0.0
    %3456 = vmatpush2.msra.mxu0 0.0
    %3457 = vmatprep.subr.mxu0 0.0
    %3458 = vmatpush2.msra.mxu0 0.0
    %3459 = vmatprep.subr.mxu0 0.0
    %3460 = vmatpush2.msra.mxu0 0.0
    %3461 = vmatprep.subr.mxu0 0.0
    %3462 = vmatpush2.msra.mxu0 0.0
    %3463 = vmatprep.subr.mxu0 0.0
    %3464 = vmatpush2.msra.mxu0 0.0
    %3465 = vmatprep.subr.mxu0 0.0
    %3466 = vmatpush2.msra.mxu0 0.0
    %3467 = vmatprep.subr.mxu0 0.0
    %3468 = vmatpush2.msra.mxu0 0.0
    %3469 = vmatprep.subr.mxu0 0.0
    %3470 = vmatpush2.msra.mxu0 0.0
    %3471 = vmatprep.subr.mxu0 0.0
    %3472 = vmatpush2.msra.mxu0 0.0
    %3473 = vmatprep.mubr.f32.mxu0 0.0
    %v3474 = vand.u32 %v3320, 4294901760
    %3475 = vmatmul.mubr.f32.gmra.mxu0 %v3474
    %v3476 = vpop.f32.mrf.mxu0
    %v3477 = vadd.f32 %v3396, %v3476
    %v3478 = vpop.f32.mrf.mxu0
    %3479 = vdwg.mxu0
    %3480 = vmatprep.subr.mxu0 0.0
    %3481 = vmatpush1.msra.mxu0 0.0
    %3482 = vmatprep.subr.mxu0 0.0
    %3483 = vmatpush1.msra.mxu0 0.0
    %3484 = vmatprep.subr.mxu0 0.0
    %3485 = vmatpush1.msra.mxu0 0.0
    %3486 = vmatprep.subr.mxu0 0.0
    %3487 = vmatpush1.msra.mxu0 0.0
    %3488 = vmatprep.subr.mxu0 0.0
    %3489 = vmatpush1.msra.mxu0 0.0
    %3490 = vmatprep.subr.mxu0 0.0
    %3491 = vmatpush1.msra.mxu0 0.0
    %3492 = vmatprep.subr.mxu0 0.0
    %3493 = vmatpush1.msra.mxu0 0.0
    %3494 = vmatprep.subr.mxu0 0.0
    %3495 = vmatpush1.msra.mxu0 0.0
    %3496 = vmatprep.subr.mxu0 0.0
    %3497 = vmatpush1.msra.mxu0 0.0
    %3498 = vmatprep.subr.mxu0 0.0
    %3499 = vmatpush1.msra.mxu0 0.0
    %3500 = vmatprep.subr.mxu0 0.0
    %3501 = vmatpush1.msra.mxu0 0.0
    %3502 = vmatprep.subr.mxu0 0.0
    %3503 = vmatpush1.msra.mxu0 0.0
    %3504 = vmatprep.subr.mxu0 0.0
    %3505 = vmatpush1.msra.mxu0 0.0
    %3506 = vmatprep.subr.mxu0 0.0
    %3507 = vmatpush1.msra.mxu0 0.0
    %3508 = vmatprep.subr.mxu0 0.0
    %v3509 = vand.u32 %v32, 4294901760
    %v3510 = vsub.f32 %v32, %v3509
    %3511 = vmatpush1.msra.mxu0 %v3510
    %3512 = vmatprep.subr.mxu0 0.0
    %v3513 = vand.u32 %v12, 4294901760
    %v3514 = vsub.f32 %v12, %v3513
    %3515 = vmatpush1.msra.mxu0 %v3514
    %3516 = vmatprep.subr.mxu0 0.0
    %3517 = vmatpush2.msra.mxu0 0.0
    %3518 = vmatprep.subr.mxu0 0.0
    %3519 = vmatpush2.msra.mxu0 0.0
    %3520 = vmatprep.subr.mxu0 0.0
    %3521 = vmatpush2.msra.mxu0 0.0
    %3522 = vmatprep.subr.mxu0 0.0
    %3523 = vmatpush2.msra.mxu0 0.0
    %3524 = vmatprep.subr.mxu0 0.0
    %3525 = vmatpush2.msra.mxu0 0.0
    %3526 = vmatprep.subr.mxu0 0.0
    %3527 = vmatpush2.msra.mxu0 0.0
    %3528 = vmatprep.subr.mxu0 0.0
    %3529 = vmatpush2.msra.mxu0 0.0
    %3530 = vmatprep.subr.mxu0 0.0
    %3531 = vmatpush2.msra.mxu0 0.0
    %3532 = vmatprep.subr.mxu0 0.0
    %3533 = vmatpush2.msra.mxu0 0.0
    %3534 = vmatprep.subr.mxu0 0.0
    %3535 = vmatpush2.msra.mxu0 0.0
    %3536 = vmatprep.subr.mxu0 0.0
    %3537 = vmatpush2.msra.mxu0 0.0
    %3538 = vmatprep.subr.mxu0 0.0
    %3539 = vmatpush2.msra.mxu0 0.0
    %3540 = vmatprep.subr.mxu0 0.0
    %3541 = vmatpush2.msra.mxu0 0.0
    %3542 = vmatprep.subr.mxu0 0.0
    %3543 = vmatpush2.msra.mxu0 0.0
    %3544 = vmatprep.subr.mxu0 0.0
    %3545 = vmatpush2.msra.mxu0 0.0
    %3546 = vmatprep.subr.mxu0 0.0
    %3547 = vmatpush2.msra.mxu0 0.0
    %3548 = vmatprep.mubr.f32.mxu0 0.0
    %v3549 = vand.u32 %v3320, 4294901760
    %v3550 = vsub.f32 %v3320, %v3549
    %3551 = vmatmul.mubr.f32.gmra.mxu0 %v3550
    %v3552 = vpop.f32.mrf.mxu0
    %v3553 = vadd.f32 %v3477, %v3552
    %v3554 = vpop.f32.mrf.mxu0
    %3555 = vdwg.mxu0
    %3556 = vmatprep.subr.mxu0 0.0
    %3557 = vmatpush1.msra.mxu0 0.0
    %3558 = vmatprep.subr.mxu0 0.0
    %3559 = vmatpush1.msra.mxu0 0.0
    %3560 = vmatprep.subr.mxu0 0.0
    %3561 = vmatpush1.msra.mxu0 0.0
    %3562 = vmatprep.subr.mxu0 0.0
    %3563 = vmatpush1.msra.mxu0 0.0
    %3564 = vmatprep.subr.mxu0 0.0
    %3565 = vmatpush1.msra.mxu0 0.0
    %3566 = vmatprep.subr.mxu0 0.0
    %3567 = vmatpush1.msra.mxu0 0.0
    %3568 = vmatprep.subr.mxu0 0.0
    %3569 = vmatpush1.msra.mxu0 0.0
    %3570 = vmatprep.subr.mxu0 0.0
    %3571 = vmatpush1.msra.mxu0 0.0
    %3572 = vmatprep.subr.mxu0 0.0
    %3573 = vmatpush1.msra.mxu0 0.0
    %3574 = vmatprep.subr.mxu0 0.0
    %3575 = vmatpush1.msra.mxu0 0.0
    %3576 = vmatprep.subr.mxu0 0.0
    %3577 = vmatpush1.msra.mxu0 0.0
    %3578 = vmatprep.subr.mxu0 0.0
    %3579 = vmatpush1.msra.mxu0 0.0
    %3580 = vmatprep.subr.mxu0 0.0
    %3581 = vmatpush1.msra.mxu0 0.0
    %3582 = vmatprep.subr.mxu0 0.0
    %3583 = vmatpush1.msra.mxu0 0.0
    %3584 = vmatprep.subr.mxu0 0.0
    %v3585 = vand.u32 %v32, 4294901760
    %3586 = vmatpush1.msra.mxu0 %v3585
    %3587 = vmatprep.subr.mxu0 0.0
    %v3588 = vand.u32 %v12, 4294901760
    %3589 = vmatpush1.msra.mxu0 %v3588
    %3590 = vmatprep.subr.mxu0 0.0
    %3591 = vmatpush2.msra.mxu0 0.0
    %3592 = vmatprep.subr.mxu0 0.0
    %3593 = vmatpush2.msra.mxu0 0.0
    %3594 = vmatprep.subr.mxu0 0.0
    %3595 = vmatpush2.msra.mxu0 0.0
    %3596 = vmatprep.subr.mxu0 0.0
    %3597 = vmatpush2.msra.mxu0 0.0
    %3598 = vmatprep.subr.mxu0 0.0
    %3599 = vmatpush2.msra.mxu0 0.0
    %3600 = vmatprep.subr.mxu0 0.0
    %3601 = vmatpush2.msra.mxu0 0.0
    %3602 = vmatprep.subr.mxu0 0.0
    %3603 = vmatpush2.msra.mxu0 0.0
    %3604 = vmatprep.subr.mxu0 0.0
    %3605 = vmatpush2.msra.mxu0 0.0
    %3606 = vmatprep.subr.mxu0 0.0
    %3607 = vmatpush2.msra.mxu0 0.0
    %3608 = vmatprep.subr.mxu0 0.0
    %3609 = vmatpush2.msra.mxu0 0.0
    %3610 = vmatprep.subr.mxu0 0.0
    %3611 = vmatpush2.msra.mxu0 0.0
    %3612 = vmatprep.subr.mxu0 0.0
    %3613 = vmatpush2.msra.mxu0 0.0
    %3614 = vmatprep.subr.mxu0 0.0
    %3615 = vmatpush2.msra.mxu0 0.0
    %3616 = vmatprep.subr.mxu0 0.0
    %3617 = vmatpush2.msra.mxu0 0.0
    %3618 = vmatprep.subr.mxu0 0.0
    %3619 = vmatpush2.msra.mxu0 0.0
    %3620 = vmatprep.subr.mxu0 0.0
    %3621 = vmatpush2.msra.mxu0 0.0
    %3622 = vmatprep.mubr.f32.mxu0 0.0
    %v3623 = vand.u32 %v3320, 4294901760
    %v3624 = vsub.f32 %v3320, %v3623
    %v3625 = vand.u32 %v3624, 4294901760
    %3626 = vmatmul.mubr.f32.gmra.mxu0 %v3625
    %v3627 = vpop.f32.mrf.mxu0
    %v3628 = vadd.f32 %v3553, %v3627
    %v3629 = vpop.f32.mrf.mxu0
    %3630 = vdwg.mxu0
    %3631 = vmatprep.subr.mxu0 0.0
    %3632 = vmatpush1.msra.mxu0 0.0
    %3633 = vmatprep.subr.mxu0 0.0
    %3634 = vmatpush1.msra.mxu0 0.0
    %3635 = vmatprep.subr.mxu0 0.0
    %3636 = vmatpush1.msra.mxu0 0.0
    %3637 = vmatprep.subr.mxu0 0.0
    %3638 = vmatpush1.msra.mxu0 0.0
    %3639 = vmatprep.subr.mxu0 0.0
    %3640 = vmatpush1.msra.mxu0 0.0
    %3641 = vmatprep.subr.mxu0 0.0
    %3642 = vmatpush1.msra.mxu0 0.0
    %3643 = vmatprep.subr.mxu0 0.0
    %3644 = vmatpush1.msra.mxu0 0.0
    %3645 = vmatprep.subr.mxu0 0.0
    %3646 = vmatpush1.msra.mxu0 0.0
    %3647 = vmatprep.subr.mxu0 0.0
    %3648 = vmatpush1.msra.mxu0 0.0
    %3649 = vmatprep.subr.mxu0 0.0
    %3650 = vmatpush1.msra.mxu0 0.0
    %3651 = vmatprep.subr.mxu0 0.0
    %3652 = vmatpush1.msra.mxu0 0.0
    %3653 = vmatprep.subr.mxu0 0.0
    %3654 = vmatpush1.msra.mxu0 0.0
    %3655 = vmatprep.subr.mxu0 0.0
    %3656 = vmatpush1.msra.mxu0 0.0
    %3657 = vmatprep.subr.mxu0 0.0
    %3658 = vmatpush1.msra.mxu0 0.0
    %3659 = vmatprep.subr.mxu0 0.0
    %v3660 = vand.u32 %v32, 4294901760
    %v3661 = vsub.f32 %v32, %v3660
    %v3662 = vand.u32 %v3661, 4294901760
    %3663 = vmatpush1.msra.mxu0 %v3662
    %3664 = vmatprep.subr.mxu0 0.0
    %v3665 = vand.u32 %v12, 4294901760
    %v3666 = vsub.f32 %v12, %v3665
    %v3667 = vand.u32 %v3666, 4294901760
    %3668 = vmatpush1.msra.mxu0 %v3667
    %3669 = vmatprep.subr.mxu0 0.0
    %3670 = vmatpush2.msra.mxu0 0.0
    %3671 = vmatprep.subr.mxu0 0.0
    %3672 = vmatpush2.msra.mxu0 0.0
    %3673 = vmatprep.subr.mxu0 0.0
    %3674 = vmatpush2.msra.mxu0 0.0
    %3675 = vmatprep.subr.mxu0 0.0
    %3676 = vmatpush2.msra.mxu0 0.0
    %3677 = vmatprep.subr.mxu0 0.0
    %3678 = vmatpush2.msra.mxu0 0.0
    %3679 = vmatprep.subr.mxu0 0.0
    %3680 = vmatpush2.msra.mxu0 0.0
    %3681 = vmatprep.subr.mxu0 0.0
    %3682 = vmatpush2.msra.mxu0 0.0
    %3683 = vmatprep.subr.mxu0 0.0
    %3684 = vmatpush2.msra.mxu0 0.0
    %3685 = vmatprep.subr.mxu0 0.0
    %3686 = vmatpush2.msra.mxu0 0.0
    %3687 = vmatprep.subr.mxu0 0.0
    %3688 = vmatpush2.msra.mxu0 0.0
    %3689 = vmatprep.subr.mxu0 0.0
    %3690 = vmatpush2.msra.mxu0 0.0
    %3691 = vmatprep.subr.mxu0 0.0
    %3692 = vmatpush2.msra.mxu0 0.0
    %3693 = vmatprep.subr.mxu0 0.0
    %3694 = vmatpush2.msra.mxu0 0.0
    %3695 = vmatprep.subr.mxu0 0.0
    %3696 = vmatpush2.msra.mxu0 0.0
    %3697 = vmatprep.subr.mxu0 0.0
    %3698 = vmatpush2.msra.mxu0 0.0
    %3699 = vmatprep.subr.mxu0 0.0
    %3700 = vmatpush2.msra.mxu0 0.0
    %3701 = vmatprep.mubr.f32.mxu0 0.0
    %v3702 = vand.u32 %v3320, 4294901760
    %3703 = vmatmul.mubr.f32.gmra.mxu0 %v3702
    %v3704 = vpop.f32.mrf.mxu0
    %v3705 = vadd.f32 %v3628, %v3704
    %v3706 = vpop.f32.mrf.mxu0
    %3707 = vdwg.mxu0
    %3708 = vmatprep.subr.mxu0 0.0
    %3709 = vmatpush1.msra.mxu0 0.0
    %3710 = vmatprep.subr.mxu0 0.0
    %3711 = vmatpush1.msra.mxu0 0.0
    %3712 = vmatprep.subr.mxu0 0.0
    %3713 = vmatpush1.msra.mxu0 0.0
    %3714 = vmatprep.subr.mxu0 0.0
    %3715 = vmatpush1.msra.mxu0 0.0
    %3716 = vmatprep.subr.mxu0 0.0
    %3717 = vmatpush1.msra.mxu0 0.0
    %3718 = vmatprep.subr.mxu0 0.0
    %3719 = vmatpush1.msra.mxu0 0.0
    %3720 = vmatprep.subr.mxu0 0.0
    %3721 = vmatpush1.msra.mxu0 0.0
    %3722 = vmatprep.subr.mxu0 0.0
    %3723 = vmatpush1.msra.mxu0 0.0
    %3724 = vmatprep.subr.mxu0 0.0
    %3725 = vmatpush1.msra.mxu0 0.0
    %3726 = vmatprep.subr.mxu0 0.0
    %3727 = vmatpush1.msra.mxu0 0.0
    %3728 = vmatprep.subr.mxu0 0.0
    %3729 = vmatpush1.msra.mxu0 0.0
    %3730 = vmatprep.subr.mxu0 0.0
    %3731 = vmatpush1.msra.mxu0 0.0
    %3732 = vmatprep.subr.mxu0 0.0
    %3733 = vmatpush1.msra.mxu0 0.0
    %3734 = vmatprep.subr.mxu0 0.0
    %3735 = vmatpush1.msra.mxu0 0.0
    %3736 = vmatprep.subr.mxu0 0.0
    %v3737 = vand.u32 %v32, 4294901760
    %3738 = vmatpush1.msra.mxu0 %v3737
    %3739 = vmatprep.subr.mxu0 0.0
    %v3740 = vand.u32 %v12, 4294901760
    %3741 = vmatpush1.msra.mxu0 %v3740
    %3742 = vmatprep.subr.mxu0 0.0
    %3743 = vmatpush2.msra.mxu0 0.0
    %3744 = vmatprep.subr.mxu0 0.0
    %3745 = vmatpush2.msra.mxu0 0.0
    %3746 = vmatprep.subr.mxu0 0.0
    %3747 = vmatpush2.msra.mxu0 0.0
    %3748 = vmatprep.subr.mxu0 0.0
    %3749 = vmatpush2.msra.mxu0 0.0
    %3750 = vmatprep.subr.mxu0 0.0
    %3751 = vmatpush2.msra.mxu0 0.0
    %3752 = vmatprep.subr.mxu0 0.0
    %3753 = vmatpush2.msra.mxu0 0.0
    %3754 = vmatprep.subr.mxu0 0.0
    %3755 = vmatpush2.msra.mxu0 0.0
    %3756 = vmatprep.subr.mxu0 0.0
    %3757 = vmatpush2.msra.mxu0 0.0
    %3758 = vmatprep.subr.mxu0 0.0
    %3759 = vmatpush2.msra.mxu0 0.0
    %3760 = vmatprep.subr.mxu0 0.0
    %3761 = vmatpush2.msra.mxu0 0.0
    %3762 = vmatprep.subr.mxu0 0.0
    %3763 = vmatpush2.msra.mxu0 0.0
    %3764 = vmatprep.subr.mxu0 0.0
    %3765 = vmatpush2.msra.mxu0 0.0
    %3766 = vmatprep.subr.mxu0 0.0
    %3767 = vmatpush2.msra.mxu0 0.0
    %3768 = vmatprep.subr.mxu0 0.0
    %3769 = vmatpush2.msra.mxu0 0.0
    %3770 = vmatprep.subr.mxu0 0.0
    %3771 = vmatpush2.msra.mxu0 0.0
    %3772 = vmatprep.subr.mxu0 0.0
    %3773 = vmatpush2.msra.mxu0 0.0
    %3774 = vmatprep.mubr.f32.mxu0 0.0
    %v3775 = vand.u32 %v3320, 4294901760
    %3776 = vmatmul.mubr.f32.gmra.mxu0 %v3775
    %v3777 = vpop.f32.mrf.mxu0
    %v3778 = vadd.f32 %v3705, %v3777
    %v3779 = vpop.f32.mrf.mxu0
    %3780 = vdwg.mxu0
    %3782 = vrot.lane.b32.xlu0 %v3778, 56
    %v3783 = vpop.permute.xlu0 %3782
    %vm3785 = vcmask 523712
    %3786 = vst.msk [vmem:[#allocation2] sm:$0xff] %vm3785, %v3783
    // Predicated region
    $region10: #{tpu_custom_call.1} parent=1 // pred_check
      _
    $region11: #{tpu_custom_call.1} parent=1 // pred_check_branch
      %3788 = sbr.rel (0) target = $region13
    $region12: #{tpu_custom_call.1} parent=1 // pred_region
      %s3790 = ssub.s32 128, 128
      %3791 = vsyncadd [#allocation3], %s3790
      %s3793 = sshll.u32 [#allocation2], 4
      %s3794 = int_to_ptr.vmem [resolvable:$true] %s3793
      %3796 = dma.vmem_to_hbm [thread:$0]  %s3794, 128, %s2, [#allocation3]
    $region13: #{tpu_custom_call.1} parent=1 // pred_fallthru
      _
    // Predicated region
    $region14: #{tpu_custom_call.1} parent=1 // pred_check
      _
    $region15: #{tpu_custom_call.1} parent=1 // pred_check_branch
      %3798 = sbr.rel (0) target = $region17
    $region16: #{tpu_custom_call.1} parent=1 // pred_region
      %3799 = dma.done [#allocation3], 128
    $region17: #{tpu_custom_call.1} parent=1 // pred_fallthru
      _
    %3800 = vsyncpa [#allocation3], 1

</llo_original>
